<compile_context>
chip_gen: v6e
topology: v6e:2x2x1
jax: 0.10.0
libtpu: 0.0.40
codegen_flags: <defaults>
</compile_context>

<pallas_src>
import jax
import jax.numpy as jnp
from jax import lax
from jax.experimental import pallas as pl
from jax.experimental.pallas import tpu as pltpu


def _round_up(n: int, m: int) -> int:
    return ((n + m - 1) // m) * m


def _pick_tile(n: int, target: int, *, align: int = 128,
               min_tiles: int = 4, floor: int = 256) -> int:
    """Large tile by default, but keep >= min_tiles tiles so the v7x megacore
    ('parallel' axis split across 2 TensorCores) stays balanced."""
    full = _round_up(n, align)
    t = min(target, full)
    balanced = _round_up(-(-n // min_tiles), align)
    t = min(t, max(balanced, floor))
    return max(t, align)


# ---------------------------------------------------------------------------
# Kernel 1: mixed = (1 - alpha) * E0 + alpha * (img_vec @ post_mats)
#   grid = (entity-row tiles [parallel],) — single full-K MXU sweep per tile.
#   post_mats fully resident, alpha read from SMEM, f32 math on the VPU
#   epilogue, outputs both f32 (gathers) and bf16 (streaming) tables.
# ---------------------------------------------------------------------------
def _mixed_table_kernel(alpha_ref, img_ref, post_ref, e0_ref,
                        mixed_f32_ref, mixed_bf16_ref):
    a = alpha_ref[0]
    img_emb = jnp.dot(img_ref[...], post_ref[...],
                      preferred_element_type=jnp.float32)
    e0 = e0_ref[...]
    # (1 - a) * e0 + a * img_emb, written as e0 + a*(img_emb - e0) so only
    # scalar*vector VPU ops are needed (f32 on the VPU — v5e has no bf16 VPU).
    mixed = e0 + a * (img_emb - e0)
    mixed_f32_ref[...] = mixed
    mixed_bf16_ref[...] = mixed.astype(jnp.bfloat16)


def build_mixed_table(img_vec, post_mats, e0, alpha, *, tm=512):
    n_ent, img_dim = img_vec.shape
    two_rank = e0.shape[1]
    tm = _pick_tile(n_ent, tm, align=128, min_tiles=4, floor=256)

    alpha_arr = jnp.reshape(jnp.asarray(alpha, jnp.float32), (1,))

    cost = pl.CostEstimate(
        flops=2 * n_ent * img_dim * two_rank,
        transcendentals=0,
        bytes_accessed=(4 * (n_ent * img_dim + img_dim * two_rank
                             + 2 * n_ent * two_rank)      # img, post, e0, f32 out
                        + 2 * n_ent * two_rank),           # bf16 out
    )
    # TODO(synk): for very large img_dim/rank (post_mats or the (tm, img_dim)
    # img block no longer VMEM-friendly, esp. v7x's 32 MiB default scoped VMEM)
    # lower tm or raise vmem_limit_bytes / reintroduce a K grid axis.
    return pl.pallas_call(
        _mixed_table_kernel,
        out_shape=(jax.ShapeDtypeStruct((n_ent, two_rank), jnp.float32),
                   jax.ShapeDtypeStruct((n_ent, two_rank), jnp.bfloat16)),
        grid=(pl.cdiv(n_ent, tm),),
        in_specs=[
            pl.BlockSpec(memory_space=pltpu.MemorySpace.SMEM),       # alpha
            pl.BlockSpec((tm, img_dim), lambda i: (i, 0)),           # img_vec (full K)
            pl.BlockSpec((img_dim, two_rank), lambda i: (0, 0)),     # post_mats (resident)
            pl.BlockSpec((tm, two_rank), lambda i: (i, 0)),          # E0
        ],
        out_specs=(pl.BlockSpec((tm, two_rank), lambda i: (i, 0)),   # mixed f32
                   pl.BlockSpec((tm, two_rank), lambda i: (i, 0))),  # mixed bf16
        compiler_params=pltpu.CompilerParams(
            dimension_semantics=("parallel",)),
        cost_estimate=cost,
    )(alpha_arr, img_vec, post_mats, e0)


# ---------------------------------------------------------------------------
# Kernel 2: score = q_cmplx @ mixed.T + q_ent @ ent_w.T, streamed over entities
#   q_cmplx = [q_re | q_im]  (B, 2*rank)  — fused re/im contraction (K = 2*rank)
#   Tables arrive in bf16 (halved HBM traffic on the mem-bound stream) and are
#   up-cast to f32 in VMEM; dot_general contracts dim 1 of both operands so no
#   in-kernel transpose is needed.
# ---------------------------------------------------------------------------
def _score_kernel(qc_ref, qe_ref, mix_ref, ent_ref, o_ref):
    dn = (((1,), (1,)), ((), ()))  # contract feature axis of both operands
    mix = mix_ref[...].astype(jnp.float32)
    ent = ent_ref[...].astype(jnp.float32)
    s = lax.dot_general(qc_ref[...], mix, dn,
                        preferred_element_type=jnp.float32)
    s = s + lax.dot_general(qe_ref[...], ent, dn,
                            preferred_element_type=jnp.float32)
    o_ref[...] = s


def complex_score(q_cmplx, q_ent, mixed_bf16, ent_bf16, *, tn=2048):
    bsz, two_rank = q_cmplx.shape
    n_ent = mixed_bf16.shape[0]
    tn = _pick_tile(n_ent, tn, align=128, min_tiles=4, floor=256)

    cost = pl.CostEstimate(
        flops=4 * bsz * n_ent * two_rank,
        transcendentals=0,
        bytes_accessed=(2 * (2 * n_ent * two_rank)          # bf16 tables
                        + 4 * (2 * bsz * two_rank + bsz * n_ent)),
    )
    vec_spec = pl.BlockSpec((bsz, two_rank), lambda j: (0, 0))   # resident
    tbl_spec = pl.BlockSpec((tn, two_rank), lambda j: (j, 0))    # streamed (bf16)
    # TODO(synk): if a trace still shows exposed DMA between grid steps, sweep
    # pipeline_mode=pl.Buffered(3) on tbl_spec; add a batch grid axis (tile
    # 128-256, 'parallel') once B grows beyond a few hundred.
    return pl.pallas_call(
        _score_kernel,
        out_shape=jax.ShapeDtypeStruct((bsz, n_ent), jnp.float32),
        grid=(pl.cdiv(n_ent, tn),),
        in_specs=[vec_spec, vec_spec, tbl_spec, tbl_spec],
        out_specs=pl.BlockSpec((bsz, tn), lambda j: (0, j)),
        compiler_params=pltpu.CompilerParams(
            dimension_semantics=("parallel",)),
        cost_estimate=cost,
    )(q_cmplx, q_ent, mixed_bf16, ent_bf16)


# ---------------------------------------------------------------------------
# Forward (constant=True, finetune=False branch)
# ---------------------------------------------------------------------------
def analogy_forward(params, x, alpha):
    """x: int32 [B, 4] = (lhs_id, rel_id, rhs_id, mode)."""
    e0 = params["e0"]            # r_embeddings[0].weight   (n_ent, 2*rank)
    e1 = params["e1"]            # r_embeddings[1].weight   (n_rel, 2*rank)
    ent_w = params["ent_emb"]    # ent_embeddings.weight    (n_ent, 2*rank)
    rel_w = params["rel_emb"]    # rel_embeddings.weight    (n_rel, 2*rank)
    post = params["post_mats"]   # (img_dim, 2*rank)
    img_vec = params["img_vec"]  # (n_ent, img_dim)
    rank = e0.shape[1] // 2

    # Persistent bf16 copy of ent_embeddings for the streamed score kernel.
    ent_bf16 = params.get("ent_emb_bf16", None)
    if ent_bf16 is None:
        # TODO(synk): keep this cast in the train state (done once), not per call.
        ent_bf16 = ent_w.astype(jnp.bfloat16)

    # Kernel 1: mixed "to_score" entity table (f32 for gathers, bf16 for streaming).
    mixed_f32, mixed_bf16 = build_mixed_table(img_vec, post, e0, alpha)

    # --- tiny glue (plain JAX): gathers + per-row mode select -----------------
    lhs_id, rel_id, rhs_id = x[:, 0], x[:, 1], x[:, 2]
    m = x[:, -1][:, None]

    lhs = jnp.where(m == 0, jnp.take(e0, lhs_id, axis=0),
                    jnp.take(mixed_f32, lhs_id, axis=0))
    rhs = jnp.where(m >= 2, jnp.take(mixed_f32, rhs_id, axis=0),
                    jnp.take(e0, rhs_id, axis=0))
    rel = jnp.take(e1, rel_id, axis=0)
    rel_rel = jnp.take(rel_w, rel_id, axis=0)

    # lhs_ent mixes ent_embeddings with the *image projection* of the lhs rows.
    img_lhs = jnp.take(img_vec, lhs_id, axis=0) @ post          # (B, 2*rank)
    ent_lhs = jnp.take(ent_w, lhs_id, axis=0)
    lhs_ent = jnp.where(m == 0, ent_lhs,
                        (1.0 - alpha) * ent_lhs + alpha * img_lhs)

    lre, lim = lhs[:, :rank], lhs[:, rank:]
    rre, rim = rel[:, :rank], rel[:, rank:]
    q_cmplx = jnp.concatenate([lre * rre - lim * rim,
                               lre * rim + lim * rre], axis=1)   # (B, 2*rank)
    q_ent = lhs_ent * rel_rel                                    # (B, 2*rank)

    # Kernel 2: scores against the full entity vocabulary (bf16-streamed tables).
    scores = complex_score(q_cmplx, q_ent, mixed_bf16, ent_bf16)

    # Regularization factors (tiny elementwise work — plain JAX, XLA fuses).
    rhre, rhim = rhs[:, :rank], rhs[:, rank:]
    f_lhs = jnp.sqrt(lre ** 2 + lim ** 2)
    f_rel = jnp.sqrt(rre ** 2 + rim ** 2)
    f_rhs = jnp.sqrt(rhre ** 2 + rhim ** 2)
    # Matches the original code's (odd) row indexing; requires batch >= 2.
    f_ent = jnp.sqrt(lhs_ent[0] ** 2 + rel_rel[1] ** 2)

    return scores, (f_lhs, f_rel, f_rhs, f_ent)


# ---------------------------------------------------------------------------
# Deterministic parameter init (shapes from __init__; pickled data replaced by
# in-script random stand-ins)
# ---------------------------------------------------------------------------
def init_params(key, sizes, rank, img_dimension, init_size=1e-3):
    k0, k1, k2, k3, k4, k5 = jax.random.split(key, 6)
    two_rank = 2 * rank
    e0 = jax.random.normal(k0, (sizes[0], two_rank), jnp.float32) * init_size
    e1 = jax.random.normal(k1, (sizes[1], two_rank), jnp.float32) * init_size
    ent_emb = jax.random.normal(k2, (sizes[0], two_rank), jnp.float32) * init_size
    rel_emb = jax.random.normal(k3, (sizes[1], two_rank), jnp.float32) * init_size
    limit = (6.0 / (img_dimension + two_rank)) ** 0.5   # xavier_uniform
    post_mats = jax.random.uniform(
        k4, (img_dimension, two_rank), jnp.float32, -limit, limit)
    img_vec = jax.random.normal(k5, (sizes[0], img_dimension), jnp.float32)
    params = {"e0": e0, "e1": e1, "ent_emb": ent_emb, "rel_emb": rel_emb,
              "post_mats": post_mats, "img_vec": img_vec}
    # Persistent bf16 copy of the entity-embedding table (streamed by kernel 2).
    params["ent_emb_bf16"] = ent_emb.astype(jnp.bfloat16)
    return params


# ---------------------------------------------------------------------------
# Pure-JAX reference (mirrors the torch branch; streamed tables quantized to
# bf16 exactly like the Pallas score kernel) for correctness checking.
# ---------------------------------------------------------------------------
def analogy_forward_ref(params, x, alpha):
    e0, e1 = params["e0"], params["e1"]
    ent_w, rel_w = params["ent_emb"], params["rel_emb"]
    post, img_vec = params["post_mats"], params["img_vec"]
    rank = e0.shape[1] // 2

    img_emb = img_vec @ post
    mixed = (1.0 - alpha) * e0 + alpha * img_emb
    # The Pallas score kernel streams these tables in bf16 — match that here.
    mixed_q = mixed.astype(jnp.bfloat16).astype(jnp.float32)
    ent_q = ent_w.astype(jnp.bfloat16).astype(jnp.float32)

    lhs_id, rel_id, rhs_id = x[:, 0], x[:, 1], x[:, 2]
    m = x[:, -1][:, None]

    lhs = jnp.where(m == 0, e0[lhs_id], mixed[lhs_id])
    rhs = jnp.where(m >= 2, mixed[rhs_id], e0[rhs_id])
    rel = e1[rel_id]
    rel_rel = rel_w[rel_id]
    lhs_ent = jnp.where(m == 0, ent_w[lhs_id],
                        (1.0 - alpha) * ent_w[lhs_id] + alpha * img_emb[lhs_id])

    lre, lim = lhs[:, :rank], lhs[:, rank:]
    rre, rim = rel[:, :rank], rel[:, rank:]
    scores = ((lre * rre - lim * rim) @ mixed_q[:, :rank].T
              + (lre * rim + lim * rre) @ mixed_q[:, rank:].T
              + (lhs_ent * rel_rel) @ ent_q.T)

    rhre, rhim = rhs[:, :rank], rhs[:, rank:]
    factors = (jnp.sqrt(lre ** 2 + lim ** 2),
               jnp.sqrt(rre ** 2 + rim ** 2),
               jnp.sqrt(rhre ** 2 + rhim ** 2),
               jnp.sqrt(lhs_ent[0] ** 2 + rel_rel[1] ** 2))
    return scores, factors


if __name__ == "__main__":
    # Small but representative shapes (ragged vs the tile sizes on purpose so
    # all grid/masking paths are exercised): 1500 entities, 32 relations,
    # rank 64 (2*rank = 128 lanes), image feature dim 384, batch 8.
    sizes = (1500, 32, 1500)
    rank = 64
    img_dimension = 384
    alpha = 0.3
    batch = 8

    key = jax.random.PRNGKey(0)
    pkey, xkey = jax.random.split(key)
    params = init_params(pkey, sizes, rank, img_dimension)

    k_l, k_rel, k_r, k_m = jax.random.split(xkey, 4)
    x = jnp.stack(
        [
            jax.random.randint(k_l, (batch,), 0, sizes[0], jnp.int32),
            jax.random.randint(k_rel, (batch,), 0, sizes[1], jnp.int32),
            jax.random.randint(k_r, (batch,), 0, sizes[0], jnp.int32),
            jax.random.randint(k_m, (batch,), 0, 3, jnp.int32),   # mode 0/1/2
        ],
        axis=1,
    )

    fwd = jax.jit(analogy_forward)  # alpha is a traced scalar: no recompiles
    scores, factors = fwd(params, x, jnp.float32(alpha))
    jax.block_until_ready((scores, factors))

    ref_scores, ref_factors = analogy_forward_ref(params, x, alpha)

    assert scores.shape == (batch, sizes[0])
    assert factors[0].shape == (batch, rank)
    assert factors[3].shape == (2 * rank,)
    # atol slightly above the previous run's 1e-5: both sides quantize the
    # streamed tables to bf16 identically, remaining diff is matmul rounding.
    if not jnp.allclose(scores, ref_scores, rtol=1e-3, atol=2e-5):
        raise AssertionError("Pallas Analogy score mismatch vs JAX reference")
    for got, want in zip(factors, ref_factors):
        if not jnp.allclose(got, want, rtol=1e-3, atol=1e-5):
            raise AssertionError("Pallas Analogy factor mismatch vs JAX reference")

    print("KERNEL_OK")
</pallas_src>

<mosaic_0001>
module attributes {stable_mosaic.version = 11 : i64} {
  func.func @_mixed_table_kernel(%arg0: i32, %arg1: memref<1xf32, #tpu.memory_space<smem>>, %arg2: memref<384x384xf32, #tpu.memory_space<vmem>>, %arg3: memref<384x128xf32, #tpu.memory_space<vmem>>, %arg4: memref<384x128xf32, #tpu.memory_space<vmem>>, %arg5: memref<384x128xf32, #tpu.memory_space<vmem>>, %arg6: memref<384x128xbf16, #tpu.memory_space<vmem>>) attributes {dimension_semantics = [#tpu.dimension_semantics<parallel>], iteration_bounds = array<i64: 4>, scalar_prefetch = 0 : i64, scratch_operands = 0 : i64, tpu.core_type = #tpu.core_type<tc>, window_params = [{transform_indices = @transform_0, window_bounds = array<i64: 1>}, {transform_indices = @transform_1, window_bounds = array<i64: 384, 384>}, {pipeline_mode = #tpu.pipeline_mode<synchronous>, transform_indices = @transform_2, window_bounds = array<i64: 384, 128>}, {transform_indices = @transform_3, window_bounds = array<i64: 384, 128>}, {transform_indices = @transform_4, window_bounds = array<i64: 384, 128>}, {transform_indices = @transform_5, window_bounds = array<i64: 384, 128>}]} {
    %c0 = arith.constant 0 : index
    %0 = memref.load %arg1[%c0] : memref<1xf32, #tpu.memory_space<smem>>
    %c0_0 = arith.constant 0 : index
    %c0_1 = arith.constant 0 : index
    %1 = vector.load %arg2[%c0_0, %c0_1] : memref<384x384xf32, #tpu.memory_space<vmem>>, vector<384x384xf32>
    %c0_2 = arith.constant 0 : index
    %c0_3 = arith.constant 0 : index
    %2 = vector.load %arg3[%c0_2, %c0_3] : memref<384x128xf32, #tpu.memory_space<vmem>>, vector<384x128xf32>
    %cst = arith.constant dense<0.000000e+00> : vector<384x128xf32>
    %3 = tpu.matmul %1, %2, %cst {dimension_numbers = #tpu.dot_dimension_numbers<[1], [0], [0], [1], [0, 0, 1, 1], [], []>} : vector<384x384xf32>, vector<384x128xf32>, vector<384x128xf32> -> vector<384x128xf32>
    %c0_4 = arith.constant 0 : index
    %c0_5 = arith.constant 0 : index
    %4 = vector.load %arg4[%c0_4, %c0_5] : memref<384x128xf32, #tpu.memory_space<vmem>>, vector<384x128xf32>
    %5 = arith.subf %3, %4 : vector<384x128xf32>
    %6 = vector.broadcast %0 : f32 to vector<384x128xf32>
    %7 = arith.mulf %6, %5 : vector<384x128xf32>
    %8 = arith.addf %4, %7 : vector<384x128xf32>
    %c0_6 = arith.constant 0 : index
    %c0_7 = arith.constant 0 : index
    %9 = vector.load %arg5[%c0_6, %c0_7] : memref<384x128xf32, #tpu.memory_space<vmem>>, vector<384x128xf32>
    tpu.vector_store %arg5[%c0_6, %c0_7], %8 {strides = array<i32>} : memref<384x128xf32, #tpu.memory_space<vmem>>, vector<384x128xf32>,
    %10 = arith.truncf %8 : vector<384x128xf32> to vector<384x128xbf16>
    %c0_8 = arith.constant 0 : index
    %c0_9 = arith.constant 0 : index
    %11 = vector.load %arg6[%c0_8, %c0_9] : memref<384x128xbf16, #tpu.memory_space<vmem>>, vector<384x128xbf16>
    tpu.vector_store %arg6[%c0_8, %c0_9], %10 {strides = array<i32>} : memref<384x128xbf16, #tpu.memory_space<vmem>>, vector<384x128xbf16>,
    return
  }
  func.func @transform_0(%arg0: i32) -> i32 {
    %c0_i32 = arith.constant 0 : i32
    %c0_i32_0 = arith.constant 0 : i32
    return %c0_i32 : i32
  }
  func.func @transform_1(%arg0: i32) -> (i32, i32) {
    %c0_i32 = arith.constant 0 : i32
    %c0_i32_0 = arith.constant 0 : i32
    return %arg0, %c0_i32 : i32, i32
  }
  func.func @transform_2(%arg0: i32) -> (i32, i32) {
    %c0_i32 = arith.constant 0 : i32
    %c0_i32_0 = arith.constant 0 : i32
    %c0_i32_1 = arith.constant 0 : i32
    return %c0_i32, %c0_i32_0 : i32, i32
  }
  func.func @transform_3(%arg0: i32) -> (i32, i32) {
    %c0_i32 = arith.constant 0 : i32
    %c0_i32_0 = arith.constant 0 : i32
    return %arg0, %c0_i32 : i32, i32
  }
  func.func @transform_4(%arg0: i32) -> (i32, i32) {
    %c0_i32 = arith.constant 0 : i32
    %c0_i32_0 = arith.constant 0 : i32
    return %arg0, %c0_i32 : i32, i32
  }
  func.func @transform_5(%arg0: i32) -> (i32, i32) {
    %c0_i32 = arith.constant 0 : i32
    %c0_i32_0 = arith.constant 0 : i32
    return %arg0, %c0_i32 : i32, i32
  }
}

module attributes {stable_mosaic.version = 11 : i64} {
  func.func @_score_kernel(%arg0: i32, %arg1: memref<8x128xf32, #tpu.memory_space<vmem>>, %arg2: memref<8x128xf32, #tpu.memory_space<vmem>>, %arg3: memref<384x128xbf16, #tpu.memory_space<vmem>>, %arg4: memref<384x128xbf16, #tpu.memory_space<vmem>>, %arg5: memref<8x384xf32, #tpu.memory_space<vmem>>) attributes {dimension_semantics = [#tpu.dimension_semantics<parallel>], iteration_bounds = array<i64: 4>, scalar_prefetch = 0 : i64, scratch_operands = 0 : i64, tpu.core_type = #tpu.core_type<tc>, window_params = [{pipeline_mode = #tpu.pipeline_mode<synchronous>, transform_indices = @transform_0, window_bounds = array<i64: 8, 128>}, {pipeline_mode = #tpu.pipeline_mode<synchronous>, transform_indices = @transform_1, window_bounds = array<i64: 8, 128>}, {transform_indices = @transform_2, window_bounds = array<i64: 384, 128>}, {transform_indices = @transform_3, window_bounds = array<i64: 384, 128>}, {transform_indices = @transform_4, window_bounds = array<i64: 8, 384>}]} {
    %c0 = arith.constant 0 : index
    %c0_0 = arith.constant 0 : index
    %0 = vector.load %arg3[%c0, %c0_0] : memref<384x128xbf16, #tpu.memory_space<vmem>>, vector<384x128xbf16>
    %1 = arith.extf %0 : vector<384x128xbf16> to vector<384x128xf32>
    %c0_1 = arith.constant 0 : index
    %c0_2 = arith.constant 0 : index
    %2 = vector.load %arg4[%c0_1, %c0_2] : memref<384x128xbf16, #tpu.memory_space<vmem>>, vector<384x128xbf16>
    %3 = arith.extf %2 : vector<384x128xbf16> to vector<384x128xf32>
    %c0_3 = arith.constant 0 : index
    %c0_4 = arith.constant 0 : index
    %4 = vector.load %arg1[%c0_3, %c0_4] : memref<8x128xf32, #tpu.memory_space<vmem>>, vector<8x128xf32>
    %cst = arith.constant dense<0.000000e+00> : vector<8x384xf32>
    %5 = tpu.matmul %4, %1, %cst {dimension_numbers = #tpu.dot_dimension_numbers<[1], [1], [0], [0], [0, 0, 1, 0], [], []>} : vector<8x128xf32>, vector<384x128xf32>, vector<8x384xf32> -> vector<8x384xf32>
    %c0_5 = arith.constant 0 : index
    %c0_6 = arith.constant 0 : index
    %6 = vector.load %arg2[%c0_5, %c0_6] : memref<8x128xf32, #tpu.memory_space<vmem>>, vector<8x128xf32>
    %cst_7 = arith.constant dense<0.000000e+00> : vector<8x384xf32>
    %7 = tpu.matmul %6, %3, %cst_7 {dimension_numbers = #tpu.dot_dimension_numbers<[1], [1], [0], [0], [0, 0, 1, 0], [], []>} : vector<8x128xf32>, vector<384x128xf32>, vector<8x384xf32> -> vector<8x384xf32>
    %8 = arith.addf %5, %7 : vector<8x384xf32>
    %c0_8 = arith.constant 0 : index
    %c0_9 = arith.constant 0 : index
    %9 = vector.load %arg5[%c0_8, %c0_9] : memref<8x384xf32, #tpu.memory_space<vmem>>, vector<8x384xf32>
    tpu.vector_store %arg5[%c0_8, %c0_9], %8 {strides = array<i32>} : memref<8x384xf32, #tpu.memory_space<vmem>>, vector<8x384xf32>,
    return
  }
  func.func @transform_0(%arg0: i32) -> (i32, i32) {
    %c0_i32 = arith.constant 0 : i32
    %c0_i32_0 = arith.constant 0 : i32
    %c0_i32_1 = arith.constant 0 : i32
    return %c0_i32, %c0_i32_0 : i32, i32
  }
  func.func @transform_1(%arg0: i32) -> (i32, i32) {
    %c0_i32 = arith.constant 0 : i32
    %c0_i32_0 = arith.constant 0 : i32
    %c0_i32_1 = arith.constant 0 : i32
    return %c0_i32, %c0_i32_0 : i32, i32
  }
  func.func @transform_2(%arg0: i32) -> (i32, i32) {
    %c0_i32 = arith.constant 0 : i32
    %c0_i32_0 = arith.constant 0 : i32
    return %arg0, %c0_i32 : i32, i32
  }
  func.func @transform_3(%arg0: i32) -> (i32, i32) {
    %c0_i32 = arith.constant 0 : i32
    %c0_i32_0 = arith.constant 0 : i32
    return %arg0, %c0_i32 : i32, i32
  }
  func.func @transform_4(%arg0: i32) -> (i32, i32) {
    %c0_i32 = arith.constant 0 : i32
    %c0_i32_0 = arith.constant 0 : i32
    return %c0_i32, %arg0 : i32, i32
  }
}

</mosaic_0001>

<llo_original>
// kernel: analogy_forward.3
$region0: #{analogy_forward.3}
  #allocation0 [shape = 'u32[]', space=smem, size = 0x4, offset = 0x4, fixed_abs, tag = 'smem constant byte address 0x4 - core index']
  #allocation1 [shape = 'u32[144,128]{1,0:T(1,128)}', space=vmem, size = 0x12000, scoped, tag = 'internal scratch']
  %s0 = inlined_call_operand.vmem [shape: f32[8,128], index: 0, kind: input, shape index: {}]
  %s1 = inlined_call_operand.vmem [shape: f32[8,128], index: 1, kind: input, shape index: {}]
  %s2 = inlined_call_operand.vmem [shape: bf16[1500,128], index: 2, kind: input, shape index: {}]
  %s3 = inlined_call_operand.vmem [shape: bf16[1500,128], index: 3, kind: input, shape index: {}]
  %s4 = inlined_call_operand.hbm [shape: f32[8,1500], index: 4, kind: output, shape index: {}]
  %s5 = sld [smem:[#allocation0]]
  $region49: #{analogy_forward.3} parent=0
    _
  %s7 = ssub.s32 1, %s5
  %s8 = scalar_select 0, %s7, %s5
  $region1: #{analogy_forward.3} parent=0
    #allocation2 [shape = 'u8[24576]{0}', space=vmem, size = 0x6000, scoped, tag = 'output window, operand 0']
    #allocation3 [shape = 's32[2]{0}', space=sflag, size = 0x8, scoped, tag = 'scoped memory for analogy_forward.3']
    %9 = vsyncpa [#allocation3], 0
    %s10 = scalar_lea.sflag [#allocation3], 1
    %11 = vsyncpa %s10, 0
    loop: start=0, step=1, limit=6
    $region2: #{analogy_forward.3} parent=1 // loop_pre_header
      _
    $region3: #{analogy_forward.3} parent=1 // loop_header
      %s13 = sphi 0, %s17
      %p14 = scmp.ge.s32.totalorder %s13, 6
      %s21 = sphi 0, %s21
      %s23 = sphi 0, %s21
      %s24 = sphi 0, %s23
      %s38 = sphi 0, %s24
      %s42 = sphi 0, %s42
      %s44 = sphi 0, %s42
      %s45 = sphi 0, %s44
      %s59 = sphi 0, %s45
      %s65 = sphi 0, %s67
      %s68 = sphi 0, %s65
      %s69 = sphi 0, %s68
      %s85 = sphi 0, %s69
      %s91 = sphi 0, %s93
      %s94 = sphi 0, %s91
      %s95 = sphi 0, %s94
      %s111 = sphi 0, %s95
      %s117 = sphi 0, %s119
      %s120 = sphi 0, %s117
      %s121 = sphi 0, %s120
      %s137 = sphi 0, %s121
    $region4: #{analogy_forward.3} parent=1 // loop_header_branch
      %16 = sbr.rel (%p14) target = $region8
    $region5: #{analogy_forward.3} parent=1 // loop_body
      %s18 = ssub.s32 %s13, 1
      %s19 = ssub.s32 %s13, 2
      %s20 = sadd.s32 %s13, 1
      %s22 = sadd.s32 %s21, 1
      %p25 = scmp.eq.s32.totalorder %s13, 3
      %p26 = scmp.ne.s32.totalorder %s21, %s23
      %p27 = scmp.eq.s32.totalorder %s13, 0
      %p28 = por %p26, %p27
      %p29 = scmp.ne.s32.totalorder %s21, %s23
      %p30 = scmp.eq.s32.totalorder %s18, 3
      %p31 = por %p29, %p30
      %p32 = scmp.ne.s32.totalorder %s23, %s24
      %p33 = scmp.eq.s32.totalorder %s18, 0
      %p34 = por %p32, %p33
      %p35 = scmp.ne.s32.totalorder %s23, %s24
      %p36 = scmp.eq.s32.totalorder %s19, 3
      %p37 = por %p35, %p36
      %p39 = scmp.ne.s32.totalorder %s24, %s38
      %p40 = scmp.eq.s32.totalorder %s19, 0
      %p41 = por %p39, %p40
      %s43 = sadd.s32 %s42, 1
      %p46 = scmp.eq.s32.totalorder %s13, 3
      %p47 = scmp.ne.s32.totalorder %s42, %s44
      %p48 = scmp.eq.s32.totalorder %s13, 0
      %p49 = por %p47, %p48
      %p50 = scmp.ne.s32.totalorder %s42, %s44
      %p51 = scmp.eq.s32.totalorder %s18, 3
      %p52 = por %p50, %p51
      %p53 = scmp.ne.s32.totalorder %s44, %s45
      %p54 = scmp.eq.s32.totalorder %s18, 0
      %p55 = por %p53, %p54
      %p56 = scmp.ne.s32.totalorder %s44, %s45
      %p57 = scmp.eq.s32.totalorder %s19, 3
      %p58 = por %p56, %p57
      %p60 = scmp.ne.s32.totalorder %s45, %s59
      %p61 = scmp.eq.s32.totalorder %s19, 0
      %p62 = por %p60, %p61
      %s63 = ssub.s32 %s13, %s20
      %p64 = scmp.eq.s32.totalorder %s63, 0
      %s66 = sadd.s32 %s65, 1
      %s67 = scalar_select %p64, %s65, %s66
      %p70 = pneg %p64
      %p71 = scmp.eq.s32.totalorder %s13, 3
      %p72 = por %p70, %p71
      %p73 = scmp.ne.s32.totalorder %s65, %s68
      %p74 = scmp.eq.s32.totalorder %s13, 0
      %p75 = por %p73, %p74
      %p76 = scmp.ne.s32.totalorder %s65, %s68
      %p77 = scmp.eq.s32.totalorder %s18, 3
      %p78 = por %p76, %p77
      %p79 = scmp.ne.s32.totalorder %s68, %s69
      %p80 = scmp.eq.s32.totalorder %s18, 0
      %p81 = por %p79, %p80
      %p82 = scmp.ne.s32.totalorder %s68, %s69
      %p83 = scmp.eq.s32.totalorder %s19, 3
      %p84 = por %p82, %p83
      %p86 = scmp.ne.s32.totalorder %s69, %s85
      %p87 = scmp.eq.s32.totalorder %s19, 0
      %p88 = por %p86, %p87
      %s89 = ssub.s32 %s13, %s20
      %p90 = scmp.eq.s32.totalorder %s89, 0
      %s92 = sadd.s32 %s91, 1
      %s93 = scalar_select %p90, %s91, %s92
      %p96 = pneg %p90
      %p97 = scmp.eq.s32.totalorder %s13, 3
      %p98 = por %p96, %p97
      %p99 = scmp.ne.s32.totalorder %s91, %s94
      %p100 = scmp.eq.s32.totalorder %s13, 0
      %p101 = por %p99, %p100
      %p102 = scmp.ne.s32.totalorder %s91, %s94
      %p103 = scmp.eq.s32.totalorder %s18, 3
      %p104 = por %p102, %p103
      %p105 = scmp.ne.s32.totalorder %s94, %s95
      %p106 = scmp.eq.s32.totalorder %s18, 0
      %p107 = por %p105, %p106
      %p108 = scmp.ne.s32.totalorder %s94, %s95
      %p109 = scmp.eq.s32.totalorder %s19, 3
      %p110 = por %p108, %p109
      %p112 = scmp.ne.s32.totalorder %s95, %s111
      %p113 = scmp.eq.s32.totalorder %s19, 0
      %p114 = por %p112, %p113
      %s115 = ssub.s32 %s13, %s20
      %p116 = scmp.eq.s32.totalorder %s115, 0
      %s118 = sadd.s32 %s117, 1
      %s119 = scalar_select %p116, %s117, %s118
      %p122 = pneg %p116
      %p123 = scmp.eq.s32.totalorder %s13, 3
      %p124 = por %p122, %p123
      %p125 = scmp.ne.s32.totalorder %s117, %s120
      %p126 = scmp.eq.s32.totalorder %s13, 0
      %p127 = por %p125, %p126
      %p128 = scmp.ne.s32.totalorder %s117, %s120
      %p129 = scmp.eq.s32.totalorder %s18, 3
      %p130 = por %p128, %p129
      %p131 = scmp.ne.s32.totalorder %s120, %s121
      %p132 = scmp.eq.s32.totalorder %s18, 0
      %p133 = por %p131, %p132
      %p134 = scmp.ne.s32.totalorder %s120, %s121
      %p135 = scmp.eq.s32.totalorder %s19, 3
      %p136 = por %p134, %p135
      %p138 = scmp.ne.s32.totalorder %s121, %s137
      %p139 = scmp.eq.s32.totalorder %s19, 0
      %p140 = por %p138, %p139
      %p141 = scmp.le.s32.totalorder 1, %s13
      %p142 = scmp.lt.s32.totalorder %s13, 5
      %p143 = pnand %p141, %p142
      %p144 = pneg %p143
      // Predicated region
      $region9: #{analogy_forward.3} parent=5 // pred_check
        _
      $region10: #{analogy_forward.3} parent=5 // pred_check_branch
        %146 = sbr.rel (%p143) target = $region12
      $region11: #{analogy_forward.3} parent=5 // pred_region
        %s147 = ssub.s32 %s13, 1
        // Predicated region
        $region13: #{analogy_forward.3} parent=11 // pred_check
          %p148 = pneg %p34
        $region14: #{analogy_forward.3} parent=11 // pred_check_branch
          %150 = sbr.rel (%p148) target = $region16
        $region15: #{analogy_forward.3} parent=11 // pred_region
          _
        $region16: #{analogy_forward.3} parent=11 // pred_fallthru
          _
        // Predicated region
        $region17: #{analogy_forward.3} parent=11 // pred_check
          %p151 = pneg %p55
        $region18: #{analogy_forward.3} parent=11 // pred_check_branch
          %153 = sbr.rel (%p151) target = $region20
        $region19: #{analogy_forward.3} parent=11 // pred_region
          _
        $region20: #{analogy_forward.3} parent=11 // pred_fallthru
          _
      $region12: #{analogy_forward.3} parent=5 // pred_fallthru
        _
      %p154 = scmp.lt.s32.totalorder %s13, 4
      // Predicated region
      $region21: #{analogy_forward.3} parent=5 // pred_check
        %p155 = pneg %p154
      $region22: #{analogy_forward.3} parent=5 // pred_check_branch
        %157 = sbr.rel (%p155) target = $region24
      $region23: #{analogy_forward.3} parent=5 // pred_region
        // Predicated region
        $region25: #{analogy_forward.3} parent=23 // pred_check
          %p158 = pneg %p75
        $region26: #{analogy_forward.3} parent=23 // pred_check_branch
          %160 = sbr.rel (%p158) target = $region28
        $region27: #{analogy_forward.3} parent=23 // pred_region
          %s161 = smul.u32 48, %s13
          %s162 = ssub.s32 188, %s161
          %p163 = scmp.lt.s32.totalorder %s162, 48
          %s164 = scalar_select %p163, %s162, 48
          %s165 = smul.u32 64, %s164
          %p166 = scmp.lt.s32.totalorder %s161, 187
          %s167 = scalar_select %p166, %s161, 187
          %s168 = smul.addr %s167, 4
          %s169 = scalar_lea.vmem %s2, %s168
          %s170 = smul.u32 48, %s13
          %s171 = ssub.s32 188, %s170
          %p172 = scmp.lt.s32.totalorder %s171, 48
          %s173 = scalar_select %p172, %s171, 48
          %s174 = smul.u32 64, %s173
        $region28: #{analogy_forward.3} parent=23 // pred_fallthru
          _
        // Predicated region
        $region29: #{analogy_forward.3} parent=23 // pred_check
          %p175 = pneg %p101
        $region30: #{analogy_forward.3} parent=23 // pred_check_branch
          %177 = sbr.rel (%p175) target = $region32
        $region31: #{analogy_forward.3} parent=23 // pred_region
          %s178 = smul.u32 48, %s13
          %s179 = ssub.s32 188, %s178
          %p180 = scmp.lt.s32.totalorder %s179, 48
          %s181 = scalar_select %p180, %s179, 48
          %s182 = smul.u32 64, %s181
          %p183 = scmp.lt.s32.totalorder %s178, 187
          %s184 = scalar_select %p183, %s178, 187
          %s185 = smul.addr %s184, 4
          %s186 = scalar_lea.vmem %s3, %s185
          %s187 = smul.u32 48, %s13
          %s188 = ssub.s32 188, %s187
          %p189 = scmp.lt.s32.totalorder %s188, 48
          %s190 = scalar_select %p189, %s188, 48
          %s191 = smul.u32 64, %s190
        $region32: #{analogy_forward.3} parent=23 // pred_fallthru
          _
      $region24: #{analogy_forward.3} parent=5 // pred_fallthru
        _
      %p192 = scmp.le.s32.totalorder 1, %s13
      %p193 = scmp.lt.s32.totalorder %s13, 5
      %p194 = pnand %p192, %p193
      %p195 = pneg %p194
      // Predicated region
      $region33: #{analogy_forward.3} parent=5 // pred_check
        _
      $region34: #{analogy_forward.3} parent=5 // pred_check_branch
        %197 = sbr.rel (%p194) target = $region36
      $region35: #{analogy_forward.3} parent=5 // pred_region
        %s198 = ssub.s32 %s13, 1
        %p199 = pneg %p34
        %p200 = pneg %p31
        %p201 = pneg %p55
        %p202 = pneg %p52
        %s203 = smul.u32 48, %s18
        %s204 = ssub.s32 188, %s203
        %p205 = scmp.lt.s32.totalorder %s204, 48
        %s206 = scalar_select %p205, %s204, 48
        %s207 = smul.u32 64, %s206
        %p208 = scmp.lt.s32.totalorder %s203, 187
        %s209 = scalar_select %p208, %s203, 187
        %s210 = smul.addr %s209, 4
        %s211 = scalar_lea.vmem %s2, %s210
        %p212 = pneg %p81
        %p213 = pneg %p78
        %s214 = smul.u32 48, %s18
        %s215 = ssub.s32 188, %s214
        %p216 = scmp.lt.s32.totalorder %s215, 48
        %s217 = scalar_select %p216, %s215, 48
        %s218 = smul.u32 64, %s217
        %p219 = scmp.lt.s32.totalorder %s214, 187
        %s220 = scalar_select %p219, %s214, 187
        %s221 = smul.addr %s220, 4
        %s222 = scalar_lea.vmem %s3, %s221
        %p223 = pneg %p107
        %p224 = pneg %p104
        %p225 = pneg %p133
        %p226 = pneg %p130
        %s227 = sand.u32 %s120, 1
        %s228 = scalar_lea.sflag [#allocation3], %s227
        %s229 = sand.u32 %s120, 1
        %s230 = smul.addr %s229, 24
        %s231 = scalar_lea.vmem [#allocation2], %s230
        %s232 = smul.u32 48, %s18
        %s233 = ssub.s32 188, %s232
        %p234 = scmp.lt.s32.totalorder %s233, 48
        %s235 = scalar_select %p234, %s233, 48
        %s236 = smul.u32 64, %s235
        %p237 = scmp.lt.s32.totalorder %s232, 187
        %s238 = scalar_select %p237, %s232, 187
        %s239 = smul.addr %s238, 4
        %s240 = scalar_lea.vmem %s2, %s239
        %s241 = smul.u32 48, %s18
        %s242 = ssub.s32 188, %s241
        %p243 = scmp.lt.s32.totalorder %s242, 48
        %s244 = scalar_select %p243, %s242, 48
        %s245 = smul.u32 64, %s244
        %s246 = smul.u32 48, %s18
        %s247 = ssub.s32 188, %s246
        %p248 = scmp.lt.s32.totalorder %s247, 48
        %s249 = scalar_select %p248, %s247, 48
        %s250 = smul.u32 64, %s249
        %p251 = scmp.lt.s32.totalorder %s246, 187
        %s252 = scalar_select %p251, %s246, 187
        %s253 = smul.addr %s252, 4
        %s254 = scalar_lea.vmem %s3, %s253
        %s255 = smul.u32 48, %s18
        %s256 = ssub.s32 188, %s255
        %p257 = scmp.lt.s32.totalorder %s256, 48
        %s258 = scalar_select %p257, %s256, 48
        %s259 = smul.u32 64, %s258
        %s260 = smul.u32 3, %s18
        %v261 = vld [vmem:[%s240] sm:$0xf]
        %v262 = vld [vmem:[%s240 + $0x4] sm:$0xf]
        %v263 = vld [vmem:[%s240 + $0x8] sm:$0xf]
        %v264 = vld [vmem:[%s240 + $0xc] sm:$0xf]
        %v265 = vld [vmem:[%s240 + $0x10] sm:$0xf]
        %v266 = vld [vmem:[%s240 + $0x14] sm:$0xf]
        %v267 = vld [vmem:[%s240 + $0x18] sm:$0xf]
        %v268 = vld [vmem:[%s240 + $0x1c] sm:$0xf]
        %v269 = vld [vmem:[%s240 + $0x20] sm:$0xf]
        %v270 = vld [vmem:[%s240 + $0x24] sm:$0xf]
        %v271 = vld [vmem:[%s240 + $0x28] sm:$0xf]
        %v272 = vld [vmem:[%s240 + $0x2c] sm:$0xf]
        %v273 = vld [vmem:[%s240 + $0x30] sm:$0xf]
        %v274 = vld [vmem:[%s240 + $0x34] sm:$0xf]
        %v275 = vld [vmem:[%s240 + $0x38] sm:$0xf]
        %v276 = vld [vmem:[%s240 + $0x3c] sm:$0xf]
        %v277 = vld [vmem:[%s240 + $0x40] sm:$0xf]
        %v278 = vld [vmem:[%s240 + $0x44] sm:$0xf]
        %v279 = vld [vmem:[%s240 + $0x48] sm:$0xf]
        %v280 = vld [vmem:[%s240 + $0x4c] sm:$0xf]
        %v281 = vld [vmem:[%s240 + $0x50] sm:$0xf]
        %v282 = vld [vmem:[%s240 + $0x54] sm:$0xf]
        %v283 = vld [vmem:[%s240 + $0x58] sm:$0xf]
        %v284 = vld [vmem:[%s240 + $0x5c] sm:$0xf]
        %v285 = vld [vmem:[%s240 + $0x60] sm:$0xf]
        %v286 = vld [vmem:[%s240 + $0x64] sm:$0xf]
        %v287 = vld [vmem:[%s240 + $0x68] sm:$0xf]
        %v288 = vld [vmem:[%s240 + $0x6c] sm:$0xf]
        %v289 = vld [vmem:[%s240 + $0x70] sm:$0xf]
        %v290 = vld [vmem:[%s240 + $0x74] sm:$0xf]
        %v291 = vld [vmem:[%s240 + $0x78] sm:$0xf]
        %v292 = vld [vmem:[%s240 + $0x7c] sm:$0xf]
        %v293 = vld [vmem:[%s240 + $0x80] sm:$0xf]
        %v294 = vld [vmem:[%s240 + $0x84] sm:$0xf]
        %v295 = vld [vmem:[%s240 + $0x88] sm:$0xf]
        %v296 = vld [vmem:[%s240 + $0x8c] sm:$0xf]
        %v297 = vld [vmem:[%s240 + $0x90] sm:$0xf]
        %v298 = vld [vmem:[%s240 + $0x94] sm:$0xf]
        %v299 = vld [vmem:[%s240 + $0x98] sm:$0xf]
        %v300 = vld [vmem:[%s240 + $0x9c] sm:$0xf]
        %v301 = vld [vmem:[%s240 + $0xa0] sm:$0xf]
        %v302 = vld [vmem:[%s240 + $0xa4] sm:$0xf]
        %v303 = vld [vmem:[%s240 + $0xa8] sm:$0xf]
        %v304 = vld [vmem:[%s240 + $0xac] sm:$0xf]
        %v305 = vld [vmem:[%s240 + $0xb0] sm:$0xf]
        %v306 = vld [vmem:[%s240 + $0xb4] sm:$0xf]
        %v307 = vld [vmem:[%s240 + $0xb8] sm:$0xf]
        %v308 = vld [vmem:[%s240 + $0xbc] sm:$0xf]
        %v309 = vunpack.c.l.bf16 %v261
        %v310 = vunpack.c.l.bf16 %v262
        %v311 = vunpack.c.l.bf16 %v263
        %v312 = vunpack.c.l.bf16 %v264
        %v313 = vunpack.c.l.bf16 %v265
        %v314 = vunpack.c.l.bf16 %v266
        %v315 = vunpack.c.l.bf16 %v267
        %v316 = vunpack.c.l.bf16 %v268
        %v317 = vunpack.c.l.bf16 %v269
        %v318 = vunpack.c.l.bf16 %v270
        %v319 = vunpack.c.l.bf16 %v271
        %v320 = vunpack.c.l.bf16 %v272
        %v321 = vunpack.c.l.bf16 %v273
        %v322 = vunpack.c.l.bf16 %v274
        %v323 = vunpack.c.l.bf16 %v275
        %v324 = vunpack.c.l.bf16 %v276
        %v325 = vunpack.c.l.bf16 %v277
        %v326 = vunpack.c.l.bf16 %v278
        %v327 = vunpack.c.l.bf16 %v279
        %v328 = vunpack.c.l.bf16 %v280
        %v329 = vunpack.c.l.bf16 %v281
        %v330 = vunpack.c.l.bf16 %v282
        %v331 = vunpack.c.l.bf16 %v283
        %v332 = vunpack.c.l.bf16 %v284
        %v333 = vunpack.c.l.bf16 %v285
        %v334 = vunpack.c.l.bf16 %v286
        %v335 = vunpack.c.l.bf16 %v287
        %v336 = vunpack.c.l.bf16 %v288
        %v337 = vunpack.c.l.bf16 %v289
        %v338 = vunpack.c.l.bf16 %v290
        %v339 = vunpack.c.l.bf16 %v291
        %v340 = vunpack.c.l.bf16 %v292
        %v341 = vunpack.c.l.bf16 %v293
        %v342 = vunpack.c.l.bf16 %v294
        %v343 = vunpack.c.l.bf16 %v295
        %v344 = vunpack.c.l.bf16 %v296
        %v345 = vunpack.c.l.bf16 %v297
        %v346 = vunpack.c.l.bf16 %v298
        %v347 = vunpack.c.l.bf16 %v299
        %v348 = vunpack.c.l.bf16 %v300
        %v349 = vunpack.c.l.bf16 %v301
        %v350 = vunpack.c.l.bf16 %v302
        %v351 = vunpack.c.l.bf16 %v303
        %v352 = vunpack.c.l.bf16 %v304
        %v353 = vunpack.c.l.bf16 %v305
        %v354 = vunpack.c.l.bf16 %v306
        %v355 = vunpack.c.l.bf16 %v307
        %v356 = vunpack.c.l.bf16 %v308
        %v357 = vld [vmem:[%s254] sm:$0xf]
        %v358 = vld [vmem:[%s254 + $0x4] sm:$0xf]
        %v359 = vld [vmem:[%s254 + $0x8] sm:$0xf]
        %v360 = vld [vmem:[%s254 + $0xc] sm:$0xf]
        %v361 = vld [vmem:[%s254 + $0x10] sm:$0xf]
        %v362 = vld [vmem:[%s254 + $0x14] sm:$0xf]
        %v363 = vld [vmem:[%s254 + $0x18] sm:$0xf]
        %v364 = vld [vmem:[%s254 + $0x1c] sm:$0xf]
        %v365 = vld [vmem:[%s254 + $0x20] sm:$0xf]
        %v366 = vld [vmem:[%s254 + $0x24] sm:$0xf]
        %v367 = vld [vmem:[%s254 + $0x28] sm:$0xf]
        %v368 = vld [vmem:[%s254 + $0x2c] sm:$0xf]
        %v369 = vld [vmem:[%s254 + $0x30] sm:$0xf]
        %v370 = vld [vmem:[%s254 + $0x34] sm:$0xf]
        %v371 = vld [vmem:[%s254 + $0x38] sm:$0xf]
        %v372 = vld [vmem:[%s254 + $0x3c] sm:$0xf]
        %v373 = vld [vmem:[%s254 + $0x40] sm:$0xf]
        %v374 = vld [vmem:[%s254 + $0x44] sm:$0xf]
        %v375 = vld [vmem:[%s254 + $0x48] sm:$0xf]
        %v376 = vld [vmem:[%s254 + $0x4c] sm:$0xf]
        %v377 = vld [vmem:[%s254 + $0x50] sm:$0xf]
        %v378 = vld [vmem:[%s254 + $0x54] sm:$0xf]
        %v379 = vld [vmem:[%s254 + $0x58] sm:$0xf]
        %v380 = vld [vmem:[%s254 + $0x5c] sm:$0xf]
        %v381 = vld [vmem:[%s254 + $0x60] sm:$0xf]
        %v382 = vld [vmem:[%s254 + $0x64] sm:$0xf]
        %v383 = vld [vmem:[%s254 + $0x68] sm:$0xf]
        %v384 = vld [vmem:[%s254 + $0x6c] sm:$0xf]
        %v385 = vld [vmem:[%s254 + $0x70] sm:$0xf]
        %v386 = vld [vmem:[%s254 + $0x74] sm:$0xf]
        %v387 = vld [vmem:[%s254 + $0x78] sm:$0xf]
        %v388 = vld [vmem:[%s254 + $0x7c] sm:$0xf]
        %v389 = vld [vmem:[%s254 + $0x80] sm:$0xf]
        %v390 = vld [vmem:[%s254 + $0x84] sm:$0xf]
        %v391 = vld [vmem:[%s254 + $0x88] sm:$0xf]
        %v392 = vld [vmem:[%s254 + $0x8c] sm:$0xf]
        %v393 = vld [vmem:[%s254 + $0x90] sm:$0xf]
        %v394 = vld [vmem:[%s254 + $0x94] sm:$0xf]
        %v395 = vld [vmem:[%s254 + $0x98] sm:$0xf]
        %v396 = vld [vmem:[%s254 + $0x9c] sm:$0xf]
        %v397 = vld [vmem:[%s254 + $0xa0] sm:$0xf]
        %v398 = vld [vmem:[%s254 + $0xa4] sm:$0xf]
        %v399 = vld [vmem:[%s254 + $0xa8] sm:$0xf]
        %v400 = vld [vmem:[%s254 + $0xac] sm:$0xf]
        %v401 = vld [vmem:[%s254 + $0xb0] sm:$0xf]
        %v402 = vld [vmem:[%s254 + $0xb4] sm:$0xf]
        %v403 = vld [vmem:[%s254 + $0xb8] sm:$0xf]
        %v404 = vld [vmem:[%s254 + $0xbc] sm:$0xf]
        %v405 = vunpack.c.l.bf16 %v357
        %v406 = vunpack.c.l.bf16 %v358
        %v407 = vunpack.c.l.bf16 %v359
        %v408 = vunpack.c.l.bf16 %v360
        %v409 = vunpack.c.l.bf16 %v361
        %v410 = vunpack.c.l.bf16 %v362
        %v411 = vunpack.c.l.bf16 %v363
        %v412 = vunpack.c.l.bf16 %v364
        %v413 = vunpack.c.l.bf16 %v365
        %v414 = vunpack.c.l.bf16 %v366
        %v415 = vunpack.c.l.bf16 %v367
        %v416 = vunpack.c.l.bf16 %v368
        %v417 = vunpack.c.l.bf16 %v369
        %v418 = vunpack.c.l.bf16 %v370
        %v419 = vunpack.c.l.bf16 %v371
        %v420 = vunpack.c.l.bf16 %v372
        %v421 = vunpack.c.l.bf16 %v373
        %v422 = vunpack.c.l.bf16 %v374
        %v423 = vunpack.c.l.bf16 %v375
        %v424 = vunpack.c.l.bf16 %v376
        %v425 = vunpack.c.l.bf16 %v377
        %v426 = vunpack.c.l.bf16 %v378
        %v427 = vunpack.c.l.bf16 %v379
        %v428 = vunpack.c.l.bf16 %v380
        %v429 = vunpack.c.l.bf16 %v381
        %v430 = vunpack.c.l.bf16 %v382
        %v431 = vunpack.c.l.bf16 %v383
        %v432 = vunpack.c.l.bf16 %v384
        %v433 = vunpack.c.l.bf16 %v385
        %v434 = vunpack.c.l.bf16 %v386
        %v435 = vunpack.c.l.bf16 %v387
        %v436 = vunpack.c.l.bf16 %v388
        %v437 = vunpack.c.l.bf16 %v389
        %v438 = vunpack.c.l.bf16 %v390
        %v439 = vunpack.c.l.bf16 %v391
        %v440 = vunpack.c.l.bf16 %v392
        %v441 = vunpack.c.l.bf16 %v393
        %v442 = vunpack.c.l.bf16 %v394
        %v443 = vunpack.c.l.bf16 %v395
        %v444 = vunpack.c.l.bf16 %v396
        %v445 = vunpack.c.l.bf16 %v397
        %v446 = vunpack.c.l.bf16 %v398
        %v447 = vunpack.c.l.bf16 %v399
        %v448 = vunpack.c.l.bf16 %v400
        %v449 = vunpack.c.l.bf16 %v401
        %v450 = vunpack.c.l.bf16 %v402
        %v451 = vunpack.c.l.bf16 %v403
        %v452 = vunpack.c.l.bf16 %v404
        %v453 = vld [vmem:[%s0] sm:$0xff]
        %v454 = vld [vmem:[%s1] sm:$0xff]
        %455 = vmatprep.subr.mxu0 0.0
        %456 = vmatpush1.xpose.msra.mxu0 %v420
        %457 = vmatprep.subr.mxu0 0.0
        %458 = vmatpush1.xpose.msra.mxu0 %v419
        %459 = vmatprep.subr.mxu0 0.0
        %460 = vmatpush1.xpose.msra.mxu0 %v418
        %461 = vmatprep.subr.mxu0 0.0
        %462 = vmatpush1.xpose.msra.mxu0 %v417
        %463 = vmatprep.subr.mxu0 0.0
        %464 = vmatpush1.xpose.msra.mxu0 %v416
        %465 = vmatprep.subr.mxu0 0.0
        %466 = vmatpush1.xpose.msra.mxu0 %v415
        %467 = vmatprep.subr.mxu0 0.0
        %468 = vmatpush1.xpose.msra.mxu0 %v414
        %469 = vmatprep.subr.mxu0 0.0
        %470 = vmatpush1.xpose.msra.mxu0 %v413
        %471 = vmatprep.subr.mxu0 0.0
        %472 = vmatpush1.xpose.msra.mxu0 %v412
        %473 = vmatprep.subr.mxu0 0.0
        %474 = vmatpush1.xpose.msra.mxu0 %v411
        %475 = vmatprep.subr.mxu0 0.0
        %476 = vmatpush1.xpose.msra.mxu0 %v410
        %477 = vmatprep.subr.mxu0 0.0
        %478 = vmatpush1.xpose.msra.mxu0 %v409
        %479 = vmatprep.subr.mxu0 0.0
        %480 = vmatpush1.xpose.msra.mxu0 %v408
        %481 = vmatprep.subr.mxu0 0.0
        %482 = vmatpush1.xpose.msra.mxu0 %v407
        %483 = vmatprep.subr.mxu0 0.0
        %484 = vmatpush1.xpose.msra.mxu0 %v406
        %485 = vmatprep.subr.mxu0 0.0
        %486 = vmatpush1.xpose.msra.mxu0 %v405
        %487 = vmatprep.subr.mxu0 0.0
        %488 = vmatpush2.xpose.msra.mxu0 %v436
        %489 = vmatprep.subr.mxu0 0.0
        %490 = vmatpush2.xpose.msra.mxu0 %v435
        %491 = vmatprep.subr.mxu0 0.0
        %492 = vmatpush2.xpose.msra.mxu0 %v434
        %493 = vmatprep.subr.mxu0 0.0
        %494 = vmatpush2.xpose.msra.mxu0 %v433
        %495 = vmatprep.subr.mxu0 0.0
        %496 = vmatpush2.xpose.msra.mxu0 %v432
        %497 = vmatprep.subr.mxu0 0.0
        %498 = vmatpush2.xpose.msra.mxu0 %v431
        %499 = vmatprep.subr.mxu0 0.0
        %500 = vmatpush2.xpose.msra.mxu0 %v430
        %501 = vmatprep.subr.mxu0 0.0
        %502 = vmatpush2.xpose.msra.mxu0 %v429
        %503 = vmatprep.subr.mxu0 0.0
        %504 = vmatpush2.xpose.msra.mxu0 %v428
        %505 = vmatprep.subr.mxu0 0.0
        %506 = vmatpush2.xpose.msra.mxu0 %v427
        %507 = vmatprep.subr.mxu0 0.0
        %508 = vmatpush2.xpose.msra.mxu0 %v426
        %509 = vmatprep.subr.mxu0 0.0
        %510 = vmatpush2.xpose.msra.mxu0 %v425
        %511 = vmatprep.subr.mxu0 0.0
        %512 = vmatpush2.xpose.msra.mxu0 %v424
        %513 = vmatprep.subr.mxu0 0.0
        %514 = vmatpush2.xpose.msra.mxu0 %v423
        %515 = vmatprep.subr.mxu0 0.0
        %516 = vmatpush2.xpose.msra.mxu0 %v422
        %517 = vmatprep.subr.mxu0 0.0
        %518 = vmatpush2.xpose.msra.mxu0 %v421
        %519 = vmatprep.mubr.f32.mxu0 0.0
        %520 = vmatmul.mubr.f32.gmra.mxu0 %v454
        %v521 = vpop.f32.mrf.mxu0
        %v522 = vadd.f32 0.0, %v521
        %v523 = vpop.f32.mrf.mxu0
        %v524 = vadd.f32 0.0, %v523
        %525 = vdwg.mxu0
        %526 = vmatprep.subr.mxu0 0.0
        %527 = vmatpush1.xpose.msra.mxu0 %v452
        %528 = vmatprep.subr.mxu0 0.0
        %529 = vmatpush1.xpose.msra.mxu0 %v451
        %530 = vmatprep.subr.mxu0 0.0
        %531 = vmatpush1.xpose.msra.mxu0 %v450
        %532 = vmatprep.subr.mxu0 0.0
        %533 = vmatpush1.xpose.msra.mxu0 %v449
        %534 = vmatprep.subr.mxu0 0.0
        %535 = vmatpush1.xpose.msra.mxu0 %v448
        %536 = vmatprep.subr.mxu0 0.0
        %537 = vmatpush1.xpose.msra.mxu0 %v447
        %538 = vmatprep.subr.mxu0 0.0
        %539 = vmatpush1.xpose.msra.mxu0 %v446
        %540 = vmatprep.subr.mxu0 0.0
        %541 = vmatpush1.xpose.msra.mxu0 %v445
        %542 = vmatprep.subr.mxu0 0.0
        %543 = vmatpush1.xpose.msra.mxu0 %v444
        %544 = vmatprep.subr.mxu0 0.0
        %545 = vmatpush1.xpose.msra.mxu0 %v443
        %546 = vmatprep.subr.mxu0 0.0
        %547 = vmatpush1.xpose.msra.mxu0 %v442
        %548 = vmatprep.subr.mxu0 0.0
        %549 = vmatpush1.xpose.msra.mxu0 %v441
        %550 = vmatprep.subr.mxu0 0.0
        %551 = vmatpush1.xpose.msra.mxu0 %v440
        %552 = vmatprep.subr.mxu0 0.0
        %553 = vmatpush1.xpose.msra.mxu0 %v439
        %554 = vmatprep.subr.mxu0 0.0
        %555 = vmatpush1.xpose.msra.mxu0 %v438
        %556 = vmatprep.subr.mxu0 0.0
        %557 = vmatpush1.xpose.msra.mxu0 %v437
        %558 = vmatprep.subr.mxu0 0.0
        %559 = vmatpush2.xpose.msra.mxu0 0.0
        %560 = vmatprep.subr.mxu0 0.0
        %561 = vmatpush2.xpose.msra.mxu0 0.0
        %562 = vmatprep.subr.mxu0 0.0
        %563 = vmatpush2.xpose.msra.mxu0 0.0
        %564 = vmatprep.subr.mxu0 0.0
        %565 = vmatpush2.xpose.msra.mxu0 0.0
        %566 = vmatprep.subr.mxu0 0.0
        %567 = vmatpush2.xpose.msra.mxu0 0.0
        %568 = vmatprep.subr.mxu0 0.0
        %569 = vmatpush2.xpose.msra.mxu0 0.0
        %570 = vmatprep.subr.mxu0 0.0
        %571 = vmatpush2.xpose.msra.mxu0 0.0
        %572 = vmatprep.subr.mxu0 0.0
        %573 = vmatpush2.xpose.msra.mxu0 0.0
        %574 = vmatprep.subr.mxu0 0.0
        %575 = vmatpush2.xpose.msra.mxu0 0.0
        %576 = vmatprep.subr.mxu0 0.0
        %577 = vmatpush2.xpose.msra.mxu0 0.0
        %578 = vmatprep.subr.mxu0 0.0
        %579 = vmatpush2.xpose.msra.mxu0 0.0
        %580 = vmatprep.subr.mxu0 0.0
        %581 = vmatpush2.xpose.msra.mxu0 0.0
        %582 = vmatprep.subr.mxu0 0.0
        %583 = vmatpush2.xpose.msra.mxu0 0.0
        %584 = vmatprep.subr.mxu0 0.0
        %585 = vmatpush2.xpose.msra.mxu0 0.0
        %586 = vmatprep.subr.mxu0 0.0
        %587 = vmatpush2.xpose.msra.mxu0 0.0
        %588 = vmatprep.subr.mxu0 0.0
        %589 = vmatpush2.xpose.msra.mxu0 0.0
        %590 = vmatprep.mubr.f32.mxu0 0.0
        %591 = vmatmul.mubr.f32.gmra.mxu0 %v454
        %v592 = vpop.f32.mrf.mxu0
        %v593 = vadd.f32 0.0, %v592
        %v594 = vpop.f32.mrf.mxu0
        %595 = vdwg.mxu0
        %596 = vmatprep.subr.mxu0 0.0
        %597 = vmatpush1.xpose.msra.mxu0 %v324
        %598 = vmatprep.subr.mxu0 0.0
        %599 = vmatpush1.xpose.msra.mxu0 %v323
        %600 = vmatprep.subr.mxu0 0.0
        %601 = vmatpush1.xpose.msra.mxu0 %v322
        %602 = vmatprep.subr.mxu0 0.0
        %603 = vmatpush1.xpose.msra.mxu0 %v321
        %604 = vmatprep.subr.mxu0 0.0
        %605 = vmatpush1.xpose.msra.mxu0 %v320
        %606 = vmatprep.subr.mxu0 0.0
        %607 = vmatpush1.xpose.msra.mxu0 %v319
        %608 = vmatprep.subr.mxu0 0.0
        %609 = vmatpush1.xpose.msra.mxu0 %v318
        %610 = vmatprep.subr.mxu0 0.0
        %611 = vmatpush1.xpose.msra.mxu0 %v317
        %612 = vmatprep.subr.mxu0 0.0
        %613 = vmatpush1.xpose.msra.mxu0 %v316
        %614 = vmatprep.subr.mxu0 0.0
        %615 = vmatpush1.xpose.msra.mxu0 %v315
        %616 = vmatprep.subr.mxu0 0.0
        %617 = vmatpush1.xpose.msra.mxu0 %v314
        %618 = vmatprep.subr.mxu0 0.0
        %619 = vmatpush1.xpose.msra.mxu0 %v313
        %620 = vmatprep.subr.mxu0 0.0
        %621 = vmatpush1.xpose.msra.mxu0 %v312
        %622 = vmatprep.subr.mxu0 0.0
        %623 = vmatpush1.xpose.msra.mxu0 %v311
        %624 = vmatprep.subr.mxu0 0.0
        %625 = vmatpush1.xpose.msra.mxu0 %v310
        %626 = vmatprep.subr.mxu0 0.0
        %627 = vmatpush1.xpose.msra.mxu0 %v309
        %628 = vmatprep.subr.mxu0 0.0
        %629 = vmatpush2.xpose.msra.mxu0 %v340
        %630 = vmatprep.subr.mxu0 0.0
        %631 = vmatpush2.xpose.msra.mxu0 %v339
        %632 = vmatprep.subr.mxu0 0.0
        %633 = vmatpush2.xpose.msra.mxu0 %v338
        %634 = vmatprep.subr.mxu0 0.0
        %635 = vmatpush2.xpose.msra.mxu0 %v337
        %636 = vmatprep.subr.mxu0 0.0
        %637 = vmatpush2.xpose.msra.mxu0 %v336
        %638 = vmatprep.subr.mxu0 0.0
        %639 = vmatpush2.xpose.msra.mxu0 %v335
        %640 = vmatprep.subr.mxu0 0.0
        %641 = vmatpush2.xpose.msra.mxu0 %v334
        %642 = vmatprep.subr.mxu0 0.0
        %643 = vmatpush2.xpose.msra.mxu0 %v333
        %644 = vmatprep.subr.mxu0 0.0
        %645 = vmatpush2.xpose.msra.mxu0 %v332
        %646 = vmatprep.subr.mxu0 0.0
        %647 = vmatpush2.xpose.msra.mxu0 %v331
        %648 = vmatprep.subr.mxu0 0.0
        %649 = vmatpush2.xpose.msra.mxu0 %v330
        %650 = vmatprep.subr.mxu0 0.0
        %651 = vmatpush2.xpose.msra.mxu0 %v329
        %652 = vmatprep.subr.mxu0 0.0
        %653 = vmatpush2.xpose.msra.mxu0 %v328
        %654 = vmatprep.subr.mxu0 0.0
        %655 = vmatpush2.xpose.msra.mxu0 %v327
        %656 = vmatprep.subr.mxu0 0.0
        %657 = vmatpush2.xpose.msra.mxu0 %v326
        %658 = vmatprep.subr.mxu0 0.0
        %659 = vmatpush2.xpose.msra.mxu0 %v325
        %660 = vmatprep.mubr.f32.mxu0 0.0
        %661 = vmatmul.mubr.f32.gmra.mxu0 %v453
        %v662 = vpop.f32.mrf.mxu0
        %v663 = vadd.f32 %v522, %v662
        %v664 = vpop.f32.mrf.mxu0
        %v665 = vadd.f32 %v524, %v664
        %666 = vdwg.mxu0
        %667 = vmatprep.subr.mxu0 0.0
        %668 = vmatpush1.xpose.msra.mxu0 %v356
        %669 = vmatprep.subr.mxu0 0.0
        %670 = vmatpush1.xpose.msra.mxu0 %v355
        %671 = vmatprep.subr.mxu0 0.0
        %672 = vmatpush1.xpose.msra.mxu0 %v354
        %673 = vmatprep.subr.mxu0 0.0
        %674 = vmatpush1.xpose.msra.mxu0 %v353
        %675 = vmatprep.subr.mxu0 0.0
        %676 = vmatpush1.xpose.msra.mxu0 %v352
        %677 = vmatprep.subr.mxu0 0.0
        %678 = vmatpush1.xpose.msra.mxu0 %v351
        %679 = vmatprep.subr.mxu0 0.0
        %680 = vmatpush1.xpose.msra.mxu0 %v350
        %681 = vmatprep.subr.mxu0 0.0
        %682 = vmatpush1.xpose.msra.mxu0 %v349
        %683 = vmatprep.subr.mxu0 0.0
        %684 = vmatpush1.xpose.msra.mxu0 %v348
        %685 = vmatprep.subr.mxu0 0.0
        %686 = vmatpush1.xpose.msra.mxu0 %v347
        %687 = vmatprep.subr.mxu0 0.0
        %688 = vmatpush1.xpose.msra.mxu0 %v346
        %689 = vmatprep.subr.mxu0 0.0
        %690 = vmatpush1.xpose.msra.mxu0 %v345
        %691 = vmatprep.subr.mxu0 0.0
        %692 = vmatpush1.xpose.msra.mxu0 %v344
        %693 = vmatprep.subr.mxu0 0.0
        %694 = vmatpush1.xpose.msra.mxu0 %v343
        %695 = vmatprep.subr.mxu0 0.0
        %696 = vmatpush1.xpose.msra.mxu0 %v342
        %697 = vmatprep.subr.mxu0 0.0
        %698 = vmatpush1.xpose.msra.mxu0 %v341
        %699 = vmatprep.subr.mxu0 0.0
        %700 = vmatpush2.xpose.msra.mxu0 0.0
        %701 = vmatprep.subr.mxu0 0.0
        %702 = vmatpush2.xpose.msra.mxu0 0.0
        %703 = vmatprep.subr.mxu0 0.0
        %704 = vmatpush2.xpose.msra.mxu0 0.0
        %705 = vmatprep.subr.mxu0 0.0
        %706 = vmatpush2.xpose.msra.mxu0 0.0
        %707 = vmatprep.subr.mxu0 0.0
        %708 = vmatpush2.xpose.msra.mxu0 0.0
        %709 = vmatprep.subr.mxu0 0.0
        %710 = vmatpush2.xpose.msra.mxu0 0.0
        %711 = vmatprep.subr.mxu0 0.0
        %712 = vmatpush2.xpose.msra.mxu0 0.0
        %713 = vmatprep.subr.mxu0 0.0
        %714 = vmatpush2.xpose.msra.mxu0 0.0
        %715 = vmatprep.subr.mxu0 0.0
        %716 = vmatpush2.xpose.msra.mxu0 0.0
        %717 = vmatprep.subr.mxu0 0.0
        %718 = vmatpush2.xpose.msra.mxu0 0.0
        %719 = vmatprep.subr.mxu0 0.0
        %720 = vmatpush2.xpose.msra.mxu0 0.0
        %721 = vmatprep.subr.mxu0 0.0
        %722 = vmatpush2.xpose.msra.mxu0 0.0
        %723 = vmatprep.subr.mxu0 0.0
        %724 = vmatpush2.xpose.msra.mxu0 0.0
        %725 = vmatprep.subr.mxu0 0.0
        %726 = vmatpush2.xpose.msra.mxu0 0.0
        %727 = vmatprep.subr.mxu0 0.0
        %728 = vmatpush2.xpose.msra.mxu0 0.0
        %729 = vmatprep.subr.mxu0 0.0
        %730 = vmatpush2.xpose.msra.mxu0 0.0
        %731 = vmatprep.mubr.f32.mxu0 0.0
        %732 = vmatmul.mubr.f32.gmra.mxu0 %v453
        %v733 = vpop.f32.mrf.mxu0
        %v734 = vadd.f32 %v593, %v733
        %v735 = vpop.f32.mrf.mxu0
        %736 = vdwg.mxu0
        %737 = vst [vmem:[%s231] sm:$0xff] %v663
        %738 = vst [vmem:[%s231 + $0x8] sm:$0xff] %v665
        %739 = vst [vmem:[%s231 + $0x10] sm:$0xff] %v734
        %s740 = sand.u32 %s120, 1
        %s741 = scalar_lea.sflag [#allocation3], %s740
        %s742 = sand.u32 %s120, 1
        %s743 = smul.addr %s742, 24
        %s744 = scalar_lea.vmem [#allocation2], %s743
        // Predicated region
        $region37: #{analogy_forward.3} parent=35 // pred_check
          %p745 = pneg %p130
        $region38: #{analogy_forward.3} parent=35 // pred_check_branch
          %747 = sbr.rel (%p745) target = $region40
        $region39: #{analogy_forward.3} parent=35 // pred_region
          %s748 = smul.u32 3, %s18
          %s750 = ssub.s32 384, 384
          %751 = vsyncadd %s741, %s750
          %s752 = smul.addr %s748, 128
          %s753 = scalar_lea.hbm %s4, %s752
          %s755 = sshll.u32 %s744, 4
          %s756 = int_to_ptr.vmem [resolvable:$true] %s755
          %758 = dma.vmem_to_hbm [thread:$0]  %s756, 384, %s753, %s741
        $region40: #{analogy_forward.3} parent=35 // pred_fallthru
          _
      $region36: #{analogy_forward.3} parent=5 // pred_fallthru
        _
      %p759 = scmp.le.s32.totalorder 2, %s13
      // Predicated region
      $region41: #{analogy_forward.3} parent=5 // pred_check
        %p760 = pneg %p759
      $region42: #{analogy_forward.3} parent=5 // pred_check_branch
        %762 = sbr.rel (%p760) target = $region44
      $region43: #{analogy_forward.3} parent=5 // pred_region
        %s763 = ssub.s32 %s13, 2
        // Predicated region
        $region45: #{analogy_forward.3} parent=43 // pred_check
          %p764 = pneg %p136
        $region46: #{analogy_forward.3} parent=43 // pred_check_branch
          %766 = sbr.rel (%p764) target = $region48
        $region47: #{analogy_forward.3} parent=43 // pred_region
          %s767 = sand.u32 %s121, 1
          %s768 = scalar_lea.sflag [#allocation3], %s767
          %s769 = sand.u32 %s121, 1
          %s770 = smul.addr %s769, 24
          %s771 = scalar_lea.vmem [#allocation2], %s770
          %772 = dma.done %s768, 384
        $region48: #{analogy_forward.3} parent=43 // pred_fallthru
          _
      $region44: #{analogy_forward.3} parent=5 // pred_fallthru
        _
    $region6: #{analogy_forward.3} parent=1 // loop_footer
      %s17 = sadd.s32 1, %s13
    $region7: #{analogy_forward.3} parent=1 // loop_footer_branch
      %12 = sbr.rel target = $region3
    $region8: #{analogy_forward.3} parent=1 // loop_exit
      _
    %773 = vsyncpa [#allocation3], 1
    %s774 = scalar_lea.sflag [#allocation3], 1
    %775 = vsyncpa %s774, 1

// kernel: analogy_forward.2
$region0: #{analogy_forward.2}
  #allocation0 [shape = 'u32[]', space=smem, size = 0x4, offset = 0x4, fixed_abs, tag = 'smem constant byte address 0x4 - core index']
  #allocation1 [shape = 'u32[144,128]{1,0:T(1,128)}', space=vmem, size = 0x12000, scoped, tag = 'internal scratch']
  #allocation2 [shape = 'f32[1]{0:T(128)S(6)}', space=smem, size = 0x200, scoped, tag = 'scoped memory for analogy_forward.2']
  %s0 = inlined_call_operand.<no memory space> [shape: f32[1], index: 0, kind: input, shape index: {}]
  %s1 = inlined_call_operand.hbm [shape: f32[1500,384], index: 1, kind: input, shape index: {}]
  %s2 = inlined_call_operand.hbm [shape: f32[384,128], index: 2, kind: input, shape index: {}]
  %s3 = inlined_call_operand.hbm [shape: f32[1500,128], index: 3, kind: input, shape index: {}]
  %s4 = inlined_call_operand.vmem [shape: f32[1500,128], index: 4, kind: output, shape index: {0}]
  %s5 = inlined_call_operand.vmem [shape: bf16[1500,128], index: 5, kind: output, shape index: {1}]
  %6 = xla_tuple %s4, %s5
  %s7 = sld [smem:[#allocation0]]
  $region161: #{analogy_forward.2} parent=0
    _
  %s9 = ssub.s32 1, %s7
  %s10 = scalar_select 0, %s9, %s7
  %11 = sst [smem:[#allocation2]] %s0
  $region1: #{analogy_forward.2} parent=0
    #allocation3 [shape = 'u8[1179648]{0}', space=vmem, size = 0x120000, scoped, tag = 'input window, operand 1']
    #allocation4 [shape = 's32[2]{0}', space=sflag, size = 0x8, scoped, tag = 'scoped memory for analogy_forward.2']
    #allocation5 [shape = 'u8[196608]{0}', space=vmem, size = 0x30000, scoped, tag = 'input window, operand 2, single buffered']
    #allocation6 [shape = 's32[1]{0}', space=sflag, size = 0x4, scoped, tag = 'scoped memory for analogy_forward.2']
    #allocation7 [shape = 'u8[393216]{0}', space=vmem, size = 0x60000, scoped, tag = 'input window, operand 3']
    #allocation8 [shape = 'u8[393216]{0}', space=vmem, size = 0x60000, scoped, tag = 'output window, operand 0']
    #allocation9 [shape = 'u8[196608]{0}', space=vmem, size = 0x30000, scoped, tag = 'output window, operand 1']
    %12 = vsyncpa [#allocation4], 0
    %s13 = scalar_lea.sflag [#allocation4], 1
    %14 = vsyncpa %s13, 0
    %15 = vsyncpa [#allocation6], 0
    loop: start=0, step=1, limit=6
    $region2: #{analogy_forward.2} parent=1 // loop_pre_header
      _
    $region3: #{analogy_forward.2} parent=1 // loop_header
      %s17 = sphi 0, %s21
      %p18 = scmp.ge.s32.totalorder %s17, 6
      %s25 = sphi 0, %s25
      %s27 = sphi 0, %s25
      %s28 = sphi 0, %s27
      %s42 = sphi 0, %s28
      %s48 = sphi 0, %s50
      %s51 = sphi 0, %s48
      %s52 = sphi 0, %s51
      %s68 = sphi 0, %s52
      %s72 = sphi 0, %s72
      %s74 = sphi 0, %s72
      %s75 = sphi 0, %s74
      %s89 = sphi 0, %s75
      %s95 = sphi 0, %s97
      %s98 = sphi 0, %s95
      %s99 = sphi 0, %s98
      %s115 = sphi 0, %s99
      %s121 = sphi 0, %s123
      %s124 = sphi 0, %s121
      %s125 = sphi 0, %s124
      %s141 = sphi 0, %s125
      %s147 = sphi 0, %s149
      %s150 = sphi 0, %s147
      %s151 = sphi 0, %s150
      %s167 = sphi 0, %s151
    $region4: #{analogy_forward.2} parent=1 // loop_header_branch
      %20 = sbr.rel (%p18) target = $region8
    $region5: #{analogy_forward.2} parent=1 // loop_body
      %s22 = ssub.s32 %s17, 1
      %s23 = ssub.s32 %s17, 2
      %s24 = sadd.s32 %s17, 1
      %s26 = sadd.s32 %s25, 1
      %p29 = scmp.eq.s32.totalorder %s17, 3
      %p30 = scmp.ne.s32.totalorder %s25, %s27
      %p31 = scmp.eq.s32.totalorder %s17, 0
      %p32 = por %p30, %p31
      %p33 = scmp.ne.s32.totalorder %s25, %s27
      %p34 = scmp.eq.s32.totalorder %s22, 3
      %p35 = por %p33, %p34
      %p36 = scmp.ne.s32.totalorder %s27, %s28
      %p37 = scmp.eq.s32.totalorder %s22, 0
      %p38 = por %p36, %p37
      %p39 = scmp.ne.s32.totalorder %s27, %s28
      %p40 = scmp.eq.s32.totalorder %s23, 3
      %p41 = por %p39, %p40
      %p43 = scmp.ne.s32.totalorder %s28, %s42
      %p44 = scmp.eq.s32.totalorder %s23, 0
      %p45 = por %p43, %p44
      %s46 = ssub.s32 %s17, %s24
      %p47 = scmp.eq.s32.totalorder %s46, 0
      %s49 = sadd.s32 %s48, 1
      %s50 = scalar_select %p47, %s48, %s49
      %p53 = pneg %p47
      %p54 = scmp.eq.s32.totalorder %s17, 3
      %p55 = por %p53, %p54
      %p56 = scmp.ne.s32.totalorder %s48, %s51
      %p57 = scmp.eq.s32.totalorder %s17, 0
      %p58 = por %p56, %p57
      %p59 = scmp.ne.s32.totalorder %s48, %s51
      %p60 = scmp.eq.s32.totalorder %s22, 3
      %p61 = por %p59, %p60
      %p62 = scmp.ne.s32.totalorder %s51, %s52
      %p63 = scmp.eq.s32.totalorder %s22, 0
      %p64 = por %p62, %p63
      %p65 = scmp.ne.s32.totalorder %s51, %s52
      %p66 = scmp.eq.s32.totalorder %s23, 3
      %p67 = por %p65, %p66
      %p69 = scmp.ne.s32.totalorder %s52, %s68
      %p70 = scmp.eq.s32.totalorder %s23, 0
      %p71 = por %p69, %p70
      %s73 = sadd.s32 %s72, 1
      %p76 = scmp.eq.s32.totalorder %s17, 3
      %p77 = scmp.ne.s32.totalorder %s72, %s74
      %p78 = scmp.eq.s32.totalorder %s17, 0
      %p79 = por %p77, %p78
      %p80 = scmp.ne.s32.totalorder %s72, %s74
      %p81 = scmp.eq.s32.totalorder %s22, 3
      %p82 = por %p80, %p81
      %p83 = scmp.ne.s32.totalorder %s74, %s75
      %p84 = scmp.eq.s32.totalorder %s22, 0
      %p85 = por %p83, %p84
      %p86 = scmp.ne.s32.totalorder %s74, %s75
      %p87 = scmp.eq.s32.totalorder %s23, 3
      %p88 = por %p86, %p87
      %p90 = scmp.ne.s32.totalorder %s75, %s89
      %p91 = scmp.eq.s32.totalorder %s23, 0
      %p92 = por %p90, %p91
      %s93 = ssub.s32 %s17, %s24
      %p94 = scmp.eq.s32.totalorder %s93, 0
      %s96 = sadd.s32 %s95, 1
      %s97 = scalar_select %p94, %s95, %s96
      %p100 = pneg %p94
      %p101 = scmp.eq.s32.totalorder %s17, 3
      %p102 = por %p100, %p101
      %p103 = scmp.ne.s32.totalorder %s95, %s98
      %p104 = scmp.eq.s32.totalorder %s17, 0
      %p105 = por %p103, %p104
      %p106 = scmp.ne.s32.totalorder %s95, %s98
      %p107 = scmp.eq.s32.totalorder %s22, 3
      %p108 = por %p106, %p107
      %p109 = scmp.ne.s32.totalorder %s98, %s99
      %p110 = scmp.eq.s32.totalorder %s22, 0
      %p111 = por %p109, %p110
      %p112 = scmp.ne.s32.totalorder %s98, %s99
      %p113 = scmp.eq.s32.totalorder %s23, 3
      %p114 = por %p112, %p113
      %p116 = scmp.ne.s32.totalorder %s99, %s115
      %p117 = scmp.eq.s32.totalorder %s23, 0
      %p118 = por %p116, %p117
      %s119 = ssub.s32 %s17, %s24
      %p120 = scmp.eq.s32.totalorder %s119, 0
      %s122 = sadd.s32 %s121, 1
      %s123 = scalar_select %p120, %s121, %s122
      %p126 = pneg %p120
      %p127 = scmp.eq.s32.totalorder %s17, 3
      %p128 = por %p126, %p127
      %p129 = scmp.ne.s32.totalorder %s121, %s124
      %p130 = scmp.eq.s32.totalorder %s17, 0
      %p131 = por %p129, %p130
      %p132 = scmp.ne.s32.totalorder %s121, %s124
      %p133 = scmp.eq.s32.totalorder %s22, 3
      %p134 = por %p132, %p133
      %p135 = scmp.ne.s32.totalorder %s124, %s125
      %p136 = scmp.eq.s32.totalorder %s22, 0
      %p137 = por %p135, %p136
      %p138 = scmp.ne.s32.totalorder %s124, %s125
      %p139 = scmp.eq.s32.totalorder %s23, 3
      %p140 = por %p138, %p139
      %p142 = scmp.ne.s32.totalorder %s125, %s141
      %p143 = scmp.eq.s32.totalorder %s23, 0
      %p144 = por %p142, %p143
      %s145 = ssub.s32 %s17, %s24
      %p146 = scmp.eq.s32.totalorder %s145, 0
      %s148 = sadd.s32 %s147, 1
      %s149 = scalar_select %p146, %s147, %s148
      %p152 = pneg %p146
      %p153 = scmp.eq.s32.totalorder %s17, 3
      %p154 = por %p152, %p153
      %p155 = scmp.ne.s32.totalorder %s147, %s150
      %p156 = scmp.eq.s32.totalorder %s17, 0
      %p157 = por %p155, %p156
      %p158 = scmp.ne.s32.totalorder %s147, %s150
      %p159 = scmp.eq.s32.totalorder %s22, 3
      %p160 = por %p158, %p159
      %p161 = scmp.ne.s32.totalorder %s150, %s151
      %p162 = scmp.eq.s32.totalorder %s22, 0
      %p163 = por %p161, %p162
      %p164 = scmp.ne.s32.totalorder %s150, %s151
      %p165 = scmp.eq.s32.totalorder %s23, 3
      %p166 = por %p164, %p165
      %p168 = scmp.ne.s32.totalorder %s151, %s167
      %p169 = scmp.eq.s32.totalorder %s23, 0
      %p170 = por %p168, %p169
      %p171 = scmp.le.s32.totalorder 1, %s17
      %p172 = scmp.lt.s32.totalorder %s17, 5
      %p173 = pnand %p171, %p172
      %p174 = pneg %p173
      // Predicated region
      $region9: #{analogy_forward.2} parent=5 // pred_check
        _
      $region10: #{analogy_forward.2} parent=5 // pred_check_branch
        %176 = sbr.rel (%p173) target = $region12
      $region11: #{analogy_forward.2} parent=5 // pred_region
        %s177 = ssub.s32 %s17, 1
        // Predicated region
        $region13: #{analogy_forward.2} parent=11 // pred_check
          %p178 = pneg %p38
        $region14: #{analogy_forward.2} parent=11 // pred_check_branch
          %180 = sbr.rel (%p178) target = $region16
        $region15: #{analogy_forward.2} parent=11 // pred_region
          _
        $region16: #{analogy_forward.2} parent=11 // pred_fallthru
          _
        // Predicated region
        $region17: #{analogy_forward.2} parent=11 // pred_check
          %p181 = pneg %p85
        $region18: #{analogy_forward.2} parent=11 // pred_check_branch
          %183 = sbr.rel (%p181) target = $region20
        $region19: #{analogy_forward.2} parent=11 // pred_region
          %s185 = ssub.s32 6144, 6144
          %186 = vsyncadd [#allocation6], %s185
          %s187 = sshll.u32 [#allocation5], 4
          %s188 = int_to_ptr.vmem [resolvable:$true] %s187
          %193 = dma.hbm_to_vmem [thread:$0]  %s2, 6144, %s188, [#allocation6], 128, 128, 8
        $region20: #{analogy_forward.2} parent=11 // pred_fallthru
          _
      $region12: #{analogy_forward.2} parent=5 // pred_fallthru
        _
      %p194 = scmp.lt.s32.totalorder %s17, 4
      // Predicated region
      $region21: #{analogy_forward.2} parent=5 // pred_check
        %p195 = pneg %p194
      $region22: #{analogy_forward.2} parent=5 // pred_check_branch
        %197 = sbr.rel (%p195) target = $region24
      $region23: #{analogy_forward.2} parent=5 // pred_region
        // Predicated region
        $region25: #{analogy_forward.2} parent=23 // pred_check
          %p198 = pneg %p58
        $region26: #{analogy_forward.2} parent=23 // pred_check_branch
          %200 = sbr.rel (%p198) target = $region28
        $region27: #{analogy_forward.2} parent=23 // pred_region
          %s201 = sand.u32 %s17, 1
          %s202 = scalar_lea.sflag [#allocation4], %s201
          %s203 = sand.u32 %s48, 1
          %s204 = smul.addr %s203, 1152
          %s205 = scalar_lea.vmem [#allocation3], %s204
          %s206 = smul.u32 48, %s17
          %s207 = ssub.s32 188, %s206
          %p208 = scmp.lt.s32.totalorder %s207, 48
          %s209 = scalar_select %p208, %s207, 48
          %s210 = smul.u32 128, %s209
          %s211 = smul.u32 %s210, 3
          %s213 = ssub.s32 18432, %s211
          %214 = vsyncadd %s202, %s213
          %p215 = scmp.ne.s32.totalorder 0, %s211
          %s216 = smul.addr %s206, 3
          %s217 = smul.addr %s216, 128
          %s218 = scalar_lea.hbm %s1, %s217
          %s219 = smul.u32 24, %s209
          %s220 = sshll.u32 %s205, 4
          %s221 = int_to_ptr.vmem [resolvable:$true] %s220
          %s222 = sshll.u32 %s219, 4
          %226 = dma.hbm_to_vmem [thread:$0]  (%p215), %s218, %s222, %s221, %s202, 384, 384, 24
        $region28: #{analogy_forward.2} parent=23 // pred_fallthru
          _
        // Predicated region
        $region29: #{analogy_forward.2} parent=23 // pred_check
          %p227 = pneg %p105
        $region30: #{analogy_forward.2} parent=23 // pred_check_branch
          %229 = sbr.rel (%p227) target = $region32
        $region31: #{analogy_forward.2} parent=23 // pred_region
          %s230 = sand.u32 %s17, 1
          %s231 = scalar_lea.sflag [#allocation4], %s230
          %s232 = sand.u32 %s95, 1
          %s233 = smul.addr %s232, 384
          %s234 = scalar_lea.vmem [#allocation7], %s233
          %s235 = smul.u32 48, %s17
          %s236 = ssub.s32 188, %s235
          %p237 = scmp.lt.s32.totalorder %s236, 48
          %s238 = scalar_select %p237, %s236, 48
          %s239 = smul.u32 128, %s238
          %s241 = ssub.s32 6144, %s239
          %242 = vsyncadd %s231, %s241
          %p243 = scmp.ne.s32.totalorder 0, %s239
          %s244 = smul.addr %s235, 128
          %s245 = scalar_lea.hbm %s3, %s244
          %s246 = smul.u32 8, %s238
          %s247 = sshll.u32 %s234, 4
          %s248 = int_to_ptr.vmem [resolvable:$true] %s247
          %s249 = sshll.u32 %s246, 4
          %253 = dma.hbm_to_vmem [thread:$0]  (%p243), %s245, %s249, %s248, %s231, 128, 128, 8
        $region32: #{analogy_forward.2} parent=23 // pred_fallthru
          _
      $region24: #{analogy_forward.2} parent=5 // pred_fallthru
        _
      %p254 = scmp.le.s32.totalorder 1, %s17
      %p255 = scmp.lt.s32.totalorder %s17, 5
      %p256 = pnand %p254, %p255
      %p257 = pneg %p256
      // Predicated region
      $region33: #{analogy_forward.2} parent=5 // pred_check
        _
      $region34: #{analogy_forward.2} parent=5 // pred_check_branch
        %259 = sbr.rel (%p256) target = $region36
      $region35: #{analogy_forward.2} parent=5 // pred_region
        %s260 = ssub.s32 %s17, 1
        %s261 = sand.u32 %s22, 1
        %s262 = scalar_lea.sflag [#allocation4], %s261
        %s263 = sand.u32 %s51, 1
        %s264 = smul.addr %s263, 1152
        %s265 = scalar_lea.vmem [#allocation3], %s264
        // Predicated region
        $region37: #{analogy_forward.2} parent=35 // pred_check
          %p266 = pneg %p64
        $region38: #{analogy_forward.2} parent=35 // pred_check_branch
          %268 = sbr.rel (%p266) target = $region40
        $region39: #{analogy_forward.2} parent=35 // pred_region
          %269 = dma.done %s262, 18432
        $region40: #{analogy_forward.2} parent=35 // pred_fallthru
          _
        // Predicated region
        $region41: #{analogy_forward.2} parent=35 // pred_check
          %p270 = pneg %p85
        $region42: #{analogy_forward.2} parent=35 // pred_check_branch
          %272 = sbr.rel (%p270) target = $region44
        $region43: #{analogy_forward.2} parent=35 // pred_region
          %273 = dma.done [#allocation6], 6144
        $region44: #{analogy_forward.2} parent=35 // pred_fallthru
          _
        %s274 = sand.u32 %s22, 1
        %s275 = scalar_lea.sflag [#allocation4], %s274
        %s276 = sand.u32 %s98, 1
        %s277 = smul.addr %s276, 384
        %s278 = scalar_lea.vmem [#allocation7], %s277
        // Predicated region
        $region45: #{analogy_forward.2} parent=35 // pred_check
          %p279 = pneg %p111
        $region46: #{analogy_forward.2} parent=35 // pred_check_branch
          %281 = sbr.rel (%p279) target = $region48
        $region47: #{analogy_forward.2} parent=35 // pred_region
          %282 = dma.done %s275, 6144
        $region48: #{analogy_forward.2} parent=35 // pred_fallthru
          _
        %p283 = pneg %p38
        %p284 = pneg %p35
        %s285 = sand.u32 %s22, 1
        %s286 = scalar_lea.sflag [#allocation4], %s285
        %s287 = sand.u32 %s51, 1
        %s288 = smul.addr %s287, 1152
        %s289 = scalar_lea.vmem [#allocation3], %s288
        %p290 = pneg %p64
        %p291 = pneg %p61
        %p292 = pneg %p85
        %p293 = pneg %p82
        %s294 = sand.u32 %s22, 1
        %s295 = scalar_lea.sflag [#allocation4], %s294
        %s296 = sand.u32 %s98, 1
        %s297 = smul.addr %s296, 384
        %s298 = scalar_lea.vmem [#allocation7], %s297
        %p299 = pneg %p111
        %p300 = pneg %p108
        %p301 = pneg %p137
        %p302 = pneg %p134
        %s303 = sand.u32 %s124, 1
        %s304 = sand.u32 %s124, 1
        %s305 = smul.addr %s304, 384
        %s306 = scalar_lea.vmem [#allocation8], %s305
        %p307 = pneg %p163
        %p308 = pneg %p160
        %s309 = sand.u32 %s150, 1
        %s310 = sand.u32 %s150, 1
        %s311 = smul.addr %s310, 192
        %s312 = scalar_lea.vmem [#allocation9], %s311
        %s313 = smul.u32 48, %s22
        %s314 = ssub.s32 188, %s313
        %p315 = scmp.lt.s32.totalorder %s314, 48
        %s316 = scalar_select %p315, %s314, 48
        %s317 = smul.u32 128, %s316
        %s318 = smul.u32 %s317, 3
        %s319 = smul.u32 48, %s22
        %s320 = ssub.s32 188, %s319
        %p321 = scmp.lt.s32.totalorder %s320, 48
        %s322 = scalar_select %p321, %s320, 48
        %s323 = smul.u32 128, %s322
        %s324 = smul.u32 48, %s22
        %s325 = ssub.s32 188, %s324
        %p326 = scmp.lt.s32.totalorder %s325, 48
        %s327 = scalar_select %p326, %s325, 48
        %s328 = smul.u32 128, %s327
        %s329 = smul.u32 48, %s22
        %s330 = ssub.s32 188, %s329
        %p331 = scmp.lt.s32.totalorder %s330, 48
        %s332 = scalar_select %p331, %s330, 48
        %s333 = smul.u32 64, %s332
        %s334 = sld [smem:[#allocation2]]
        %v335 = vld [vmem:[%s265] sm:$0xff]
        %v336 = vld [vmem:[%s265 + $0x8] sm:$0xff]
        %v337 = vld [vmem:[%s265 + $0x10] sm:$0xff]
        %v338 = vld [vmem:[%s265 + $0x18] sm:$0xff]
        %v339 = vld [vmem:[%s265 + $0x20] sm:$0xff]
        %v340 = vld [vmem:[%s265 + $0x28] sm:$0xff]
        %v341 = vld [vmem:[%s265 + $0x30] sm:$0xff]
        %v342 = vld [vmem:[%s265 + $0x38] sm:$0xff]
        %v343 = vld [vmem:[%s265 + $0x40] sm:$0xff]
        %v344 = vld [vmem:[%s265 + $0x48] sm:$0xff]
        %v345 = vld [vmem:[%s265 + $0x50] sm:$0xff]
        %v346 = vld [vmem:[%s265 + $0x58] sm:$0xff]
        %v347 = vld [vmem:[%s265 + $0x60] sm:$0xff]
        %v348 = vld [vmem:[%s265 + $0x68] sm:$0xff]
        %v349 = vld [vmem:[%s265 + $0x70] sm:$0xff]
        %v350 = vld [vmem:[%s265 + $0x78] sm:$0xff]
        %v351 = vld [vmem:[%s265 + $0x80] sm:$0xff]
        %v352 = vld [vmem:[%s265 + $0x88] sm:$0xff]
        %v353 = vld [vmem:[%s265 + $0x90] sm:$0xff]
        %v354 = vld [vmem:[%s265 + $0x98] sm:$0xff]
        %v355 = vld [vmem:[%s265 + $0xa0] sm:$0xff]
        %v356 = vld [vmem:[%s265 + $0xa8] sm:$0xff]
        %v357 = vld [vmem:[%s265 + $0xb0] sm:$0xff]
        %v358 = vld [vmem:[%s265 + $0xb8] sm:$0xff]
        %v359 = vld [vmem:[%s265 + $0xc0] sm:$0xff]
        %v360 = vld [vmem:[%s265 + $0xc8] sm:$0xff]
        %v361 = vld [vmem:[%s265 + $0xd0] sm:$0xff]
        %v362 = vld [vmem:[%s265 + $0xd8] sm:$0xff]
        %v363 = vld [vmem:[%s265 + $0xe0] sm:$0xff]
        %v364 = vld [vmem:[%s265 + $0xe8] sm:$0xff]
        %v365 = vld [vmem:[%s265 + $0xf0] sm:$0xff]
        %v366 = vld [vmem:[%s265 + $0xf8] sm:$0xff]
        %v367 = vld [vmem:[%s265 + $0x100] sm:$0xff]
        %v368 = vld [vmem:[%s265 + $0x108] sm:$0xff]
        %v369 = vld [vmem:[%s265 + $0x110] sm:$0xff]
        %v370 = vld [vmem:[%s265 + $0x118] sm:$0xff]
        %v371 = vld [vmem:[%s265 + $0x120] sm:$0xff]
        %v372 = vld [vmem:[%s265 + $0x128] sm:$0xff]
        %v373 = vld [vmem:[%s265 + $0x130] sm:$0xff]
        %v374 = vld [vmem:[%s265 + $0x138] sm:$0xff]
        %v375 = vld [vmem:[%s265 + $0x140] sm:$0xff]
        %v376 = vld [vmem:[%s265 + $0x148] sm:$0xff]
        %v377 = vld [vmem:[%s265 + $0x150] sm:$0xff]
        %v378 = vld [vmem:[%s265 + $0x158] sm:$0xff]
        %v379 = vld [vmem:[%s265 + $0x160] sm:$0xff]
        %v380 = vld [vmem:[%s265 + $0x168] sm:$0xff]
        %v381 = vld [vmem:[%s265 + $0x170] sm:$0xff]
        %v382 = vld [vmem:[%s265 + $0x178] sm:$0xff]
        %v383 = vld [vmem:[%s265 + $0x180] sm:$0xff]
        %v384 = vld [vmem:[%s265 + $0x188] sm:$0xff]
        %v385 = vld [vmem:[%s265 + $0x190] sm:$0xff]
        %v386 = vld [vmem:[%s265 + $0x198] sm:$0xff]
        %v387 = vld [vmem:[%s265 + $0x1a0] sm:$0xff]
        %v388 = vld [vmem:[%s265 + $0x1a8] sm:$0xff]
        %v389 = vld [vmem:[%s265 + $0x1b0] sm:$0xff]
        %v390 = vld [vmem:[%s265 + $0x1b8] sm:$0xff]
        %v391 = vld [vmem:[%s265 + $0x1c0] sm:$0xff]
        %v392 = vld [vmem:[%s265 + $0x1c8] sm:$0xff]
        %v393 = vld [vmem:[%s265 + $0x1d0] sm:$0xff]
        %v394 = vld [vmem:[%s265 + $0x1d8] sm:$0xff]
        %v395 = vld [vmem:[%s265 + $0x1e0] sm:$0xff]
        %v396 = vld [vmem:[%s265 + $0x1e8] sm:$0xff]
        %v397 = vld [vmem:[%s265 + $0x1f0] sm:$0xff]
        %v398 = vld [vmem:[%s265 + $0x1f8] sm:$0xff]
        %v399 = vld [vmem:[%s265 + $0x200] sm:$0xff]
        %v400 = vld [vmem:[%s265 + $0x208] sm:$0xff]
        %v401 = vld [vmem:[%s265 + $0x210] sm:$0xff]
        %v402 = vld [vmem:[%s265 + $0x218] sm:$0xff]
        %v403 = vld [vmem:[%s265 + $0x220] sm:$0xff]
        %v404 = vld [vmem:[%s265 + $0x228] sm:$0xff]
        %v405 = vld [vmem:[%s265 + $0x230] sm:$0xff]
        %v406 = vld [vmem:[%s265 + $0x238] sm:$0xff]
        %v407 = vld [vmem:[%s265 + $0x240] sm:$0xff]
        %v408 = vld [vmem:[%s265 + $0x248] sm:$0xff]
        %v409 = vld [vmem:[%s265 + $0x250] sm:$0xff]
        %v410 = vld [vmem:[%s265 + $0x258] sm:$0xff]
        %v411 = vld [vmem:[%s265 + $0x260] sm:$0xff]
        %v412 = vld [vmem:[%s265 + $0x268] sm:$0xff]
        %v413 = vld [vmem:[%s265 + $0x270] sm:$0xff]
        %v414 = vld [vmem:[%s265 + $0x278] sm:$0xff]
        %v415 = vld [vmem:[%s265 + $0x280] sm:$0xff]
        %v416 = vld [vmem:[%s265 + $0x288] sm:$0xff]
        %v417 = vld [vmem:[%s265 + $0x290] sm:$0xff]
        %v418 = vld [vmem:[%s265 + $0x298] sm:$0xff]
        %v419 = vld [vmem:[%s265 + $0x2a0] sm:$0xff]
        %v420 = vld [vmem:[%s265 + $0x2a8] sm:$0xff]
        %v421 = vld [vmem:[%s265 + $0x2b0] sm:$0xff]
        %v422 = vld [vmem:[%s265 + $0x2b8] sm:$0xff]
        %v423 = vld [vmem:[%s265 + $0x2c0] sm:$0xff]
        %v424 = vld [vmem:[%s265 + $0x2c8] sm:$0xff]
        %v425 = vld [vmem:[%s265 + $0x2d0] sm:$0xff]
        %v426 = vld [vmem:[%s265 + $0x2d8] sm:$0xff]
        %v427 = vld [vmem:[%s265 + $0x2e0] sm:$0xff]
        %v428 = vld [vmem:[%s265 + $0x2e8] sm:$0xff]
        %v429 = vld [vmem:[%s265 + $0x2f0] sm:$0xff]
        %v430 = vld [vmem:[%s265 + $0x2f8] sm:$0xff]
        %v431 = vld [vmem:[%s265 + $0x300] sm:$0xff]
        %v432 = vld [vmem:[%s265 + $0x308] sm:$0xff]
        %v433 = vld [vmem:[%s265 + $0x310] sm:$0xff]
        %v434 = vld [vmem:[%s265 + $0x318] sm:$0xff]
        %v435 = vld [vmem:[%s265 + $0x320] sm:$0xff]
        %v436 = vld [vmem:[%s265 + $0x328] sm:$0xff]
        %v437 = vld [vmem:[%s265 + $0x330] sm:$0xff]
        %v438 = vld [vmem:[%s265 + $0x338] sm:$0xff]
        %v439 = vld [vmem:[%s265 + $0x340] sm:$0xff]
        %v440 = vld [vmem:[%s265 + $0x348] sm:$0xff]
        %v441 = vld [vmem:[%s265 + $0x350] sm:$0xff]
        %v442 = vld [vmem:[%s265 + $0x358] sm:$0xff]
        %v443 = vld [vmem:[%s265 + $0x360] sm:$0xff]
        %v444 = vld [vmem:[%s265 + $0x368] sm:$0xff]
        %v445 = vld [vmem:[%s265 + $0x370] sm:$0xff]
        %v446 = vld [vmem:[%s265 + $0x378] sm:$0xff]
        %v447 = vld [vmem:[%s265 + $0x380] sm:$0xff]
        %v448 = vld [vmem:[%s265 + $0x388] sm:$0xff]
        %v449 = vld [vmem:[%s265 + $0x390] sm:$0xff]
        %v450 = vld [vmem:[%s265 + $0x398] sm:$0xff]
        %v451 = vld [vmem:[%s265 + $0x3a0] sm:$0xff]
        %v452 = vld [vmem:[%s265 + $0x3a8] sm:$0xff]
        %v453 = vld [vmem:[%s265 + $0x3b0] sm:$0xff]
        %v454 = vld [vmem:[%s265 + $0x3b8] sm:$0xff]
        %v455 = vld [vmem:[%s265 + $0x3c0] sm:$0xff]
        %v456 = vld [vmem:[%s265 + $0x3c8] sm:$0xff]
        %v457 = vld [vmem:[%s265 + $0x3d0] sm:$0xff]
        %v458 = vld [vmem:[%s265 + $0x3d8] sm:$0xff]
        %v459 = vld [vmem:[%s265 + $0x3e0] sm:$0xff]
        %v460 = vld [vmem:[%s265 + $0x3e8] sm:$0xff]
        %v461 = vld [vmem:[%s265 + $0x3f0] sm:$0xff]
        %v462 = vld [vmem:[%s265 + $0x3f8] sm:$0xff]
        %v463 = vld [vmem:[%s265 + $0x400] sm:$0xff]
        %v464 = vld [vmem:[%s265 + $0x408] sm:$0xff]
        %v465 = vld [vmem:[%s265 + $0x410] sm:$0xff]
        %v466 = vld [vmem:[%s265 + $0x418] sm:$0xff]
        %v467 = vld [vmem:[%s265 + $0x420] sm:$0xff]
        %v468 = vld [vmem:[%s265 + $0x428] sm:$0xff]
        %v469 = vld [vmem:[%s265 + $0x430] sm:$0xff]
        %v470 = vld [vmem:[%s265 + $0x438] sm:$0xff]
        %v471 = vld [vmem:[%s265 + $0x440] sm:$0xff]
        %v472 = vld [vmem:[%s265 + $0x448] sm:$0xff]
        %v473 = vld [vmem:[%s265 + $0x450] sm:$0xff]
        %v474 = vld [vmem:[%s265 + $0x458] sm:$0xff]
        %v475 = vld [vmem:[%s265 + $0x460] sm:$0xff]
        %v476 = vld [vmem:[%s265 + $0x468] sm:$0xff]
        %v477 = vld [vmem:[%s265 + $0x470] sm:$0xff]
        %v478 = vld [vmem:[%s265 + $0x478] sm:$0xff]
        %v479 = vld [vmem:[#allocation5] sm:$0xff]
        %v480 = vld [vmem:[#allocation5 + $0x8] sm:$0xff]
        %v481 = vld [vmem:[#allocation5 + $0x10] sm:$0xff]
        %v482 = vld [vmem:[#allocation5 + $0x18] sm:$0xff]
        %v483 = vld [vmem:[#allocation5 + $0x20] sm:$0xff]
        %v484 = vld [vmem:[#allocation5 + $0x28] sm:$0xff]
        %v485 = vld [vmem:[#allocation5 + $0x30] sm:$0xff]
        %v486 = vld [vmem:[#allocation5 + $0x38] sm:$0xff]
        %v487 = vld [vmem:[#allocation5 + $0x40] sm:$0xff]
        %v488 = vld [vmem:[#allocation5 + $0x48] sm:$0xff]
        %v489 = vld [vmem:[#allocation5 + $0x50] sm:$0xff]
        %v490 = vld [vmem:[#allocation5 + $0x58] sm:$0xff]
        %v491 = vld [vmem:[#allocation5 + $0x60] sm:$0xff]
        %v492 = vld [vmem:[#allocation5 + $0x68] sm:$0xff]
        %v493 = vld [vmem:[#allocation5 + $0x70] sm:$0xff]
        %v494 = vld [vmem:[#allocation5 + $0x78] sm:$0xff]
        %v495 = vld [vmem:[#allocation5 + $0x80] sm:$0xff]
        %v496 = vld [vmem:[#allocation5 + $0x88] sm:$0xff]
        %v497 = vld [vmem:[#allocation5 + $0x90] sm:$0xff]
        %v498 = vld [vmem:[#allocation5 + $0x98] sm:$0xff]
        %v499 = vld [vmem:[#allocation5 + $0xa0] sm:$0xff]
        %v500 = vld [vmem:[#allocation5 + $0xa8] sm:$0xff]
        %v501 = vld [vmem:[#allocation5 + $0xb0] sm:$0xff]
        %v502 = vld [vmem:[#allocation5 + $0xb8] sm:$0xff]
        %v503 = vld [vmem:[#allocation5 + $0xc0] sm:$0xff]
        %v504 = vld [vmem:[#allocation5 + $0xc8] sm:$0xff]
        %v505 = vld [vmem:[#allocation5 + $0xd0] sm:$0xff]
        %v506 = vld [vmem:[#allocation5 + $0xd8] sm:$0xff]
        %v507 = vld [vmem:[#allocation5 + $0xe0] sm:$0xff]
        %v508 = vld [vmem:[#allocation5 + $0xe8] sm:$0xff]
        %v509 = vld [vmem:[#allocation5 + $0xf0] sm:$0xff]
        %v510 = vld [vmem:[#allocation5 + $0xf8] sm:$0xff]
        %v511 = vld [vmem:[#allocation5 + $0x100] sm:$0xff]
        %v512 = vld [vmem:[#allocation5 + $0x108] sm:$0xff]
        %v513 = vld [vmem:[#allocation5 + $0x110] sm:$0xff]
        %v514 = vld [vmem:[#allocation5 + $0x118] sm:$0xff]
        %v515 = vld [vmem:[#allocation5 + $0x120] sm:$0xff]
        %v516 = vld [vmem:[#allocation5 + $0x128] sm:$0xff]
        %v517 = vld [vmem:[#allocation5 + $0x130] sm:$0xff]
        %v518 = vld [vmem:[#allocation5 + $0x138] sm:$0xff]
        %v519 = vld [vmem:[#allocation5 + $0x140] sm:$0xff]
        %v520 = vld [vmem:[#allocation5 + $0x148] sm:$0xff]
        %v521 = vld [vmem:[#allocation5 + $0x150] sm:$0xff]
        %v522 = vld [vmem:[#allocation5 + $0x158] sm:$0xff]
        %v523 = vld [vmem:[#allocation5 + $0x160] sm:$0xff]
        %v524 = vld [vmem:[#allocation5 + $0x168] sm:$0xff]
        %v525 = vld [vmem:[#allocation5 + $0x170] sm:$0xff]
        %v526 = vld [vmem:[#allocation5 + $0x178] sm:$0xff]
        %527 = vmatprep.subr.mxu0 0.0
        %528 = vmatpush1.msra.mxu0 %v494
        %529 = vmatprep.subr.mxu0 0.0
        %530 = vmatpush1.msra.mxu0 %v493
        %531 = vmatprep.subr.mxu0 0.0
        %532 = vmatpush1.msra.mxu0 %v492
        %533 = vmatprep.subr.mxu0 0.0
        %534 = vmatpush1.msra.mxu0 %v491
        %535 = vmatprep.subr.mxu0 0.0
        %536 = vmatpush1.msra.mxu0 %v490
        %537 = vmatprep.subr.mxu0 0.0
        %538 = vmatpush1.msra.mxu0 %v489
        %539 = vmatprep.subr.mxu0 0.0
        %540 = vmatpush1.msra.mxu0 %v488
        %541 = vmatprep.subr.mxu0 0.0
        %542 = vmatpush1.msra.mxu0 %v487
        %543 = vmatprep.subr.mxu0 0.0
        %544 = vmatpush1.msra.mxu0 %v486
        %545 = vmatprep.subr.mxu0 0.0
        %546 = vmatpush1.msra.mxu0 %v485
        %547 = vmatprep.subr.mxu0 0.0
        %548 = vmatpush1.msra.mxu0 %v484
        %549 = vmatprep.subr.mxu0 0.0
        %550 = vmatpush1.msra.mxu0 %v483
        %551 = vmatprep.subr.mxu0 0.0
        %552 = vmatpush1.msra.mxu0 %v482
        %553 = vmatprep.subr.mxu0 0.0
        %554 = vmatpush1.msra.mxu0 %v481
        %555 = vmatprep.subr.mxu0 0.0
        %556 = vmatpush1.msra.mxu0 %v480
        %557 = vmatprep.subr.mxu0 0.0
        %558 = vmatpush1.msra.mxu0 %v479
        %559 = vmatprep.subr.mxu0 0.0
        %560 = vmatpush2.msra.mxu0 %v510
        %561 = vmatprep.subr.mxu0 0.0
        %562 = vmatpush2.msra.mxu0 %v509
        %563 = vmatprep.subr.mxu0 0.0
        %564 = vmatpush2.msra.mxu0 %v508
        %565 = vmatprep.subr.mxu0 0.0
        %566 = vmatpush2.msra.mxu0 %v507
        %567 = vmatprep.subr.mxu0 0.0
        %568 = vmatpush2.msra.mxu0 %v506
        %569 = vmatprep.subr.mxu0 0.0
        %570 = vmatpush2.msra.mxu0 %v505
        %571 = vmatprep.subr.mxu0 0.0
        %572 = vmatpush2.msra.mxu0 %v504
        %573 = vmatprep.subr.mxu0 0.0
        %574 = vmatpush2.msra.mxu0 %v503
        %575 = vmatprep.subr.mxu0 0.0
        %576 = vmatpush2.msra.mxu0 %v502
        %577 = vmatprep.subr.mxu0 0.0
        %578 = vmatpush2.msra.mxu0 %v501
        %579 = vmatprep.subr.mxu0 0.0
        %580 = vmatpush2.msra.mxu0 %v500
        %581 = vmatprep.subr.mxu0 0.0
        %582 = vmatpush2.msra.mxu0 %v499
        %583 = vmatprep.subr.mxu0 0.0
        %584 = vmatpush2.msra.mxu0 %v498
        %585 = vmatprep.subr.mxu0 0.0
        %586 = vmatpush2.msra.mxu0 %v497
        %587 = vmatprep.subr.mxu0 0.0
        %588 = vmatpush2.msra.mxu0 %v496
        %589 = vmatprep.subr.mxu0 0.0
        %590 = vmatpush2.msra.mxu0 %v495
        %591 = vmatprep.mubr.f32.mxu0 %v336
        %592 = vmatmul.mubr.f32.gmra.mxu0 %v335
        %v593 = vpop.f32.mrf.mxu0
        %v594 = vadd.f32 0.0, %v593
        %v595 = vpop.f32.mrf.mxu0
        %596 = vmatprep.mubr.f32.mxu0 %v339
        %597 = vmatmul.mubr.f32.gmra.mxu0 %v338
        %v598 = vpop.f32.mrf.mxu0
        %v599 = vadd.f32 0.0, %v598
        %v600 = vpop.f32.mrf.mxu0
        %601 = vmatprep.mubr.f32.mxu0 %v342
        %602 = vmatmul.mubr.f32.gmra.mxu0 %v341
        %v603 = vpop.f32.mrf.mxu0
        %v604 = vadd.f32 0.0, %v603
        %v605 = vpop.f32.mrf.mxu0
        %606 = vmatprep.mubr.f32.mxu0 %v345
        %607 = vmatmul.mubr.f32.gmra.mxu0 %v344
        %v608 = vpop.f32.mrf.mxu0
        %v609 = vadd.f32 0.0, %v608
        %v610 = vpop.f32.mrf.mxu0
        %611 = vmatprep.mubr.f32.mxu0 %v348
        %612 = vmatmul.mubr.f32.gmra.mxu0 %v347
        %v613 = vpop.f32.mrf.mxu0
        %v614 = vadd.f32 0.0, %v613
        %v615 = vpop.f32.mrf.mxu0
        %616 = vmatprep.mubr.f32.mxu0 %v351
        %617 = vmatmul.mubr.f32.gmra.mxu0 %v350
        %v618 = vpop.f32.mrf.mxu0
        %v619 = vadd.f32 0.0, %v618
        %v620 = vpop.f32.mrf.mxu0
        %621 = vmatprep.mubr.f32.mxu0 %v354
        %622 = vmatmul.mubr.f32.gmra.mxu0 %v353
        %v623 = vpop.f32.mrf.mxu0
        %v624 = vadd.f32 0.0, %v623
        %v625 = vpop.f32.mrf.mxu0
        %626 = vmatprep.mubr.f32.mxu0 %v357
        %627 = vmatmul.mubr.f32.gmra.mxu0 %v356
        %v628 = vpop.f32.mrf.mxu0
        %v629 = vadd.f32 0.0, %v628
        %v630 = vpop.f32.mrf.mxu0
        %631 = vmatprep.mubr.f32.mxu0 %v360
        %632 = vmatmul.mubr.f32.gmra.mxu0 %v359
        %v633 = vpop.f32.mrf.mxu0
        %v634 = vadd.f32 0.0, %v633
        %v635 = vpop.f32.mrf.mxu0
        %636 = vmatprep.mubr.f32.mxu0 %v363
        %637 = vmatmul.mubr.f32.gmra.mxu0 %v362
        %v638 = vpop.f32.mrf.mxu0
        %v639 = vadd.f32 0.0, %v638
        %v640 = vpop.f32.mrf.mxu0
        %641 = vmatprep.mubr.f32.mxu0 %v366
        %642 = vmatmul.mubr.f32.gmra.mxu0 %v365
        %v643 = vpop.f32.mrf.mxu0
        %v644 = vadd.f32 0.0, %v643
        %v645 = vpop.f32.mrf.mxu0
        %646 = vmatprep.mubr.f32.mxu0 %v369
        %647 = vmatmul.mubr.f32.gmra.mxu0 %v368
        %v648 = vpop.f32.mrf.mxu0
        %v649 = vadd.f32 0.0, %v648
        %v650 = vpop.f32.mrf.mxu0
        %651 = vmatprep.mubr.f32.mxu0 %v372
        %652 = vmatmul.mubr.f32.gmra.mxu0 %v371
        %v653 = vpop.f32.mrf.mxu0
        %v654 = vadd.f32 0.0, %v653
        %v655 = vpop.f32.mrf.mxu0
        %656 = vmatprep.mubr.f32.mxu0 %v375
        %657 = vmatmul.mubr.f32.gmra.mxu0 %v374
        %v658 = vpop.f32.mrf.mxu0
        %v659 = vadd.f32 0.0, %v658
        %v660 = vpop.f32.mrf.mxu0
        %661 = vmatprep.mubr.f32.mxu0 %v378
        %662 = vmatmul.mubr.f32.gmra.mxu0 %v377
        %v663 = vpop.f32.mrf.mxu0
        %v664 = vadd.f32 0.0, %v663
        %v665 = vpop.f32.mrf.mxu0
        %666 = vmatprep.mubr.f32.mxu0 %v381
        %667 = vmatmul.mubr.f32.gmra.mxu0 %v380
        %v668 = vpop.f32.mrf.mxu0
        %v669 = vadd.f32 0.0, %v668
        %v670 = vpop.f32.mrf.mxu0
        %671 = vmatprep.mubr.f32.mxu0 %v384
        %672 = vmatmul.mubr.f32.gmra.mxu0 %v383
        %v673 = vpop.f32.mrf.mxu0
        %v674 = vadd.f32 0.0, %v673
        %v675 = vpop.f32.mrf.mxu0
        %676 = vmatprep.mubr.f32.mxu0 %v387
        %677 = vmatmul.mubr.f32.gmra.mxu0 %v386
        %v678 = vpop.f32.mrf.mxu0
        %v679 = vadd.f32 0.0, %v678
        %v680 = vpop.f32.mrf.mxu0
        %681 = vmatprep.mubr.f32.mxu0 %v390
        %682 = vmatmul.mubr.f32.gmra.mxu0 %v389
        %v683 = vpop.f32.mrf.mxu0
        %v684 = vadd.f32 0.0, %v683
        %v685 = vpop.f32.mrf.mxu0
        %686 = vmatprep.mubr.f32.mxu0 %v393
        %687 = vmatmul.mubr.f32.gmra.mxu0 %v392
        %v688 = vpop.f32.mrf.mxu0
        %v689 = vadd.f32 0.0, %v688
        %v690 = vpop.f32.mrf.mxu0
        %691 = vmatprep.mubr.f32.mxu0 %v396
        %692 = vmatmul.mubr.f32.gmra.mxu0 %v395
        %v693 = vpop.f32.mrf.mxu0
        %v694 = vadd.f32 0.0, %v693
        %v695 = vpop.f32.mrf.mxu0
        %696 = vmatprep.mubr.f32.mxu0 %v399
        %697 = vmatmul.mubr.f32.gmra.mxu0 %v398
        %v698 = vpop.f32.mrf.mxu0
        %v699 = vadd.f32 0.0, %v698
        %v700 = vpop.f32.mrf.mxu0
        %701 = vmatprep.mubr.f32.mxu0 %v402
        %702 = vmatmul.mubr.f32.gmra.mxu0 %v401
        %v703 = vpop.f32.mrf.mxu0
        %v704 = vadd.f32 0.0, %v703
        %v705 = vpop.f32.mrf.mxu0
        %706 = vmatprep.mubr.f32.mxu0 %v405
        %707 = vmatmul.mubr.f32.gmra.mxu0 %v404
        %v708 = vpop.f32.mrf.mxu0
        %v709 = vadd.f32 0.0, %v708
        %v710 = vpop.f32.mrf.mxu0
        %711 = vmatprep.mubr.f32.mxu0 %v408
        %712 = vmatmul.mubr.f32.gmra.mxu0 %v407
        %v713 = vpop.f32.mrf.mxu0
        %v714 = vadd.f32 0.0, %v713
        %v715 = vpop.f32.mrf.mxu0
        %716 = vmatprep.mubr.f32.mxu0 %v411
        %717 = vmatmul.mubr.f32.gmra.mxu0 %v410
        %v718 = vpop.f32.mrf.mxu0
        %v719 = vadd.f32 0.0, %v718
        %v720 = vpop.f32.mrf.mxu0
        %721 = vmatprep.mubr.f32.mxu0 %v414
        %722 = vmatmul.mubr.f32.gmra.mxu0 %v413
        %v723 = vpop.f32.mrf.mxu0
        %v724 = vadd.f32 0.0, %v723
        %v725 = vpop.f32.mrf.mxu0
        %726 = vmatprep.mubr.f32.mxu0 %v417
        %727 = vmatmul.mubr.f32.gmra.mxu0 %v416
        %v728 = vpop.f32.mrf.mxu0
        %v729 = vadd.f32 0.0, %v728
        %v730 = vpop.f32.mrf.mxu0
        %731 = vmatprep.mubr.f32.mxu0 %v420
        %732 = vmatmul.mubr.f32.gmra.mxu0 %v419
        %v733 = vpop.f32.mrf.mxu0
        %v734 = vadd.f32 0.0, %v733
        %v735 = vpop.f32.mrf.mxu0
        %736 = vmatprep.mubr.f32.mxu0 %v423
        %737 = vmatmul.mubr.f32.gmra.mxu0 %v422
        %v738 = vpop.f32.mrf.mxu0
        %v739 = vadd.f32 0.0, %v738
        %v740 = vpop.f32.mrf.mxu0
        %741 = vmatprep.mubr.f32.mxu0 %v426
        %742 = vmatmul.mubr.f32.gmra.mxu0 %v425
        %v743 = vpop.f32.mrf.mxu0
        %v744 = vadd.f32 0.0, %v743
        %v745 = vpop.f32.mrf.mxu0
        %746 = vmatprep.mubr.f32.mxu0 %v429
        %747 = vmatmul.mubr.f32.gmra.mxu0 %v428
        %v748 = vpop.f32.mrf.mxu0
        %v749 = vadd.f32 0.0, %v748
        %v750 = vpop.f32.mrf.mxu0
        %751 = vmatprep.mubr.f32.mxu0 %v432
        %752 = vmatmul.mubr.f32.gmra.mxu0 %v431
        %v753 = vpop.f32.mrf.mxu0
        %v754 = vadd.f32 0.0, %v753
        %v755 = vpop.f32.mrf.mxu0
        %756 = vmatprep.mubr.f32.mxu0 %v435
        %757 = vmatmul.mubr.f32.gmra.mxu0 %v434
        %v758 = vpop.f32.mrf.mxu0
        %v759 = vadd.f32 0.0, %v758
        %v760 = vpop.f32.mrf.mxu0
        %761 = vmatprep.mubr.f32.mxu0 %v438
        %762 = vmatmul.mubr.f32.gmra.mxu0 %v437
        %v763 = vpop.f32.mrf.mxu0
        %v764 = vadd.f32 0.0, %v763
        %v765 = vpop.f32.mrf.mxu0
        %766 = vmatprep.mubr.f32.mxu0 %v441
        %767 = vmatmul.mubr.f32.gmra.mxu0 %v440
        %v768 = vpop.f32.mrf.mxu0
        %v769 = vadd.f32 0.0, %v768
        %v770 = vpop.f32.mrf.mxu0
        %771 = vmatprep.mubr.f32.mxu0 %v444
        %772 = vmatmul.mubr.f32.gmra.mxu0 %v443
        %v773 = vpop.f32.mrf.mxu0
        %v774 = vadd.f32 0.0, %v773
        %v775 = vpop.f32.mrf.mxu0
        %776 = vmatprep.mubr.f32.mxu0 %v447
        %777 = vmatmul.mubr.f32.gmra.mxu0 %v446
        %v778 = vpop.f32.mrf.mxu0
        %v779 = vadd.f32 0.0, %v778
        %v780 = vpop.f32.mrf.mxu0
        %781 = vmatprep.mubr.f32.mxu0 %v450
        %782 = vmatmul.mubr.f32.gmra.mxu0 %v449
        %v783 = vpop.f32.mrf.mxu0
        %v784 = vadd.f32 0.0, %v783
        %v785 = vpop.f32.mrf.mxu0
        %786 = vmatprep.mubr.f32.mxu0 %v453
        %787 = vmatmul.mubr.f32.gmra.mxu0 %v452
        %v788 = vpop.f32.mrf.mxu0
        %v789 = vadd.f32 0.0, %v788
        %v790 = vpop.f32.mrf.mxu0
        %791 = vmatprep.mubr.f32.mxu0 %v456
        %792 = vmatmul.mubr.f32.gmra.mxu0 %v455
        %v793 = vpop.f32.mrf.mxu0
        %v794 = vadd.f32 0.0, %v793
        %v795 = vpop.f32.mrf.mxu0
        %796 = vmatprep.mubr.f32.mxu0 %v459
        %797 = vmatmul.mubr.f32.gmra.mxu0 %v458
        %v798 = vpop.f32.mrf.mxu0
        %v799 = vadd.f32 0.0, %v798
        %v800 = vpop.f32.mrf.mxu0
        %801 = vmatprep.mubr.f32.mxu0 %v462
        %802 = vmatmul.mubr.f32.gmra.mxu0 %v461
        %v803 = vpop.f32.mrf.mxu0
        %v804 = vadd.f32 0.0, %v803
        %v805 = vpop.f32.mrf.mxu0
        %806 = vmatprep.mubr.f32.mxu0 %v465
        %807 = vmatmul.mubr.f32.gmra.mxu0 %v464
        %v808 = vpop.f32.mrf.mxu0
        %v809 = vadd.f32 0.0, %v808
        %v810 = vpop.f32.mrf.mxu0
        %811 = vmatprep.mubr.f32.mxu0 %v468
        %812 = vmatmul.mubr.f32.gmra.mxu0 %v467
        %v813 = vpop.f32.mrf.mxu0
        %v814 = vadd.f32 0.0, %v813
        %v815 = vpop.f32.mrf.mxu0
        %816 = vmatprep.mubr.f32.mxu0 %v471
        %817 = vmatmul.mubr.f32.gmra.mxu0 %v470
        %v818 = vpop.f32.mrf.mxu0
        %v819 = vadd.f32 0.0, %v818
        %v820 = vpop.f32.mrf.mxu0
        %821 = vmatprep.mubr.f32.mxu0 %v474
        %822 = vmatmul.mubr.f32.gmra.mxu0 %v473
        %v823 = vpop.f32.mrf.mxu0
        %v824 = vadd.f32 0.0, %v823
        %v825 = vpop.f32.mrf.mxu0
        %826 = vmatprep.mubr.f32.mxu0 %v477
        %827 = vmatmul.mubr.f32.gmra.mxu0 %v476
        %v828 = vpop.f32.mrf.mxu0
        %v829 = vadd.f32 0.0, %v828
        %v830 = vpop.f32.mrf.mxu0
        %831 = vdwg.mxu0
        %832 = vmatprep.subr.mxu0 0.0
        %833 = vmatpush1.msra.mxu0 %v526
        %834 = vmatprep.subr.mxu0 0.0
        %835 = vmatpush1.msra.mxu0 %v525
        %836 = vmatprep.subr.mxu0 0.0
        %837 = vmatpush1.msra.mxu0 %v524
        %838 = vmatprep.subr.mxu0 0.0
        %839 = vmatpush1.msra.mxu0 %v523
        %840 = vmatprep.subr.mxu0 0.0
        %841 = vmatpush1.msra.mxu0 %v522
        %842 = vmatprep.subr.mxu0 0.0
        %843 = vmatpush1.msra.mxu0 %v521
        %844 = vmatprep.subr.mxu0 0.0
        %845 = vmatpush1.msra.mxu0 %v520
        %846 = vmatprep.subr.mxu0 0.0
        %847 = vmatpush1.msra.mxu0 %v519
        %848 = vmatprep.subr.mxu0 0.0
        %849 = vmatpush1.msra.mxu0 %v518
        %850 = vmatprep.subr.mxu0 0.0
        %851 = vmatpush1.msra.mxu0 %v517
        %852 = vmatprep.subr.mxu0 0.0
        %853 = vmatpush1.msra.mxu0 %v516
        %854 = vmatprep.subr.mxu0 0.0
        %855 = vmatpush1.msra.mxu0 %v515
        %856 = vmatprep.subr.mxu0 0.0
        %857 = vmatpush1.msra.mxu0 %v514
        %858 = vmatprep.subr.mxu0 0.0
        %859 = vmatpush1.msra.mxu0 %v513
        %860 = vmatprep.subr.mxu0 0.0
        %861 = vmatpush1.msra.mxu0 %v512
        %862 = vmatprep.subr.mxu0 0.0
        %863 = vmatpush1.msra.mxu0 %v511
        %864 = vmatprep.subr.mxu0 0.0
        %865 = vmatpush2.msra.mxu0 0.0
        %866 = vmatprep.subr.mxu0 0.0
        %867 = vmatpush2.msra.mxu0 0.0
        %868 = vmatprep.subr.mxu0 0.0
        %869 = vmatpush2.msra.mxu0 0.0
        %870 = vmatprep.subr.mxu0 0.0
        %871 = vmatpush2.msra.mxu0 0.0
        %872 = vmatprep.subr.mxu0 0.0
        %873 = vmatpush2.msra.mxu0 0.0
        %874 = vmatprep.subr.mxu0 0.0
        %875 = vmatpush2.msra.mxu0 0.0
        %876 = vmatprep.subr.mxu0 0.0
        %877 = vmatpush2.msra.mxu0 0.0
        %878 = vmatprep.subr.mxu0 0.0
        %879 = vmatpush2.msra.mxu0 0.0
        %880 = vmatprep.subr.mxu0 0.0
        %881 = vmatpush2.msra.mxu0 0.0
        %882 = vmatprep.subr.mxu0 0.0
        %883 = vmatpush2.msra.mxu0 0.0
        %884 = vmatprep.subr.mxu0 0.0
        %885 = vmatpush2.msra.mxu0 0.0
        %886 = vmatprep.subr.mxu0 0.0
        %887 = vmatpush2.msra.mxu0 0.0
        %888 = vmatprep.subr.mxu0 0.0
        %889 = vmatpush2.msra.mxu0 0.0
        %890 = vmatprep.subr.mxu0 0.0
        %891 = vmatpush2.msra.mxu0 0.0
        %892 = vmatprep.subr.mxu0 0.0
        %893 = vmatpush2.msra.mxu0 0.0
        %894 = vmatprep.subr.mxu0 0.0
        %895 = vmatpush2.msra.mxu0 0.0
        %896 = vmatprep.mubr.f32.mxu0 0.0
        %897 = vmatmul.mubr.f32.gmra.mxu0 %v337
        %v898 = vpop.f32.mrf.mxu0
        %v899 = vadd.f32 %v594, %v898
        %v900 = vpop.f32.mrf.mxu0
        %901 = vmatprep.mubr.f32.mxu0 0.0
        %902 = vmatmul.mubr.f32.gmra.mxu0 %v340
        %v903 = vpop.f32.mrf.mxu0
        %v904 = vadd.f32 %v599, %v903
        %v905 = vpop.f32.mrf.mxu0
        %906 = vmatprep.mubr.f32.mxu0 0.0
        %907 = vmatmul.mubr.f32.gmra.mxu0 %v343
        %v908 = vpop.f32.mrf.mxu0
        %v909 = vadd.f32 %v604, %v908
        %v910 = vpop.f32.mrf.mxu0
        %911 = vmatprep.mubr.f32.mxu0 0.0
        %912 = vmatmul.mubr.f32.gmra.mxu0 %v346
        %v913 = vpop.f32.mrf.mxu0
        %v914 = vadd.f32 %v609, %v913
        %v915 = vpop.f32.mrf.mxu0
        %916 = vmatprep.mubr.f32.mxu0 0.0
        %917 = vmatmul.mubr.f32.gmra.mxu0 %v349
        %v918 = vpop.f32.mrf.mxu0
        %v919 = vadd.f32 %v614, %v918
        %v920 = vpop.f32.mrf.mxu0
        %921 = vmatprep.mubr.f32.mxu0 0.0
        %922 = vmatmul.mubr.f32.gmra.mxu0 %v352
        %v923 = vpop.f32.mrf.mxu0
        %v924 = vadd.f32 %v619, %v923
        %v925 = vpop.f32.mrf.mxu0
        %926 = vmatprep.mubr.f32.mxu0 0.0
        %927 = vmatmul.mubr.f32.gmra.mxu0 %v355
        %v928 = vpop.f32.mrf.mxu0
        %v929 = vadd.f32 %v624, %v928
        %v930 = vpop.f32.mrf.mxu0
        %931 = vmatprep.mubr.f32.mxu0 0.0
        %932 = vmatmul.mubr.f32.gmra.mxu0 %v358
        %v933 = vpop.f32.mrf.mxu0
        %v934 = vadd.f32 %v629, %v933
        %v935 = vpop.f32.mrf.mxu0
        %936 = vmatprep.mubr.f32.mxu0 0.0
        %937 = vmatmul.mubr.f32.gmra.mxu0 %v361
        %v938 = vpop.f32.mrf.mxu0
        %v939 = vadd.f32 %v634, %v938
        %v940 = vpop.f32.mrf.mxu0
        %941 = vmatprep.mubr.f32.mxu0 0.0
        %942 = vmatmul.mubr.f32.gmra.mxu0 %v364
        %v943 = vpop.f32.mrf.mxu0
        %v944 = vadd.f32 %v639, %v943
        %v945 = vpop.f32.mrf.mxu0
        %946 = vmatprep.mubr.f32.mxu0 0.0
        %947 = vmatmul.mubr.f32.gmra.mxu0 %v367
        %v948 = vpop.f32.mrf.mxu0
        %v949 = vadd.f32 %v644, %v948
        %v950 = vpop.f32.mrf.mxu0
        %951 = vmatprep.mubr.f32.mxu0 0.0
        %952 = vmatmul.mubr.f32.gmra.mxu0 %v370
        %v953 = vpop.f32.mrf.mxu0
        %v954 = vadd.f32 %v649, %v953
        %v955 = vpop.f32.mrf.mxu0
        %956 = vmatprep.mubr.f32.mxu0 0.0
        %957 = vmatmul.mubr.f32.gmra.mxu0 %v373
        %v958 = vpop.f32.mrf.mxu0
        %v959 = vadd.f32 %v654, %v958
        %v960 = vpop.f32.mrf.mxu0
        %961 = vmatprep.mubr.f32.mxu0 0.0
        %962 = vmatmul.mubr.f32.gmra.mxu0 %v376
        %v963 = vpop.f32.mrf.mxu0
        %v964 = vadd.f32 %v659, %v963
        %v965 = vpop.f32.mrf.mxu0
        %966 = vmatprep.mubr.f32.mxu0 0.0
        %967 = vmatmul.mubr.f32.gmra.mxu0 %v379
        %v968 = vpop.f32.mrf.mxu0
        %v969 = vadd.f32 %v664, %v968
        %v970 = vpop.f32.mrf.mxu0
        %971 = vmatprep.mubr.f32.mxu0 0.0
        %972 = vmatmul.mubr.f32.gmra.mxu0 %v382
        %v973 = vpop.f32.mrf.mxu0
        %v974 = vadd.f32 %v669, %v973
        %v975 = vpop.f32.mrf.mxu0
        %976 = vmatprep.mubr.f32.mxu0 0.0
        %977 = vmatmul.mubr.f32.gmra.mxu0 %v385
        %v978 = vpop.f32.mrf.mxu0
        %v979 = vadd.f32 %v674, %v978
        %v980 = vpop.f32.mrf.mxu0
        %981 = vmatprep.mubr.f32.mxu0 0.0
        %982 = vmatmul.mubr.f32.gmra.mxu0 %v388
        %v983 = vpop.f32.mrf.mxu0
        %v984 = vadd.f32 %v679, %v983
        %v985 = vpop.f32.mrf.mxu0
        %986 = vmatprep.mubr.f32.mxu0 0.0
        %987 = vmatmul.mubr.f32.gmra.mxu0 %v391
        %v988 = vpop.f32.mrf.mxu0
        %v989 = vadd.f32 %v684, %v988
        %v990 = vpop.f32.mrf.mxu0
        %991 = vmatprep.mubr.f32.mxu0 0.0
        %992 = vmatmul.mubr.f32.gmra.mxu0 %v394
        %v993 = vpop.f32.mrf.mxu0
        %v994 = vadd.f32 %v689, %v993
        %v995 = vpop.f32.mrf.mxu0
        %996 = vmatprep.mubr.f32.mxu0 0.0
        %997 = vmatmul.mubr.f32.gmra.mxu0 %v397
        %v998 = vpop.f32.mrf.mxu0
        %v999 = vadd.f32 %v694, %v998
        %v1000 = vpop.f32.mrf.mxu0
        %1001 = vmatprep.mubr.f32.mxu0 0.0
        %1002 = vmatmul.mubr.f32.gmra.mxu0 %v400
        %v1003 = vpop.f32.mrf.mxu0
        %v1004 = vadd.f32 %v699, %v1003
        %v1005 = vpop.f32.mrf.mxu0
        %1006 = vmatprep.mubr.f32.mxu0 0.0
        %1007 = vmatmul.mubr.f32.gmra.mxu0 %v403
        %v1008 = vpop.f32.mrf.mxu0
        %v1009 = vadd.f32 %v704, %v1008
        %v1010 = vpop.f32.mrf.mxu0
        %1011 = vmatprep.mubr.f32.mxu0 0.0
        %1012 = vmatmul.mubr.f32.gmra.mxu0 %v406
        %v1013 = vpop.f32.mrf.mxu0
        %v1014 = vadd.f32 %v709, %v1013
        %v1015 = vpop.f32.mrf.mxu0
        %1016 = vmatprep.mubr.f32.mxu0 0.0
        %1017 = vmatmul.mubr.f32.gmra.mxu0 %v409
        %v1018 = vpop.f32.mrf.mxu0
        %v1019 = vadd.f32 %v714, %v1018
        %v1020 = vpop.f32.mrf.mxu0
        %1021 = vmatprep.mubr.f32.mxu0 0.0
        %1022 = vmatmul.mubr.f32.gmra.mxu0 %v412
        %v1023 = vpop.f32.mrf.mxu0
        %v1024 = vadd.f32 %v719, %v1023
        %v1025 = vpop.f32.mrf.mxu0
        %1026 = vmatprep.mubr.f32.mxu0 0.0
        %1027 = vmatmul.mubr.f32.gmra.mxu0 %v415
        %v1028 = vpop.f32.mrf.mxu0
        %v1029 = vadd.f32 %v724, %v1028
        %v1030 = vpop.f32.mrf.mxu0
        %1031 = vmatprep.mubr.f32.mxu0 0.0
        %1032 = vmatmul.mubr.f32.gmra.mxu0 %v418
        %v1033 = vpop.f32.mrf.mxu0
        %v1034 = vadd.f32 %v729, %v1033
        %v1035 = vpop.f32.mrf.mxu0
        %1036 = vmatprep.mubr.f32.mxu0 0.0
        %1037 = vmatmul.mubr.f32.gmra.mxu0 %v421
        %v1038 = vpop.f32.mrf.mxu0
        %v1039 = vadd.f32 %v734, %v1038
        %v1040 = vpop.f32.mrf.mxu0
        %1041 = vmatprep.mubr.f32.mxu0 0.0
        %1042 = vmatmul.mubr.f32.gmra.mxu0 %v424
        %v1043 = vpop.f32.mrf.mxu0
        %v1044 = vadd.f32 %v739, %v1043
        %v1045 = vpop.f32.mrf.mxu0
        %1046 = vmatprep.mubr.f32.mxu0 0.0
        %1047 = vmatmul.mubr.f32.gmra.mxu0 %v427
        %v1048 = vpop.f32.mrf.mxu0
        %v1049 = vadd.f32 %v744, %v1048
        %v1050 = vpop.f32.mrf.mxu0
        %1051 = vmatprep.mubr.f32.mxu0 0.0
        %1052 = vmatmul.mubr.f32.gmra.mxu0 %v430
        %v1053 = vpop.f32.mrf.mxu0
        %v1054 = vadd.f32 %v749, %v1053
        %v1055 = vpop.f32.mrf.mxu0
        %1056 = vmatprep.mubr.f32.mxu0 0.0
        %1057 = vmatmul.mubr.f32.gmra.mxu0 %v433
        %v1058 = vpop.f32.mrf.mxu0
        %v1059 = vadd.f32 %v754, %v1058
        %v1060 = vpop.f32.mrf.mxu0
        %1061 = vmatprep.mubr.f32.mxu0 0.0
        %1062 = vmatmul.mubr.f32.gmra.mxu0 %v436
        %v1063 = vpop.f32.mrf.mxu0
        %v1064 = vadd.f32 %v759, %v1063
        %v1065 = vpop.f32.mrf.mxu0
        %1066 = vmatprep.mubr.f32.mxu0 0.0
        %1067 = vmatmul.mubr.f32.gmra.mxu0 %v439
        %v1068 = vpop.f32.mrf.mxu0
        %v1069 = vadd.f32 %v764, %v1068
        %v1070 = vpop.f32.mrf.mxu0
        %1071 = vmatprep.mubr.f32.mxu0 0.0
        %1072 = vmatmul.mubr.f32.gmra.mxu0 %v442
        %v1073 = vpop.f32.mrf.mxu0
        %v1074 = vadd.f32 %v769, %v1073
        %v1075 = vpop.f32.mrf.mxu0
        %1076 = vmatprep.mubr.f32.mxu0 0.0
        %1077 = vmatmul.mubr.f32.gmra.mxu0 %v445
        %v1078 = vpop.f32.mrf.mxu0
        %v1079 = vadd.f32 %v774, %v1078
        %v1080 = vpop.f32.mrf.mxu0
        %1081 = vmatprep.mubr.f32.mxu0 0.0
        %1082 = vmatmul.mubr.f32.gmra.mxu0 %v448
        %v1083 = vpop.f32.mrf.mxu0
        %v1084 = vadd.f32 %v779, %v1083
        %v1085 = vpop.f32.mrf.mxu0
        %1086 = vmatprep.mubr.f32.mxu0 0.0
        %1087 = vmatmul.mubr.f32.gmra.mxu0 %v451
        %v1088 = vpop.f32.mrf.mxu0
        %v1089 = vadd.f32 %v784, %v1088
        %v1090 = vpop.f32.mrf.mxu0
        %1091 = vmatprep.mubr.f32.mxu0 0.0
        %1092 = vmatmul.mubr.f32.gmra.mxu0 %v454
        %v1093 = vpop.f32.mrf.mxu0
        %v1094 = vadd.f32 %v789, %v1093
        %v1095 = vpop.f32.mrf.mxu0
        %1096 = vmatprep.mubr.f32.mxu0 0.0
        %1097 = vmatmul.mubr.f32.gmra.mxu0 %v457
        %v1098 = vpop.f32.mrf.mxu0
        %v1099 = vadd.f32 %v794, %v1098
        %v1100 = vpop.f32.mrf.mxu0
        %1101 = vmatprep.mubr.f32.mxu0 0.0
        %1102 = vmatmul.mubr.f32.gmra.mxu0 %v460
        %v1103 = vpop.f32.mrf.mxu0
        %v1104 = vadd.f32 %v799, %v1103
        %v1105 = vpop.f32.mrf.mxu0
        %1106 = vmatprep.mubr.f32.mxu0 0.0
        %1107 = vmatmul.mubr.f32.gmra.mxu0 %v463
        %v1108 = vpop.f32.mrf.mxu0
        %v1109 = vadd.f32 %v804, %v1108
        %v1110 = vpop.f32.mrf.mxu0
        %1111 = vmatprep.mubr.f32.mxu0 0.0
        %1112 = vmatmul.mubr.f32.gmra.mxu0 %v466
        %v1113 = vpop.f32.mrf.mxu0
        %v1114 = vadd.f32 %v809, %v1113
        %v1115 = vpop.f32.mrf.mxu0
        %1116 = vmatprep.mubr.f32.mxu0 0.0
        %1117 = vmatmul.mubr.f32.gmra.mxu0 %v469
        %v1118 = vpop.f32.mrf.mxu0
        %v1119 = vadd.f32 %v814, %v1118
        %v1120 = vpop.f32.mrf.mxu0
        %1121 = vmatprep.mubr.f32.mxu0 0.0
        %1122 = vmatmul.mubr.f32.gmra.mxu0 %v472
        %v1123 = vpop.f32.mrf.mxu0
        %v1124 = vadd.f32 %v819, %v1123
        %v1125 = vpop.f32.mrf.mxu0
        %1126 = vmatprep.mubr.f32.mxu0 0.0
        %1127 = vmatmul.mubr.f32.gmra.mxu0 %v475
        %v1128 = vpop.f32.mrf.mxu0
        %v1129 = vadd.f32 %v824, %v1128
        %v1130 = vpop.f32.mrf.mxu0
        %1131 = vmatprep.mubr.f32.mxu0 0.0
        %1132 = vmatmul.mubr.f32.gmra.mxu0 %v478
        %v1133 = vpop.f32.mrf.mxu0
        %v1134 = vadd.f32 %v829, %v1133
        %v1135 = vpop.f32.mrf.mxu0
        %1136 = vdwg.mxu0
        %v1137 = vld [vmem:[%s278] sm:$0xff]
        %v1138 = vld [vmem:[%s278 + $0x8] sm:$0xff]
        %v1139 = vld [vmem:[%s278 + $0x10] sm:$0xff]
        %v1140 = vld [vmem:[%s278 + $0x18] sm:$0xff]
        %v1141 = vld [vmem:[%s278 + $0x20] sm:$0xff]
        %v1142 = vld [vmem:[%s278 + $0x28] sm:$0xff]
        %v1143 = vld [vmem:[%s278 + $0x30] sm:$0xff]
        %v1144 = vld [vmem:[%s278 + $0x38] sm:$0xff]
        %v1145 = vld [vmem:[%s278 + $0x40] sm:$0xff]
        %v1146 = vld [vmem:[%s278 + $0x48] sm:$0xff]
        %v1147 = vld [vmem:[%s278 + $0x50] sm:$0xff]
        %v1148 = vld [vmem:[%s278 + $0x58] sm:$0xff]
        %v1149 = vld [vmem:[%s278 + $0x60] sm:$0xff]
        %v1150 = vld [vmem:[%s278 + $0x68] sm:$0xff]
        %v1151 = vld [vmem:[%s278 + $0x70] sm:$0xff]
        %v1152 = vld [vmem:[%s278 + $0x78] sm:$0xff]
        %v1153 = vld [vmem:[%s278 + $0x80] sm:$0xff]
        %v1154 = vld [vmem:[%s278 + $0x88] sm:$0xff]
        %v1155 = vld [vmem:[%s278 + $0x90] sm:$0xff]
        %v1156 = vld [vmem:[%s278 + $0x98] sm:$0xff]
        %v1157 = vld [vmem:[%s278 + $0xa0] sm:$0xff]
        %v1158 = vld [vmem:[%s278 + $0xa8] sm:$0xff]
        %v1159 = vld [vmem:[%s278 + $0xb0] sm:$0xff]
        %v1160 = vld [vmem:[%s278 + $0xb8] sm:$0xff]
        %v1161 = vld [vmem:[%s278 + $0xc0] sm:$0xff]
        %v1162 = vld [vmem:[%s278 + $0xc8] sm:$0xff]
        %v1163 = vld [vmem:[%s278 + $0xd0] sm:$0xff]
        %v1164 = vld [vmem:[%s278 + $0xd8] sm:$0xff]
        %v1165 = vld [vmem:[%s278 + $0xe0] sm:$0xff]
        %v1166 = vld [vmem:[%s278 + $0xe8] sm:$0xff]
        %v1167 = vld [vmem:[%s278 + $0xf0] sm:$0xff]
        %v1168 = vld [vmem:[%s278 + $0xf8] sm:$0xff]
        %v1169 = vld [vmem:[%s278 + $0x100] sm:$0xff]
        %v1170 = vld [vmem:[%s278 + $0x108] sm:$0xff]
        %v1171 = vld [vmem:[%s278 + $0x110] sm:$0xff]
        %v1172 = vld [vmem:[%s278 + $0x118] sm:$0xff]
        %v1173 = vld [vmem:[%s278 + $0x120] sm:$0xff]
        %v1174 = vld [vmem:[%s278 + $0x128] sm:$0xff]
        %v1175 = vld [vmem:[%s278 + $0x130] sm:$0xff]
        %v1176 = vld [vmem:[%s278 + $0x138] sm:$0xff]
        %v1177 = vld [vmem:[%s278 + $0x140] sm:$0xff]
        %v1178 = vld [vmem:[%s278 + $0x148] sm:$0xff]
        %v1179 = vld [vmem:[%s278 + $0x150] sm:$0xff]
        %v1180 = vld [vmem:[%s278 + $0x158] sm:$0xff]
        %v1181 = vld [vmem:[%s278 + $0x160] sm:$0xff]
        %v1182 = vld [vmem:[%s278 + $0x168] sm:$0xff]
        %v1183 = vld [vmem:[%s278 + $0x170] sm:$0xff]
        %v1184 = vld [vmem:[%s278 + $0x178] sm:$0xff]
        %v1185 = vsub.f32 %v899, %v1137
        %v1186 = vsub.f32 %v904, %v1138
        %v1187 = vsub.f32 %v909, %v1139
        %v1188 = vsub.f32 %v914, %v1140
        %v1189 = vsub.f32 %v919, %v1141
        %v1190 = vsub.f32 %v924, %v1142
        %v1191 = vsub.f32 %v929, %v1143
        %v1192 = vsub.f32 %v934, %v1144
        %v1193 = vsub.f32 %v939, %v1145
        %v1194 = vsub.f32 %v944, %v1146
        %v1195 = vsub.f32 %v949, %v1147
        %v1196 = vsub.f32 %v954, %v1148
        %v1197 = vsub.f32 %v959, %v1149
        %v1198 = vsub.f32 %v964, %v1150
        %v1199 = vsub.f32 %v969, %v1151
        %v1200 = vsub.f32 %v974, %v1152
        %v1201 = vsub.f32 %v979, %v1153
        %v1202 = vsub.f32 %v984, %v1154
        %v1203 = vsub.f32 %v989, %v1155
        %v1204 = vsub.f32 %v994, %v1156
        %v1205 = vsub.f32 %v999, %v1157
        %v1206 = vsub.f32 %v1004, %v1158
        %v1207 = vsub.f32 %v1009, %v1159
        %v1208 = vsub.f32 %v1014, %v1160
        %v1209 = vsub.f32 %v1019, %v1161
        %v1210 = vsub.f32 %v1024, %v1162
        %v1211 = vsub.f32 %v1029, %v1163
        %v1212 = vsub.f32 %v1034, %v1164
        %v1213 = vsub.f32 %v1039, %v1165
        %v1214 = vsub.f32 %v1044, %v1166
        %v1215 = vsub.f32 %v1049, %v1167
        %v1216 = vsub.f32 %v1054, %v1168
        %v1217 = vsub.f32 %v1059, %v1169
        %v1218 = vsub.f32 %v1064, %v1170
        %v1219 = vsub.f32 %v1069, %v1171
        %v1220 = vsub.f32 %v1074, %v1172
        %v1221 = vsub.f32 %v1079, %v1173
        %v1222 = vsub.f32 %v1084, %v1174
        %v1223 = vsub.f32 %v1089, %v1175
        %v1224 = vsub.f32 %v1094, %v1176
        %v1225 = vsub.f32 %v1099, %v1177
        %v1226 = vsub.f32 %v1104, %v1178
        %v1227 = vsub.f32 %v1109, %v1179
        %v1228 = vsub.f32 %v1114, %v1180
        %v1229 = vsub.f32 %v1119, %v1181
        %v1230 = vsub.f32 %v1124, %v1182
        %v1231 = vsub.f32 %v1129, %v1183
        %v1232 = vsub.f32 %v1134, %v1184
        %v1233 = vstv %s334
        %v1234 = vmul.f32 %v1233, %v1185
        %v1235 = vmul.f32 %v1233, %v1186
        %v1236 = vmul.f32 %v1233, %v1187
        %v1237 = vmul.f32 %v1233, %v1188
        %v1238 = vmul.f32 %v1233, %v1189
        %v1239 = vmul.f32 %v1233, %v1190
        %v1240 = vmul.f32 %v1233, %v1191
        %v1241 = vmul.f32 %v1233, %v1192
        %v1242 = vmul.f32 %v1233, %v1193
        %v1243 = vmul.f32 %v1233, %v1194
        %v1244 = vmul.f32 %v1233, %v1195
        %v1245 = vmul.f32 %v1233, %v1196
        %v1246 = vmul.f32 %v1233, %v1197
        %v1247 = vmul.f32 %v1233, %v1198
        %v1248 = vmul.f32 %v1233, %v1199
        %v1249 = vmul.f32 %v1233, %v1200
        %v1250 = vmul.f32 %v1233, %v1201
        %v1251 = vmul.f32 %v1233, %v1202
        %v1252 = vmul.f32 %v1233, %v1203
        %v1253 = vmul.f32 %v1233, %v1204
        %v1254 = vmul.f32 %v1233, %v1205
        %v1255 = vmul.f32 %v1233, %v1206
        %v1256 = vmul.f32 %v1233, %v1207
        %v1257 = vmul.f32 %v1233, %v1208
        %v1258 = vmul.f32 %v1233, %v1209
        %v1259 = vmul.f32 %v1233, %v1210
        %v1260 = vmul.f32 %v1233, %v1211
        %v1261 = vmul.f32 %v1233, %v1212
        %v1262 = vmul.f32 %v1233, %v1213
        %v1263 = vmul.f32 %v1233, %v1214
        %v1264 = vmul.f32 %v1233, %v1215
        %v1265 = vmul.f32 %v1233, %v1216
        %v1266 = vmul.f32 %v1233, %v1217
        %v1267 = vmul.f32 %v1233, %v1218
        %v1268 = vmul.f32 %v1233, %v1219
        %v1269 = vmul.f32 %v1233, %v1220
        %v1270 = vmul.f32 %v1233, %v1221
        %v1271 = vmul.f32 %v1233, %v1222
        %v1272 = vmul.f32 %v1233, %v1223
        %v1273 = vmul.f32 %v1233, %v1224
        %v1274 = vmul.f32 %v1233, %v1225
        %v1275 = vmul.f32 %v1233, %v1226
        %v1276 = vmul.f32 %v1233, %v1227
        %v1277 = vmul.f32 %v1233, %v1228
        %v1278 = vmul.f32 %v1233, %v1229
        %v1279 = vmul.f32 %v1233, %v1230
        %v1280 = vmul.f32 %v1233, %v1231
        %v1281 = vmul.f32 %v1233, %v1232
        %v1282 = vadd.f32 %v1137, %v1234
        %v1283 = vadd.f32 %v1138, %v1235
        %v1284 = vadd.f32 %v1139, %v1236
        %v1285 = vadd.f32 %v1140, %v1237
        %v1286 = vadd.f32 %v1141, %v1238
        %v1287 = vadd.f32 %v1142, %v1239
        %v1288 = vadd.f32 %v1143, %v1240
        %v1289 = vadd.f32 %v1144, %v1241
        %v1290 = vadd.f32 %v1145, %v1242
        %v1291 = vadd.f32 %v1146, %v1243
        %v1292 = vadd.f32 %v1147, %v1244
        %v1293 = vadd.f32 %v1148, %v1245
        %v1294 = vadd.f32 %v1149, %v1246
        %v1295 = vadd.f32 %v1150, %v1247
        %v1296 = vadd.f32 %v1151, %v1248
        %v1297 = vadd.f32 %v1152, %v1249
        %v1298 = vadd.f32 %v1153, %v1250
        %v1299 = vadd.f32 %v1154, %v1251
        %v1300 = vadd.f32 %v1155, %v1252
        %v1301 = vadd.f32 %v1156, %v1253
        %v1302 = vadd.f32 %v1157, %v1254
        %v1303 = vadd.f32 %v1158, %v1255
        %v1304 = vadd.f32 %v1159, %v1256
        %v1305 = vadd.f32 %v1160, %v1257
        %v1306 = vadd.f32 %v1161, %v1258
        %v1307 = vadd.f32 %v1162, %v1259
        %v1308 = vadd.f32 %v1163, %v1260
        %v1309 = vadd.f32 %v1164, %v1261
        %v1310 = vadd.f32 %v1165, %v1262
        %v1311 = vadd.f32 %v1166, %v1263
        %v1312 = vadd.f32 %v1167, %v1264
        %v1313 = vadd.f32 %v1168, %v1265
        %v1314 = vadd.f32 %v1169, %v1266
        %v1315 = vadd.f32 %v1170, %v1267
        %v1316 = vadd.f32 %v1171, %v1268
        %v1317 = vadd.f32 %v1172, %v1269
        %v1318 = vadd.f32 %v1173, %v1270
        %v1319 = vadd.f32 %v1174, %v1271
        %v1320 = vadd.f32 %v1175, %v1272
        %v1321 = vadd.f32 %v1176, %v1273
        %v1322 = vadd.f32 %v1177, %v1274
        %v1323 = vadd.f32 %v1178, %v1275
        %v1324 = vadd.f32 %v1179, %v1276
        %v1325 = vadd.f32 %v1180, %v1277
        %v1326 = vadd.f32 %v1181, %v1278
        %v1327 = vadd.f32 %v1182, %v1279
        %v1328 = vadd.f32 %v1183, %v1280
        %v1329 = vadd.f32 %v1184, %v1281
        %1330 = vst [vmem:[%s306] sm:$0xff] %v1282
        %1331 = vst [vmem:[%s306 + $0x8] sm:$0xff] %v1283
        %1332 = vst [vmem:[%s306 + $0x10] sm:$0xff] %v1284
        %1333 = vst [vmem:[%s306 + $0x18] sm:$0xff] %v1285
        %1334 = vst [vmem:[%s306 + $0x20] sm:$0xff] %v1286
        %1335 = vst [vmem:[%s306 + $0x28] sm:$0xff] %v1287
        %1336 = vst [vmem:[%s306 + $0x30] sm:$0xff] %v1288
        %1337 = vst [vmem:[%s306 + $0x38] sm:$0xff] %v1289
        %1338 = vst [vmem:[%s306 + $0x40] sm:$0xff] %v1290
        %1339 = vst [vmem:[%s306 + $0x48] sm:$0xff] %v1291
        %1340 = vst [vmem:[%s306 + $0x50] sm:$0xff] %v1292
        %1341 = vst [vmem:[%s306 + $0x58] sm:$0xff] %v1293
        %1342 = vst [vmem:[%s306 + $0x60] sm:$0xff] %v1294
        %1343 = vst [vmem:[%s306 + $0x68] sm:$0xff] %v1295
        %1344 = vst [vmem:[%s306 + $0x70] sm:$0xff] %v1296
        %1345 = vst [vmem:[%s306 + $0x78] sm:$0xff] %v1297
        %1346 = vst [vmem:[%s306 + $0x80] sm:$0xff] %v1298
        %1347 = vst [vmem:[%s306 + $0x88] sm:$0xff] %v1299
        %1348 = vst [vmem:[%s306 + $0x90] sm:$0xff] %v1300
        %1349 = vst [vmem:[%s306 + $0x98] sm:$0xff] %v1301
        %1350 = vst [vmem:[%s306 + $0xa0] sm:$0xff] %v1302
        %1351 = vst [vmem:[%s306 + $0xa8] sm:$0xff] %v1303
        %1352 = vst [vmem:[%s306 + $0xb0] sm:$0xff] %v1304
        %1353 = vst [vmem:[%s306 + $0xb8] sm:$0xff] %v1305
        %1354 = vst [vmem:[%s306 + $0xc0] sm:$0xff] %v1306
        %1355 = vst [vmem:[%s306 + $0xc8] sm:$0xff] %v1307
        %1356 = vst [vmem:[%s306 + $0xd0] sm:$0xff] %v1308
        %1357 = vst [vmem:[%s306 + $0xd8] sm:$0xff] %v1309
        %1358 = vst [vmem:[%s306 + $0xe0] sm:$0xff] %v1310
        %1359 = vst [vmem:[%s306 + $0xe8] sm:$0xff] %v1311
        %1360 = vst [vmem:[%s306 + $0xf0] sm:$0xff] %v1312
        %1361 = vst [vmem:[%s306 + $0xf8] sm:$0xff] %v1313
        %1362 = vst [vmem:[%s306 + $0x100] sm:$0xff] %v1314
        %1363 = vst [vmem:[%s306 + $0x108] sm:$0xff] %v1315
        %1364 = vst [vmem:[%s306 + $0x110] sm:$0xff] %v1316
        %1365 = vst [vmem:[%s306 + $0x118] sm:$0xff] %v1317
        %1366 = vst [vmem:[%s306 + $0x120] sm:$0xff] %v1318
        %1367 = vst [vmem:[%s306 + $0x128] sm:$0xff] %v1319
        %1368 = vst [vmem:[%s306 + $0x130] sm:$0xff] %v1320
        %1369 = vst [vmem:[%s306 + $0x138] sm:$0xff] %v1321
        %1370 = vst [vmem:[%s306 + $0x140] sm:$0xff] %v1322
        %1371 = vst [vmem:[%s306 + $0x148] sm:$0xff] %v1323
        %1372 = vst [vmem:[%s306 + $0x150] sm:$0xff] %v1324
        %1373 = vst [vmem:[%s306 + $0x158] sm:$0xff] %v1325
        %1374 = vst [vmem:[%s306 + $0x160] sm:$0xff] %v1326
        %1375 = vst [vmem:[%s306 + $0x168] sm:$0xff] %v1327
        %1376 = vst [vmem:[%s306 + $0x170] sm:$0xff] %v1328
        %1377 = vst [vmem:[%s306 + $0x178] sm:$0xff] %v1329
        %v1378 = vpack.c.bf16 %v1283, %v1282
        %v1379 = vpack.c.bf16 %v1285, %v1284
        %v1380 = vpack.c.bf16 %v1287, %v1286
        %v1381 = vpack.c.bf16 %v1289, %v1288
        %v1382 = vpack.c.bf16 %v1291, %v1290
        %v1383 = vpack.c.bf16 %v1293, %v1292
        %v1384 = vpack.c.bf16 %v1295, %v1294
        %v1385 = vpack.c.bf16 %v1297, %v1296
        %v1386 = vpack.c.bf16 %v1299, %v1298
        %v1387 = vpack.c.bf16 %v1301, %v1300
        %v1388 = vpack.c.bf16 %v1303, %v1302
        %v1389 = vpack.c.bf16 %v1305, %v1304
        %v1390 = vpack.c.bf16 %v1307, %v1306
        %v1391 = vpack.c.bf16 %v1309, %v1308
        %v1392 = vpack.c.bf16 %v1311, %v1310
        %v1393 = vpack.c.bf16 %v1313, %v1312
        %v1394 = vpack.c.bf16 %v1315, %v1314
        %v1395 = vpack.c.bf16 %v1317, %v1316
        %v1396 = vpack.c.bf16 %v1319, %v1318
        %v1397 = vpack.c.bf16 %v1321, %v1320
        %v1398 = vpack.c.bf16 %v1323, %v1322
        %v1399 = vpack.c.bf16 %v1325, %v1324
        %v1400 = vpack.c.bf16 %v1327, %v1326
        %v1401 = vpack.c.bf16 %v1329, %v1328
        %v1426 = vunpack.c.l.b16 %v1378
        %v1427 = vunpack.c.h.b16 %v1378
        %v1428 = vunpack.c.l.b16 %v1379
        %v1429 = vunpack.c.h.b16 %v1379
        %v1430 = vunpack.c.l.b16 %v1380
        %v1431 = vunpack.c.h.b16 %v1380
        %v1432 = vunpack.c.l.b16 %v1381
        %v1433 = vunpack.c.h.b16 %v1381
        %v1434 = vunpack.c.l.b16 %v1382
        %v1435 = vunpack.c.h.b16 %v1382
        %v1436 = vunpack.c.l.b16 %v1383
        %v1437 = vunpack.c.h.b16 %v1383
        %v1438 = vunpack.c.l.b16 %v1384
        %v1439 = vunpack.c.h.b16 %v1384
        %v1440 = vunpack.c.l.b16 %v1385
        %v1441 = vunpack.c.h.b16 %v1385
        %v1442 = vunpack.c.l.b16 %v1386
        %v1443 = vunpack.c.h.b16 %v1386
        %v1444 = vunpack.c.l.b16 %v1387
        %v1445 = vunpack.c.h.b16 %v1387
        %v1446 = vunpack.c.l.b16 %v1388
        %v1447 = vunpack.c.h.b16 %v1388
        %v1448 = vunpack.c.l.b16 %v1389
        %v1449 = vunpack.c.h.b16 %v1389
        %v1450 = vunpack.c.l.b16 %v1390
        %v1451 = vunpack.c.h.b16 %v1390
        %v1452 = vunpack.c.l.b16 %v1391
        %v1453 = vunpack.c.h.b16 %v1391
        %v1454 = vunpack.c.l.b16 %v1392
        %v1455 = vunpack.c.h.b16 %v1392
        %v1456 = vunpack.c.l.b16 %v1393
        %v1457 = vunpack.c.h.b16 %v1393
        %v1458 = vunpack.c.l.b16 %v1394
        %v1459 = vunpack.c.h.b16 %v1394
        %v1460 = vunpack.c.l.b16 %v1395
        %v1461 = vunpack.c.h.b16 %v1395
        %v1462 = vunpack.c.l.b16 %v1396
        %v1463 = vunpack.c.h.b16 %v1396
        %v1464 = vunpack.c.l.b16 %v1397
        %v1465 = vunpack.c.h.b16 %v1397
        %v1466 = vunpack.c.l.b16 %v1398
        %v1467 = vunpack.c.h.b16 %v1398
        %v1468 = vunpack.c.l.b16 %v1399
        %v1469 = vunpack.c.h.b16 %v1399
        %v1470 = vunpack.c.l.b16 %v1400
        %v1471 = vunpack.c.h.b16 %v1400
        %v1472 = vunpack.c.l.b16 %v1401
        %v1473 = vunpack.c.h.b16 %v1401
        %v1474 = vpack.c.b16 %v1426, %v1426
        %v1475 = vpack.c.b16 %v1427, %v1427
        %v1476 = vpack.c.b16 %v1428, %v1428
        %v1477 = vpack.c.b16 %v1429, %v1429
        %v1478 = vpack.c.b16 %v1430, %v1430
        %v1479 = vpack.c.b16 %v1431, %v1431
        %v1480 = vpack.c.b16 %v1432, %v1432
        %v1481 = vpack.c.b16 %v1433, %v1433
        %v1482 = vpack.c.b16 %v1434, %v1434
        %v1483 = vpack.c.b16 %v1435, %v1435
        %v1484 = vpack.c.b16 %v1436, %v1436
        %v1485 = vpack.c.b16 %v1437, %v1437
        %v1486 = vpack.c.b16 %v1438, %v1438
        %v1487 = vpack.c.b16 %v1439, %v1439
        %v1488 = vpack.c.b16 %v1440, %v1440
        %v1489 = vpack.c.b16 %v1441, %v1441
        %v1490 = vpack.c.b16 %v1442, %v1442
        %v1491 = vpack.c.b16 %v1443, %v1443
        %v1492 = vpack.c.b16 %v1444, %v1444
        %v1493 = vpack.c.b16 %v1445, %v1445
        %v1494 = vpack.c.b16 %v1446, %v1446
        %v1495 = vpack.c.b16 %v1447, %v1447
        %v1496 = vpack.c.b16 %v1448, %v1448
        %v1497 = vpack.c.b16 %v1449, %v1449
        %v1498 = vpack.c.b16 %v1450, %v1450
        %v1499 = vpack.c.b16 %v1451, %v1451
        %v1500 = vpack.c.b16 %v1452, %v1452
        %v1501 = vpack.c.b16 %v1453, %v1453
        %v1502 = vpack.c.b16 %v1454, %v1454
        %v1503 = vpack.c.b16 %v1455, %v1455
        %v1504 = vpack.c.b16 %v1456, %v1456
        %v1505 = vpack.c.b16 %v1457, %v1457
        %v1506 = vpack.c.b16 %v1458, %v1458
        %v1507 = vpack.c.b16 %v1459, %v1459
        %v1508 = vpack.c.b16 %v1460, %v1460
        %v1509 = vpack.c.b16 %v1461, %v1461
        %v1510 = vpack.c.b16 %v1462, %v1462
        %v1511 = vpack.c.b16 %v1463, %v1463
        %v1512 = vpack.c.b16 %v1464, %v1464
        %v1513 = vpack.c.b16 %v1465, %v1465
        %v1514 = vpack.c.b16 %v1466, %v1466
        %v1515 = vpack.c.b16 %v1467, %v1467
        %v1516 = vpack.c.b16 %v1468, %v1468
        %v1517 = vpack.c.b16 %v1469, %v1469
        %v1518 = vpack.c.b16 %v1470, %v1470
        %v1519 = vpack.c.b16 %v1471, %v1471
        %v1520 = vpack.c.b16 %v1472, %v1472
        %v1521 = vpack.c.b16 %v1473, %v1473
        %1570 = vst [vmem:[%s312] sm:$0xf] %v1474
        %1571 = vst [vmem:[%s312 + $0x4] sm:$0xf] %v1475
        %1572 = vst [vmem:[%s312 + $0x8] sm:$0xf] %v1476
        %1573 = vst [vmem:[%s312 + $0xc] sm:$0xf] %v1477
        %1574 = vst [vmem:[%s312 + $0x10] sm:$0xf] %v1478
        %1575 = vst [vmem:[%s312 + $0x14] sm:$0xf] %v1479
        %1576 = vst [vmem:[%s312 + $0x18] sm:$0xf] %v1480
        %1577 = vst [vmem:[%s312 + $0x1c] sm:$0xf] %v1481
        %1578 = vst [vmem:[%s312 + $0x20] sm:$0xf] %v1482
        %1579 = vst [vmem:[%s312 + $0x24] sm:$0xf] %v1483
        %1580 = vst [vmem:[%s312 + $0x28] sm:$0xf] %v1484
        %1581 = vst [vmem:[%s312 + $0x2c] sm:$0xf] %v1485
        %1582 = vst [vmem:[%s312 + $0x30] sm:$0xf] %v1486
        %1583 = vst [vmem:[%s312 + $0x34] sm:$0xf] %v1487
        %1584 = vst [vmem:[%s312 + $0x38] sm:$0xf] %v1488
        %1585 = vst [vmem:[%s312 + $0x3c] sm:$0xf] %v1489
        %1586 = vst [vmem:[%s312 + $0x40] sm:$0xf] %v1490
        %1587 = vst [vmem:[%s312 + $0x44] sm:$0xf] %v1491
        %1588 = vst [vmem:[%s312 + $0x48] sm:$0xf] %v1492
        %1589 = vst [vmem:[%s312 + $0x4c] sm:$0xf] %v1493
        %1590 = vst [vmem:[%s312 + $0x50] sm:$0xf] %v1494
        %1591 = vst [vmem:[%s312 + $0x54] sm:$0xf] %v1495
        %1592 = vst [vmem:[%s312 + $0x58] sm:$0xf] %v1496
        %1593 = vst [vmem:[%s312 + $0x5c] sm:$0xf] %v1497
        %1594 = vst [vmem:[%s312 + $0x60] sm:$0xf] %v1498
        %1595 = vst [vmem:[%s312 + $0x64] sm:$0xf] %v1499
        %1596 = vst [vmem:[%s312 + $0x68] sm:$0xf] %v1500
        %1597 = vst [vmem:[%s312 + $0x6c] sm:$0xf] %v1501
        %1598 = vst [vmem:[%s312 + $0x70] sm:$0xf] %v1502
        %1599 = vst [vmem:[%s312 + $0x74] sm:$0xf] %v1503
        %1600 = vst [vmem:[%s312 + $0x78] sm:$0xf] %v1504
        %1601 = vst [vmem:[%s312 + $0x7c] sm:$0xf] %v1505
        %1602 = vst [vmem:[%s312 + $0x80] sm:$0xf] %v1506
        %1603 = vst [vmem:[%s312 + $0x84] sm:$0xf] %v1507
        %1604 = vst [vmem:[%s312 + $0x88] sm:$0xf] %v1508
        %1605 = vst [vmem:[%s312 + $0x8c] sm:$0xf] %v1509
        %1606 = vst [vmem:[%s312 + $0x90] sm:$0xf] %v1510
        %1607 = vst [vmem:[%s312 + $0x94] sm:$0xf] %v1511
        %1608 = vst [vmem:[%s312 + $0x98] sm:$0xf] %v1512
        %1609 = vst [vmem:[%s312 + $0x9c] sm:$0xf] %v1513
        %1610 = vst [vmem:[%s312 + $0xa0] sm:$0xf] %v1514
        %1611 = vst [vmem:[%s312 + $0xa4] sm:$0xf] %v1515
        %1612 = vst [vmem:[%s312 + $0xa8] sm:$0xf] %v1516
        %1613 = vst [vmem:[%s312 + $0xac] sm:$0xf] %v1517
        %1614 = vst [vmem:[%s312 + $0xb0] sm:$0xf] %v1518
        %1615 = vst [vmem:[%s312 + $0xb4] sm:$0xf] %v1519
        %1616 = vst [vmem:[%s312 + $0xb8] sm:$0xf] %v1520
        %1617 = vst [vmem:[%s312 + $0xbc] sm:$0xf] %v1521
        %s1618 = sand.u32 %s124, 1
        %s1619 = sand.u32 %s124, 1
        %s1620 = smul.addr %s1619, 384
        %s1621 = scalar_lea.vmem [#allocation8], %s1620
        %s1622 = sand.u32 %s150, 1
        %s1623 = sand.u32 %s150, 1
        %s1624 = smul.addr %s1623, 192
        %s1625 = scalar_lea.vmem [#allocation9], %s1624
        // Predicated region
        $region49: #{analogy_forward.2} parent=35 // pred_check
          %p1626 = pneg %p134
        $region50: #{analogy_forward.2} parent=35 // pred_check_branch
          %1628 = sbr.rel (%p1626) target = $region52
        $region51: #{analogy_forward.2} parent=35 // pred_region
          %s1629 = smul.u32 48, %s22
          %s1630 = ssub.s32 188, %s1629
          %p1631 = scmp.lt.s32.totalorder %s1630, 48
          %s1632 = scalar_select %p1631, %s1630, 48
          %s1633 = smul.u32 128, %s1632
          %p1634 = scmp.ne.s32.totalorder 0, %s1633
          %s1635 = smul.addr %s1629, 8
          %s1636 = scalar_lea.vmem %s4, %s1635
          // Predicated region
          $region53: #{analogy_forward.2} parent=51 // pred_check
            %p1637 = pneg %p1634
          $region54: #{analogy_forward.2} parent=51 // pred_check_branch
            %1639 = sbr.rel (%p1637) target = $region56
          $region55: #{analogy_forward.2} parent=51 // pred_region
            // Predicated region
            $region57: #{analogy_forward.2} parent=55 // pred_check
              _
            $region58: #{analogy_forward.2} parent=55 // pred_check_branch
              %1641 = sbr.rel (0) target = $region60
            $region59: #{analogy_forward.2} parent=55 // pred_region
              // Predicated region
              $region79: #{analogy_forward.2} parent=59 // pred_check
                _
              $region80: #{analogy_forward.2} parent=59 // pred_check_branch
                %1786 = sbr.rel (0) target = $region82
              $region81: #{analogy_forward.2} parent=59 // pred_region
                %s1787 = sdiv.u32.pop %s1632, 48
                %s1788 = srem.u32.pop %s1632, 48
                // While loop
                $region83: #{analogy_forward.2} parent=81 // loop_pre_header
                  _
                $region84: #{analogy_forward.2} parent=81 // loop_header
                  %s1790 = sphi 0, %s1792
                  %p1791 = scmp.ge.s32.totalorder %s1790, %s1787
                  %s1795 = sphi 0, %s1896
                  %s1796 = sphi %s1621, %s1899
                  %s1797 = sphi %s1636, %s1900
                $region85: #{analogy_forward.2} parent=81 // loop_header_branch
                  %1794 = sbr.rel (%p1791) target = $region89
                $region86: #{analogy_forward.2} parent=81 // loop_body
                  %v1798 = vld [vmem:[%s1796] sm:$0xff]
                  %1799 = vst [vmem:[%s1797] sm:$0xff] %v1798
                  %v1800 = vld [vmem:[%s1796 + $0x8] sm:$0xff]
                  %1801 = vst [vmem:[%s1797 + $0x8] sm:$0xff] %v1800
                  %v1802 = vld [vmem:[%s1796 + $0x10] sm:$0xff]
                  %1803 = vst [vmem:[%s1797 + $0x10] sm:$0xff] %v1802
                  %v1804 = vld [vmem:[%s1796 + $0x18] sm:$0xff]
                  %1805 = vst [vmem:[%s1797 + $0x18] sm:$0xff] %v1804
                  %v1806 = vld [vmem:[%s1796 + $0x20] sm:$0xff]
                  %1807 = vst [vmem:[%s1797 + $0x20] sm:$0xff] %v1806
                  %v1808 = vld [vmem:[%s1796 + $0x28] sm:$0xff]
                  %1809 = vst [vmem:[%s1797 + $0x28] sm:$0xff] %v1808
                  %v1810 = vld [vmem:[%s1796 + $0x30] sm:$0xff]
                  %1811 = vst [vmem:[%s1797 + $0x30] sm:$0xff] %v1810
                  %v1812 = vld [vmem:[%s1796 + $0x38] sm:$0xff]
                  %1813 = vst [vmem:[%s1797 + $0x38] sm:$0xff] %v1812
                  %v1814 = vld [vmem:[%s1796 + $0x40] sm:$0xff]
                  %1815 = vst [vmem:[%s1797 + $0x40] sm:$0xff] %v1814
                  %v1816 = vld [vmem:[%s1796 + $0x48] sm:$0xff]
                  %1817 = vst [vmem:[%s1797 + $0x48] sm:$0xff] %v1816
                  %v1818 = vld [vmem:[%s1796 + $0x50] sm:$0xff]
                  %1819 = vst [vmem:[%s1797 + $0x50] sm:$0xff] %v1818
                  %v1820 = vld [vmem:[%s1796 + $0x58] sm:$0xff]
                  %1821 = vst [vmem:[%s1797 + $0x58] sm:$0xff] %v1820
                  %v1822 = vld [vmem:[%s1796 + $0x60] sm:$0xff]
                  %1823 = vst [vmem:[%s1797 + $0x60] sm:$0xff] %v1822
                  %v1824 = vld [vmem:[%s1796 + $0x68] sm:$0xff]
                  %1825 = vst [vmem:[%s1797 + $0x68] sm:$0xff] %v1824
                  %v1826 = vld [vmem:[%s1796 + $0x70] sm:$0xff]
                  %1827 = vst [vmem:[%s1797 + $0x70] sm:$0xff] %v1826
                  %v1828 = vld [vmem:[%s1796 + $0x78] sm:$0xff]
                  %1829 = vst [vmem:[%s1797 + $0x78] sm:$0xff] %v1828
                  %v1830 = vld [vmem:[%s1796 + $0x80] sm:$0xff]
                  %1831 = vst [vmem:[%s1797 + $0x80] sm:$0xff] %v1830
                  %v1832 = vld [vmem:[%s1796 + $0x88] sm:$0xff]
                  %1833 = vst [vmem:[%s1797 + $0x88] sm:$0xff] %v1832
                  %v1834 = vld [vmem:[%s1796 + $0x90] sm:$0xff]
                  %1835 = vst [vmem:[%s1797 + $0x90] sm:$0xff] %v1834
                  %v1836 = vld [vmem:[%s1796 + $0x98] sm:$0xff]
                  %1837 = vst [vmem:[%s1797 + $0x98] sm:$0xff] %v1836
                  %v1838 = vld [vmem:[%s1796 + $0xa0] sm:$0xff]
                  %1839 = vst [vmem:[%s1797 + $0xa0] sm:$0xff] %v1838
                  %v1840 = vld [vmem:[%s1796 + $0xa8] sm:$0xff]
                  %1841 = vst [vmem:[%s1797 + $0xa8] sm:$0xff] %v1840
                  %v1842 = vld [vmem:[%s1796 + $0xb0] sm:$0xff]
                  %1843 = vst [vmem:[%s1797 + $0xb0] sm:$0xff] %v1842
                  %v1844 = vld [vmem:[%s1796 + $0xb8] sm:$0xff]
                  %1845 = vst [vmem:[%s1797 + $0xb8] sm:$0xff] %v1844
                  %v1846 = vld [vmem:[%s1796 + $0xc0] sm:$0xff]
                  %1847 = vst [vmem:[%s1797 + $0xc0] sm:$0xff] %v1846
                  %v1848 = vld [vmem:[%s1796 + $0xc8] sm:$0xff]
                  %1849 = vst [vmem:[%s1797 + $0xc8] sm:$0xff] %v1848
                  %v1850 = vld [vmem:[%s1796 + $0xd0] sm:$0xff]
                  %1851 = vst [vmem:[%s1797 + $0xd0] sm:$0xff] %v1850
                  %v1852 = vld [vmem:[%s1796 + $0xd8] sm:$0xff]
                  %1853 = vst [vmem:[%s1797 + $0xd8] sm:$0xff] %v1852
                  %v1854 = vld [vmem:[%s1796 + $0xe0] sm:$0xff]
                  %1855 = vst [vmem:[%s1797 + $0xe0] sm:$0xff] %v1854
                  %v1856 = vld [vmem:[%s1796 + $0xe8] sm:$0xff]
                  %1857 = vst [vmem:[%s1797 + $0xe8] sm:$0xff] %v1856
                  %v1858 = vld [vmem:[%s1796 + $0xf0] sm:$0xff]
                  %1859 = vst [vmem:[%s1797 + $0xf0] sm:$0xff] %v1858
                  %v1860 = vld [vmem:[%s1796 + $0xf8] sm:$0xff]
                  %1861 = vst [vmem:[%s1797 + $0xf8] sm:$0xff] %v1860
                  %v1862 = vld [vmem:[%s1796 + $0x100] sm:$0xff]
                  %1863 = vst [vmem:[%s1797 + $0x100] sm:$0xff] %v1862
                  %v1864 = vld [vmem:[%s1796 + $0x108] sm:$0xff]
                  %1865 = vst [vmem:[%s1797 + $0x108] sm:$0xff] %v1864
                  %v1866 = vld [vmem:[%s1796 + $0x110] sm:$0xff]
                  %1867 = vst [vmem:[%s1797 + $0x110] sm:$0xff] %v1866
                  %v1868 = vld [vmem:[%s1796 + $0x118] sm:$0xff]
                  %1869 = vst [vmem:[%s1797 + $0x118] sm:$0xff] %v1868
                  %v1870 = vld [vmem:[%s1796 + $0x120] sm:$0xff]
                  %1871 = vst [vmem:[%s1797 + $0x120] sm:$0xff] %v1870
                  %v1872 = vld [vmem:[%s1796 + $0x128] sm:$0xff]
                  %1873 = vst [vmem:[%s1797 + $0x128] sm:$0xff] %v1872
                  %v1874 = vld [vmem:[%s1796 + $0x130] sm:$0xff]
                  %1875 = vst [vmem:[%s1797 + $0x130] sm:$0xff] %v1874
                  %v1876 = vld [vmem:[%s1796 + $0x138] sm:$0xff]
                  %1877 = vst [vmem:[%s1797 + $0x138] sm:$0xff] %v1876
                  %v1878 = vld [vmem:[%s1796 + $0x140] sm:$0xff]
                  %1879 = vst [vmem:[%s1797 + $0x140] sm:$0xff] %v1878
                  %v1880 = vld [vmem:[%s1796 + $0x148] sm:$0xff]
                  %1881 = vst [vmem:[%s1797 + $0x148] sm:$0xff] %v1880
                  %v1882 = vld [vmem:[%s1796 + $0x150] sm:$0xff]
                  %1883 = vst [vmem:[%s1797 + $0x150] sm:$0xff] %v1882
                  %v1884 = vld [vmem:[%s1796 + $0x158] sm:$0xff]
                  %1885 = vst [vmem:[%s1797 + $0x158] sm:$0xff] %v1884
                  %v1886 = vld [vmem:[%s1796 + $0x160] sm:$0xff]
                  %1887 = vst [vmem:[%s1797 + $0x160] sm:$0xff] %v1886
                  %v1888 = vld [vmem:[%s1796 + $0x168] sm:$0xff]
                  %1889 = vst [vmem:[%s1797 + $0x168] sm:$0xff] %v1888
                  %v1890 = vld [vmem:[%s1796 + $0x170] sm:$0xff]
                  %1891 = vst [vmem:[%s1797 + $0x170] sm:$0xff] %v1890
                  %v1892 = vld [vmem:[%s1796 + $0x178] sm:$0xff]
                  %1893 = vst [vmem:[%s1797 + $0x178] sm:$0xff] %v1892
                  %s1894 = sadd.s32 1, %s1795
                  %p1895 = scmp.ge.s32.totalorder %s1894, %s1787
                  %s1896 = scalar_select %p1895, 0, %s1894
                  %s1897 = smul.u32 %s1896, 384
                  %s1898 = smul.u32 %s1896, 384
                  %s1899 = scalar_lea.vmem %s1621, %s1897 [#allocation8]
                  %s1900 = scalar_lea.vmem %s1636, %s1898
                $region87: #{analogy_forward.2} parent=81 // loop_footer
                  %s1792 = sadd.s32 %s1790, 1
                $region88: #{analogy_forward.2} parent=81 // loop_footer_branch
                  %1789 = sbr.rel target = $region84
                $region89: #{analogy_forward.2} parent=81 // loop_exit
                  _
                %s1901 = sdiv.u32.pop %s1632, 48
                %s1902 = srem.u32.pop %s1632, 48
                %s1903 = smul.u32 %s1901, 48
                %s1904 = smul.u32 8, %s1903
                %s1905 = scalar_lea.vmem %s1621, %s1904 [#allocation8]
                %s1906 = smul.u32 8, %s1903
                %s1907 = scalar_lea.vmem %s1636, %s1906
                // While loop
                $region90: #{analogy_forward.2} parent=81 // loop_pre_header
                  _
                $region91: #{analogy_forward.2} parent=81 // loop_header
                  %s1909 = sphi 0, %s1911
                  %p1910 = scmp.ge.s32.totalorder %s1909, %s1902
                  %s1914 = sphi 0, %s1921
                  %s1915 = sphi %s1905, %s1924
                  %s1916 = sphi %s1907, %s1925
                $region92: #{analogy_forward.2} parent=81 // loop_header_branch
                  %1913 = sbr.rel (%p1910) target = $region96
                $region93: #{analogy_forward.2} parent=81 // loop_body
                  %v1917 = vld [vmem:[%s1915] sm:$0xff]
                  %1918 = vst [vmem:[%s1916] sm:$0xff] %v1917
                  %s1919 = sadd.s32 1, %s1914
                  %p1920 = scmp.ge.s32.totalorder %s1919, %s1902
                  %s1921 = scalar_select %p1920, 0, %s1919
                  %s1922 = smul.u32 %s1921, 8
                  %s1923 = smul.u32 %s1921, 8
                  %s1924 = scalar_lea.vmem %s1905, %s1922 [#allocation8]
                  %s1925 = scalar_lea.vmem %s1907, %s1923
                $region94: #{analogy_forward.2} parent=81 // loop_footer
                  %s1911 = sadd.s32 %s1909, 1
                $region95: #{analogy_forward.2} parent=81 // loop_footer_branch
                  %1908 = sbr.rel target = $region91
                $region96: #{analogy_forward.2} parent=81 // loop_exit
                  _
              $region82: #{analogy_forward.2} parent=59 // pred_fallthru
                _
              // Predicated region
              $region97: #{analogy_forward.2} parent=59 // pred_check
                _
              $region98: #{analogy_forward.2} parent=59 // pred_check_branch
                %1927 = sbr.rel target = $region100
              $region99: #{analogy_forward.2} parent=59 // pred_region
                _
              $region100: #{analogy_forward.2} parent=59 // pred_fallthru
                _
            $region60: #{analogy_forward.2} parent=55 // pred_fallthru
              _
            // Predicated region
            $region61: #{analogy_forward.2} parent=55 // pred_check
              _
            $region62: #{analogy_forward.2} parent=55 // pred_check_branch
              %1643 = sbr.rel target = $region64
            $region63: #{analogy_forward.2} parent=55 // pred_region
              %s1645 = ssub.s32 256, 1
              %s1646 = sdiv.u32.pop %s1632, 48
              %s1647 = srem.u32.pop %s1632, 48
              // While loop
              $region65: #{analogy_forward.2} parent=63 // loop_pre_header
                _
              $region66: #{analogy_forward.2} parent=63 // loop_header
                %s1649 = sphi 0, %s1651
                %p1650 = scmp.ge.s32.totalorder %s1649, %s1646
                %s1654 = sphi 0, %s1755
                %s1655 = sphi %s1621, %s1758
                %s1656 = sphi %s1636, %s1759
              $region67: #{analogy_forward.2} parent=63 // loop_header_branch
                %1653 = sbr.rel (%p1650) target = $region71
              $region68: #{analogy_forward.2} parent=63 // loop_body
                %v1657 = vld [vmem:[%s1655] sm:%s1645]
                %1658 = vst [vmem:[%s1656] sm:%s1645] %v1657
                %v1659 = vld [vmem:[%s1655 + $0x8] sm:%s1645]
                %1660 = vst [vmem:[%s1656 + $0x8] sm:%s1645] %v1659
                %v1661 = vld [vmem:[%s1655 + $0x10] sm:%s1645]
                %1662 = vst [vmem:[%s1656 + $0x10] sm:%s1645] %v1661
                %v1663 = vld [vmem:[%s1655 + $0x18] sm:%s1645]
                %1664 = vst [vmem:[%s1656 + $0x18] sm:%s1645] %v1663
                %v1665 = vld [vmem:[%s1655 + $0x20] sm:%s1645]
                %1666 = vst [vmem:[%s1656 + $0x20] sm:%s1645] %v1665
                %v1667 = vld [vmem:[%s1655 + $0x28] sm:%s1645]
                %1668 = vst [vmem:[%s1656 + $0x28] sm:%s1645] %v1667
                %v1669 = vld [vmem:[%s1655 + $0x30] sm:%s1645]
                %1670 = vst [vmem:[%s1656 + $0x30] sm:%s1645] %v1669
                %v1671 = vld [vmem:[%s1655 + $0x38] sm:%s1645]
                %1672 = vst [vmem:[%s1656 + $0x38] sm:%s1645] %v1671
                %v1673 = vld [vmem:[%s1655 + $0x40] sm:%s1645]
                %1674 = vst [vmem:[%s1656 + $0x40] sm:%s1645] %v1673
                %v1675 = vld [vmem:[%s1655 + $0x48] sm:%s1645]
                %1676 = vst [vmem:[%s1656 + $0x48] sm:%s1645] %v1675
                %v1677 = vld [vmem:[%s1655 + $0x50] sm:%s1645]
                %1678 = vst [vmem:[%s1656 + $0x50] sm:%s1645] %v1677
                %v1679 = vld [vmem:[%s1655 + $0x58] sm:%s1645]
                %1680 = vst [vmem:[%s1656 + $0x58] sm:%s1645] %v1679
                %v1681 = vld [vmem:[%s1655 + $0x60] sm:%s1645]
                %1682 = vst [vmem:[%s1656 + $0x60] sm:%s1645] %v1681
                %v1683 = vld [vmem:[%s1655 + $0x68] sm:%s1645]
                %1684 = vst [vmem:[%s1656 + $0x68] sm:%s1645] %v1683
                %v1685 = vld [vmem:[%s1655 + $0x70] sm:%s1645]
                %1686 = vst [vmem:[%s1656 + $0x70] sm:%s1645] %v1685
                %v1687 = vld [vmem:[%s1655 + $0x78] sm:%s1645]
                %1688 = vst [vmem:[%s1656 + $0x78] sm:%s1645] %v1687
                %v1689 = vld [vmem:[%s1655 + $0x80] sm:%s1645]
                %1690 = vst [vmem:[%s1656 + $0x80] sm:%s1645] %v1689
                %v1691 = vld [vmem:[%s1655 + $0x88] sm:%s1645]
                %1692 = vst [vmem:[%s1656 + $0x88] sm:%s1645] %v1691
                %v1693 = vld [vmem:[%s1655 + $0x90] sm:%s1645]
                %1694 = vst [vmem:[%s1656 + $0x90] sm:%s1645] %v1693
                %v1695 = vld [vmem:[%s1655 + $0x98] sm:%s1645]
                %1696 = vst [vmem:[%s1656 + $0x98] sm:%s1645] %v1695
                %v1697 = vld [vmem:[%s1655 + $0xa0] sm:%s1645]
                %1698 = vst [vmem:[%s1656 + $0xa0] sm:%s1645] %v1697
                %v1699 = vld [vmem:[%s1655 + $0xa8] sm:%s1645]
                %1700 = vst [vmem:[%s1656 + $0xa8] sm:%s1645] %v1699
                %v1701 = vld [vmem:[%s1655 + $0xb0] sm:%s1645]
                %1702 = vst [vmem:[%s1656 + $0xb0] sm:%s1645] %v1701
                %v1703 = vld [vmem:[%s1655 + $0xb8] sm:%s1645]
                %1704 = vst [vmem:[%s1656 + $0xb8] sm:%s1645] %v1703
                %v1705 = vld [vmem:[%s1655 + $0xc0] sm:%s1645]
                %1706 = vst [vmem:[%s1656 + $0xc0] sm:%s1645] %v1705
                %v1707 = vld [vmem:[%s1655 + $0xc8] sm:%s1645]
                %1708 = vst [vmem:[%s1656 + $0xc8] sm:%s1645] %v1707
                %v1709 = vld [vmem:[%s1655 + $0xd0] sm:%s1645]
                %1710 = vst [vmem:[%s1656 + $0xd0] sm:%s1645] %v1709
                %v1711 = vld [vmem:[%s1655 + $0xd8] sm:%s1645]
                %1712 = vst [vmem:[%s1656 + $0xd8] sm:%s1645] %v1711
                %v1713 = vld [vmem:[%s1655 + $0xe0] sm:%s1645]
                %1714 = vst [vmem:[%s1656 + $0xe0] sm:%s1645] %v1713
                %v1715 = vld [vmem:[%s1655 + $0xe8] sm:%s1645]
                %1716 = vst [vmem:[%s1656 + $0xe8] sm:%s1645] %v1715
                %v1717 = vld [vmem:[%s1655 + $0xf0] sm:%s1645]
                %1718 = vst [vmem:[%s1656 + $0xf0] sm:%s1645] %v1717
                %v1719 = vld [vmem:[%s1655 + $0xf8] sm:%s1645]
                %1720 = vst [vmem:[%s1656 + $0xf8] sm:%s1645] %v1719
                %v1721 = vld [vmem:[%s1655 + $0x100] sm:%s1645]
                %1722 = vst [vmem:[%s1656 + $0x100] sm:%s1645] %v1721
                %v1723 = vld [vmem:[%s1655 + $0x108] sm:%s1645]
                %1724 = vst [vmem:[%s1656 + $0x108] sm:%s1645] %v1723
                %v1725 = vld [vmem:[%s1655 + $0x110] sm:%s1645]
                %1726 = vst [vmem:[%s1656 + $0x110] sm:%s1645] %v1725
                %v1727 = vld [vmem:[%s1655 + $0x118] sm:%s1645]
                %1728 = vst [vmem:[%s1656 + $0x118] sm:%s1645] %v1727
                %v1729 = vld [vmem:[%s1655 + $0x120] sm:%s1645]
                %1730 = vst [vmem:[%s1656 + $0x120] sm:%s1645] %v1729
                %v1731 = vld [vmem:[%s1655 + $0x128] sm:%s1645]
                %1732 = vst [vmem:[%s1656 + $0x128] sm:%s1645] %v1731
                %v1733 = vld [vmem:[%s1655 + $0x130] sm:%s1645]
                %1734 = vst [vmem:[%s1656 + $0x130] sm:%s1645] %v1733
                %v1735 = vld [vmem:[%s1655 + $0x138] sm:%s1645]
                %1736 = vst [vmem:[%s1656 + $0x138] sm:%s1645] %v1735
                %v1737 = vld [vmem:[%s1655 + $0x140] sm:%s1645]
                %1738 = vst [vmem:[%s1656 + $0x140] sm:%s1645] %v1737
                %v1739 = vld [vmem:[%s1655 + $0x148] sm:%s1645]
                %1740 = vst [vmem:[%s1656 + $0x148] sm:%s1645] %v1739
                %v1741 = vld [vmem:[%s1655 + $0x150] sm:%s1645]
                %1742 = vst [vmem:[%s1656 + $0x150] sm:%s1645] %v1741
                %v1743 = vld [vmem:[%s1655 + $0x158] sm:%s1645]
                %1744 = vst [vmem:[%s1656 + $0x158] sm:%s1645] %v1743
                %v1745 = vld [vmem:[%s1655 + $0x160] sm:%s1645]
                %1746 = vst [vmem:[%s1656 + $0x160] sm:%s1645] %v1745
                %v1747 = vld [vmem:[%s1655 + $0x168] sm:%s1645]
                %1748 = vst [vmem:[%s1656 + $0x168] sm:%s1645] %v1747
                %v1749 = vld [vmem:[%s1655 + $0x170] sm:%s1645]
                %1750 = vst [vmem:[%s1656 + $0x170] sm:%s1645] %v1749
                %v1751 = vld [vmem:[%s1655 + $0x178] sm:%s1645]
                %1752 = vst [vmem:[%s1656 + $0x178] sm:%s1645] %v1751
                %s1753 = sadd.s32 1, %s1654
                %p1754 = scmp.ge.s32.totalorder %s1753, %s1646
                %s1755 = scalar_select %p1754, 0, %s1753
                %s1756 = smul.u32 %s1755, 384
                %s1757 = smul.u32 %s1755, 384
                %s1758 = scalar_lea.vmem %s1621, %s1756 [#allocation8]
                %s1759 = scalar_lea.vmem %s1636, %s1757
              $region69: #{analogy_forward.2} parent=63 // loop_footer
                %s1651 = sadd.s32 %s1649, 1
              $region70: #{analogy_forward.2} parent=63 // loop_footer_branch
                %1648 = sbr.rel target = $region66
              $region71: #{analogy_forward.2} parent=63 // loop_exit
                _
              %s1760 = sdiv.u32.pop %s1632, 48
              %s1761 = srem.u32.pop %s1632, 48
              %s1762 = smul.u32 %s1760, 48
              %s1763 = smul.u32 8, %s1762
              %s1764 = scalar_lea.vmem %s1621, %s1763 [#allocation8]
              %s1765 = smul.u32 8, %s1762
              %s1766 = scalar_lea.vmem %s1636, %s1765
              // While loop
              $region72: #{analogy_forward.2} parent=63 // loop_pre_header
                _
              $region73: #{analogy_forward.2} parent=63 // loop_header
                %s1768 = sphi 0, %s1770
                %p1769 = scmp.ge.s32.totalorder %s1768, %s1761
                %s1773 = sphi 0, %s1780
                %s1774 = sphi %s1764, %s1783
                %s1775 = sphi %s1766, %s1784
              $region74: #{analogy_forward.2} parent=63 // loop_header_branch
                %1772 = sbr.rel (%p1769) target = $region78
              $region75: #{analogy_forward.2} parent=63 // loop_body
                %v1776 = vld [vmem:[%s1774] sm:%s1645]
                %1777 = vst [vmem:[%s1775] sm:%s1645] %v1776
                %s1778 = sadd.s32 1, %s1773
                %p1779 = scmp.ge.s32.totalorder %s1778, %s1761
                %s1780 = scalar_select %p1779, 0, %s1778
                %s1781 = smul.u32 %s1780, 8
                %s1782 = smul.u32 %s1780, 8
                %s1783 = scalar_lea.vmem %s1764, %s1781 [#allocation8]
                %s1784 = scalar_lea.vmem %s1766, %s1782
              $region76: #{analogy_forward.2} parent=63 // loop_footer
                %s1770 = sadd.s32 %s1768, 1
              $region77: #{analogy_forward.2} parent=63 // loop_footer_branch
                %1767 = sbr.rel target = $region73
              $region78: #{analogy_forward.2} parent=63 // loop_exit
                _
            $region64: #{analogy_forward.2} parent=55 // pred_fallthru
              _
          $region56: #{analogy_forward.2} parent=51 // pred_fallthru
            _
          %1928 = vnop
        $region52: #{analogy_forward.2} parent=35 // pred_fallthru
          _
        // Predicated region
        $region101: #{analogy_forward.2} parent=35 // pred_check
          %p1929 = pneg %p160
        $region102: #{analogy_forward.2} parent=35 // pred_check_branch
          %1931 = sbr.rel (%p1929) target = $region104
        $region103: #{analogy_forward.2} parent=35 // pred_region
          %s1932 = smul.u32 48, %s22
          %s1933 = ssub.s32 188, %s1932
          %p1934 = scmp.lt.s32.totalorder %s1933, 48
          %s1935 = scalar_select %p1934, %s1933, 48
          %s1936 = smul.u32 64, %s1935
          %p1937 = scmp.ne.s32.totalorder 0, %s1936
          %s1938 = smul.addr %s1932, 4
          %s1939 = scalar_lea.vmem %s5, %s1938
          // Predicated region
          $region105: #{analogy_forward.2} parent=103 // pred_check
            %p1940 = pneg %p1937
          $region106: #{analogy_forward.2} parent=103 // pred_check_branch
            %1942 = sbr.rel (%p1940) target = $region108
          $region107: #{analogy_forward.2} parent=103 // pred_region
            // Predicated region
            $region109: #{analogy_forward.2} parent=107 // pred_check
              _
            $region110: #{analogy_forward.2} parent=107 // pred_check_branch
              %1944 = sbr.rel target = $region112
            $region111: #{analogy_forward.2} parent=107 // pred_region
              // Predicated region
              $region131: #{analogy_forward.2} parent=111 // pred_check
                _
              $region132: #{analogy_forward.2} parent=111 // pred_check_branch
                %2089 = sbr.rel (0) target = $region134
              $region133: #{analogy_forward.2} parent=111 // pred_region
                %s2091 = ssub.s32 16, 1
                %s2092 = sdiv.u32.pop %s1935, 48
                %s2093 = srem.u32.pop %s1935, 48
                // While loop
                $region135: #{analogy_forward.2} parent=133 // loop_pre_header
                  _
                $region136: #{analogy_forward.2} parent=133 // loop_header
                  %s2095 = sphi 0, %s2097
                  %p2096 = scmp.ge.s32.totalorder %s2095, %s2092
                  %s2100 = sphi 0, %s2201
                  %s2101 = sphi %s1625, %s2204
                  %s2102 = sphi %s1939, %s2205
                $region137: #{analogy_forward.2} parent=133 // loop_header_branch
                  %2099 = sbr.rel (%p2096) target = $region141
                $region138: #{analogy_forward.2} parent=133 // loop_body
                  %v2103 = vld [vmem:[%s2101] sm:%s2091]
                  %2104 = vst [vmem:[%s2102] sm:%s2091] %v2103
                  %v2105 = vld [vmem:[%s2101 + $0x4] sm:%s2091]
                  %2106 = vst [vmem:[%s2102 + $0x4] sm:%s2091] %v2105
                  %v2107 = vld [vmem:[%s2101 + $0x8] sm:%s2091]
                  %2108 = vst [vmem:[%s2102 + $0x8] sm:%s2091] %v2107
                  %v2109 = vld [vmem:[%s2101 + $0xc] sm:%s2091]
                  %2110 = vst [vmem:[%s2102 + $0xc] sm:%s2091] %v2109
                  %v2111 = vld [vmem:[%s2101 + $0x10] sm:%s2091]
                  %2112 = vst [vmem:[%s2102 + $0x10] sm:%s2091] %v2111
                  %v2113 = vld [vmem:[%s2101 + $0x14] sm:%s2091]
                  %2114 = vst [vmem:[%s2102 + $0x14] sm:%s2091] %v2113
                  %v2115 = vld [vmem:[%s2101 + $0x18] sm:%s2091]
                  %2116 = vst [vmem:[%s2102 + $0x18] sm:%s2091] %v2115
                  %v2117 = vld [vmem:[%s2101 + $0x1c] sm:%s2091]
                  %2118 = vst [vmem:[%s2102 + $0x1c] sm:%s2091] %v2117
                  %v2119 = vld [vmem:[%s2101 + $0x20] sm:%s2091]
                  %2120 = vst [vmem:[%s2102 + $0x20] sm:%s2091] %v2119
                  %v2121 = vld [vmem:[%s2101 + $0x24] sm:%s2091]
                  %2122 = vst [vmem:[%s2102 + $0x24] sm:%s2091] %v2121
                  %v2123 = vld [vmem:[%s2101 + $0x28] sm:%s2091]
                  %2124 = vst [vmem:[%s2102 + $0x28] sm:%s2091] %v2123
                  %v2125 = vld [vmem:[%s2101 + $0x2c] sm:%s2091]
                  %2126 = vst [vmem:[%s2102 + $0x2c] sm:%s2091] %v2125
                  %v2127 = vld [vmem:[%s2101 + $0x30] sm:%s2091]
                  %2128 = vst [vmem:[%s2102 + $0x30] sm:%s2091] %v2127
                  %v2129 = vld [vmem:[%s2101 + $0x34] sm:%s2091]
                  %2130 = vst [vmem:[%s2102 + $0x34] sm:%s2091] %v2129
                  %v2131 = vld [vmem:[%s2101 + $0x38] sm:%s2091]
                  %2132 = vst [vmem:[%s2102 + $0x38] sm:%s2091] %v2131
                  %v2133 = vld [vmem:[%s2101 + $0x3c] sm:%s2091]
                  %2134 = vst [vmem:[%s2102 + $0x3c] sm:%s2091] %v2133
                  %v2135 = vld [vmem:[%s2101 + $0x40] sm:%s2091]
                  %2136 = vst [vmem:[%s2102 + $0x40] sm:%s2091] %v2135
                  %v2137 = vld [vmem:[%s2101 + $0x44] sm:%s2091]
                  %2138 = vst [vmem:[%s2102 + $0x44] sm:%s2091] %v2137
                  %v2139 = vld [vmem:[%s2101 + $0x48] sm:%s2091]
                  %2140 = vst [vmem:[%s2102 + $0x48] sm:%s2091] %v2139
                  %v2141 = vld [vmem:[%s2101 + $0x4c] sm:%s2091]
                  %2142 = vst [vmem:[%s2102 + $0x4c] sm:%s2091] %v2141
                  %v2143 = vld [vmem:[%s2101 + $0x50] sm:%s2091]
                  %2144 = vst [vmem:[%s2102 + $0x50] sm:%s2091] %v2143
                  %v2145 = vld [vmem:[%s2101 + $0x54] sm:%s2091]
                  %2146 = vst [vmem:[%s2102 + $0x54] sm:%s2091] %v2145
                  %v2147 = vld [vmem:[%s2101 + $0x58] sm:%s2091]
                  %2148 = vst [vmem:[%s2102 + $0x58] sm:%s2091] %v2147
                  %v2149 = vld [vmem:[%s2101 + $0x5c] sm:%s2091]
                  %2150 = vst [vmem:[%s2102 + $0x5c] sm:%s2091] %v2149
                  %v2151 = vld [vmem:[%s2101 + $0x60] sm:%s2091]
                  %2152 = vst [vmem:[%s2102 + $0x60] sm:%s2091] %v2151
                  %v2153 = vld [vmem:[%s2101 + $0x64] sm:%s2091]
                  %2154 = vst [vmem:[%s2102 + $0x64] sm:%s2091] %v2153
                  %v2155 = vld [vmem:[%s2101 + $0x68] sm:%s2091]
                  %2156 = vst [vmem:[%s2102 + $0x68] sm:%s2091] %v2155
                  %v2157 = vld [vmem:[%s2101 + $0x6c] sm:%s2091]
                  %2158 = vst [vmem:[%s2102 + $0x6c] sm:%s2091] %v2157
                  %v2159 = vld [vmem:[%s2101 + $0x70] sm:%s2091]
                  %2160 = vst [vmem:[%s2102 + $0x70] sm:%s2091] %v2159
                  %v2161 = vld [vmem:[%s2101 + $0x74] sm:%s2091]
                  %2162 = vst [vmem:[%s2102 + $0x74] sm:%s2091] %v2161
                  %v2163 = vld [vmem:[%s2101 + $0x78] sm:%s2091]
                  %2164 = vst [vmem:[%s2102 + $0x78] sm:%s2091] %v2163
                  %v2165 = vld [vmem:[%s2101 + $0x7c] sm:%s2091]
                  %2166 = vst [vmem:[%s2102 + $0x7c] sm:%s2091] %v2165
                  %v2167 = vld [vmem:[%s2101 + $0x80] sm:%s2091]
                  %2168 = vst [vmem:[%s2102 + $0x80] sm:%s2091] %v2167
                  %v2169 = vld [vmem:[%s2101 + $0x84] sm:%s2091]
                  %2170 = vst [vmem:[%s2102 + $0x84] sm:%s2091] %v2169
                  %v2171 = vld [vmem:[%s2101 + $0x88] sm:%s2091]
                  %2172 = vst [vmem:[%s2102 + $0x88] sm:%s2091] %v2171
                  %v2173 = vld [vmem:[%s2101 + $0x8c] sm:%s2091]
                  %2174 = vst [vmem:[%s2102 + $0x8c] sm:%s2091] %v2173
                  %v2175 = vld [vmem:[%s2101 + $0x90] sm:%s2091]
                  %2176 = vst [vmem:[%s2102 + $0x90] sm:%s2091] %v2175
                  %v2177 = vld [vmem:[%s2101 + $0x94] sm:%s2091]
                  %2178 = vst [vmem:[%s2102 + $0x94] sm:%s2091] %v2177
                  %v2179 = vld [vmem:[%s2101 + $0x98] sm:%s2091]
                  %2180 = vst [vmem:[%s2102 + $0x98] sm:%s2091] %v2179
                  %v2181 = vld [vmem:[%s2101 + $0x9c] sm:%s2091]
                  %2182 = vst [vmem:[%s2102 + $0x9c] sm:%s2091] %v2181
                  %v2183 = vld [vmem:[%s2101 + $0xa0] sm:%s2091]
                  %2184 = vst [vmem:[%s2102 + $0xa0] sm:%s2091] %v2183
                  %v2185 = vld [vmem:[%s2101 + $0xa4] sm:%s2091]
                  %2186 = vst [vmem:[%s2102 + $0xa4] sm:%s2091] %v2185
                  %v2187 = vld [vmem:[%s2101 + $0xa8] sm:%s2091]
                  %2188 = vst [vmem:[%s2102 + $0xa8] sm:%s2091] %v2187
                  %v2189 = vld [vmem:[%s2101 + $0xac] sm:%s2091]
                  %2190 = vst [vmem:[%s2102 + $0xac] sm:%s2091] %v2189
                  %v2191 = vld [vmem:[%s2101 + $0xb0] sm:%s2091]
                  %2192 = vst [vmem:[%s2102 + $0xb0] sm:%s2091] %v2191
                  %v2193 = vld [vmem:[%s2101 + $0xb4] sm:%s2091]
                  %2194 = vst [vmem:[%s2102 + $0xb4] sm:%s2091] %v2193
                  %v2195 = vld [vmem:[%s2101 + $0xb8] sm:%s2091]
                  %2196 = vst [vmem:[%s2102 + $0xb8] sm:%s2091] %v2195
                  %v2197 = vld [vmem:[%s2101 + $0xbc] sm:%s2091]
                  %2198 = vst [vmem:[%s2102 + $0xbc] sm:%s2091] %v2197
                  %s2199 = sadd.s32 1, %s2100
                  %p2200 = scmp.ge.s32.totalorder %s2199, %s2092
                  %s2201 = scalar_select %p2200, 0, %s2199
                  %s2202 = smul.u32 %s2201, 192
                  %s2203 = smul.u32 %s2201, 192
                  %s2204 = scalar_lea.vmem %s1625, %s2202 [#allocation9]
                  %s2205 = scalar_lea.vmem %s1939, %s2203
                $region139: #{analogy_forward.2} parent=133 // loop_footer
                  %s2097 = sadd.s32 %s2095, 1
                $region140: #{analogy_forward.2} parent=133 // loop_footer_branch
                  %2094 = sbr.rel target = $region136
                $region141: #{analogy_forward.2} parent=133 // loop_exit
                  _
                %s2206 = sdiv.u32.pop %s1935, 48
                %s2207 = srem.u32.pop %s1935, 48
                %s2208 = smul.u32 %s2206, 48
                %s2209 = smul.u32 4, %s2208
                %s2210 = scalar_lea.vmem %s1625, %s2209 [#allocation9]
                %s2211 = smul.u32 4, %s2208
                %s2212 = scalar_lea.vmem %s1939, %s2211
                // While loop
                $region142: #{analogy_forward.2} parent=133 // loop_pre_header
                  _
                $region143: #{analogy_forward.2} parent=133 // loop_header
                  %s2214 = sphi 0, %s2216
                  %p2215 = scmp.ge.s32.totalorder %s2214, %s2207
                  %s2219 = sphi 0, %s2226
                  %s2220 = sphi %s2210, %s2229
                  %s2221 = sphi %s2212, %s2230
                $region144: #{analogy_forward.2} parent=133 // loop_header_branch
                  %2218 = sbr.rel (%p2215) target = $region148
                $region145: #{analogy_forward.2} parent=133 // loop_body
                  %v2222 = vld [vmem:[%s2220] sm:%s2091]
                  %2223 = vst [vmem:[%s2221] sm:%s2091] %v2222
                  %s2224 = sadd.s32 1, %s2219
                  %p2225 = scmp.ge.s32.totalorder %s2224, %s2207
                  %s2226 = scalar_select %p2225, 0, %s2224
                  %s2227 = smul.u32 %s2226, 4
                  %s2228 = smul.u32 %s2226, 4
                  %s2229 = scalar_lea.vmem %s2210, %s2227 [#allocation9]
                  %s2230 = scalar_lea.vmem %s2212, %s2228
                $region146: #{analogy_forward.2} parent=133 // loop_footer
                  %s2216 = sadd.s32 %s2214, 1
                $region147: #{analogy_forward.2} parent=133 // loop_footer_branch
                  %2213 = sbr.rel target = $region143
                $region148: #{analogy_forward.2} parent=133 // loop_exit
                  _
              $region134: #{analogy_forward.2} parent=111 // pred_fallthru
                _
            $region112: #{analogy_forward.2} parent=107 // pred_fallthru
              _
            // Predicated region
            $region113: #{analogy_forward.2} parent=107 // pred_check
              _
            $region114: #{analogy_forward.2} parent=107 // pred_check_branch
              %1946 = sbr.rel (0) target = $region116
            $region115: #{analogy_forward.2} parent=107 // pred_region
              %s1948 = ssub.s32 16, 1
              %s1949 = sdiv.u32.pop %s1935, 48
              %s1950 = srem.u32.pop %s1935, 48
              // While loop
              $region117: #{analogy_forward.2} parent=115 // loop_pre_header
                _
              $region118: #{analogy_forward.2} parent=115 // loop_header
                %s1952 = sphi 0, %s1954
                %p1953 = scmp.ge.s32.totalorder %s1952, %s1949
                %s1957 = sphi 0, %s2058
                %s1958 = sphi %s1625, %s2061
                %s1959 = sphi %s1939, %s2062
              $region119: #{analogy_forward.2} parent=115 // loop_header_branch
                %1956 = sbr.rel (%p1953) target = $region123
              $region120: #{analogy_forward.2} parent=115 // loop_body
                %v1960 = vld [vmem:[%s1958] sm:%s1948]
                %1961 = vst [vmem:[%s1959] sm:%s1948] %v1960
                %v1962 = vld [vmem:[%s1958 + $0x4] sm:%s1948]
                %1963 = vst [vmem:[%s1959 + $0x4] sm:%s1948] %v1962
                %v1964 = vld [vmem:[%s1958 + $0x8] sm:%s1948]
                %1965 = vst [vmem:[%s1959 + $0x8] sm:%s1948] %v1964
                %v1966 = vld [vmem:[%s1958 + $0xc] sm:%s1948]
                %1967 = vst [vmem:[%s1959 + $0xc] sm:%s1948] %v1966
                %v1968 = vld [vmem:[%s1958 + $0x10] sm:%s1948]
                %1969 = vst [vmem:[%s1959 + $0x10] sm:%s1948] %v1968
                %v1970 = vld [vmem:[%s1958 + $0x14] sm:%s1948]
                %1971 = vst [vmem:[%s1959 + $0x14] sm:%s1948] %v1970
                %v1972 = vld [vmem:[%s1958 + $0x18] sm:%s1948]
                %1973 = vst [vmem:[%s1959 + $0x18] sm:%s1948] %v1972
                %v1974 = vld [vmem:[%s1958 + $0x1c] sm:%s1948]
                %1975 = vst [vmem:[%s1959 + $0x1c] sm:%s1948] %v1974
                %v1976 = vld [vmem:[%s1958 + $0x20] sm:%s1948]
                %1977 = vst [vmem:[%s1959 + $0x20] sm:%s1948] %v1976
                %v1978 = vld [vmem:[%s1958 + $0x24] sm:%s1948]
                %1979 = vst [vmem:[%s1959 + $0x24] sm:%s1948] %v1978
                %v1980 = vld [vmem:[%s1958 + $0x28] sm:%s1948]
                %1981 = vst [vmem:[%s1959 + $0x28] sm:%s1948] %v1980
                %v1982 = vld [vmem:[%s1958 + $0x2c] sm:%s1948]
                %1983 = vst [vmem:[%s1959 + $0x2c] sm:%s1948] %v1982
                %v1984 = vld [vmem:[%s1958 + $0x30] sm:%s1948]
                %1985 = vst [vmem:[%s1959 + $0x30] sm:%s1948] %v1984
                %v1986 = vld [vmem:[%s1958 + $0x34] sm:%s1948]
                %1987 = vst [vmem:[%s1959 + $0x34] sm:%s1948] %v1986
                %v1988 = vld [vmem:[%s1958 + $0x38] sm:%s1948]
                %1989 = vst [vmem:[%s1959 + $0x38] sm:%s1948] %v1988
                %v1990 = vld [vmem:[%s1958 + $0x3c] sm:%s1948]
                %1991 = vst [vmem:[%s1959 + $0x3c] sm:%s1948] %v1990
                %v1992 = vld [vmem:[%s1958 + $0x40] sm:%s1948]
                %1993 = vst [vmem:[%s1959 + $0x40] sm:%s1948] %v1992
                %v1994 = vld [vmem:[%s1958 + $0x44] sm:%s1948]
                %1995 = vst [vmem:[%s1959 + $0x44] sm:%s1948] %v1994
                %v1996 = vld [vmem:[%s1958 + $0x48] sm:%s1948]
                %1997 = vst [vmem:[%s1959 + $0x48] sm:%s1948] %v1996
                %v1998 = vld [vmem:[%s1958 + $0x4c] sm:%s1948]
                %1999 = vst [vmem:[%s1959 + $0x4c] sm:%s1948] %v1998
                %v2000 = vld [vmem:[%s1958 + $0x50] sm:%s1948]
                %2001 = vst [vmem:[%s1959 + $0x50] sm:%s1948] %v2000
                %v2002 = vld [vmem:[%s1958 + $0x54] sm:%s1948]
                %2003 = vst [vmem:[%s1959 + $0x54] sm:%s1948] %v2002
                %v2004 = vld [vmem:[%s1958 + $0x58] sm:%s1948]
                %2005 = vst [vmem:[%s1959 + $0x58] sm:%s1948] %v2004
                %v2006 = vld [vmem:[%s1958 + $0x5c] sm:%s1948]
                %2007 = vst [vmem:[%s1959 + $0x5c] sm:%s1948] %v2006
                %v2008 = vld [vmem:[%s1958 + $0x60] sm:%s1948]
                %2009 = vst [vmem:[%s1959 + $0x60] sm:%s1948] %v2008
                %v2010 = vld [vmem:[%s1958 + $0x64] sm:%s1948]
                %2011 = vst [vmem:[%s1959 + $0x64] sm:%s1948] %v2010
                %v2012 = vld [vmem:[%s1958 + $0x68] sm:%s1948]
                %2013 = vst [vmem:[%s1959 + $0x68] sm:%s1948] %v2012
                %v2014 = vld [vmem:[%s1958 + $0x6c] sm:%s1948]
                %2015 = vst [vmem:[%s1959 + $0x6c] sm:%s1948] %v2014
                %v2016 = vld [vmem:[%s1958 + $0x70] sm:%s1948]
                %2017 = vst [vmem:[%s1959 + $0x70] sm:%s1948] %v2016
                %v2018 = vld [vmem:[%s1958 + $0x74] sm:%s1948]
                %2019 = vst [vmem:[%s1959 + $0x74] sm:%s1948] %v2018
                %v2020 = vld [vmem:[%s1958 + $0x78] sm:%s1948]
                %2021 = vst [vmem:[%s1959 + $0x78] sm:%s1948] %v2020
                %v2022 = vld [vmem:[%s1958 + $0x7c] sm:%s1948]
                %2023 = vst [vmem:[%s1959 + $0x7c] sm:%s1948] %v2022
                %v2024 = vld [vmem:[%s1958 + $0x80] sm:%s1948]
                %2025 = vst [vmem:[%s1959 + $0x80] sm:%s1948] %v2024
                %v2026 = vld [vmem:[%s1958 + $0x84] sm:%s1948]
                %2027 = vst [vmem:[%s1959 + $0x84] sm:%s1948] %v2026
                %v2028 = vld [vmem:[%s1958 + $0x88] sm:%s1948]
                %2029 = vst [vmem:[%s1959 + $0x88] sm:%s1948] %v2028
                %v2030 = vld [vmem:[%s1958 + $0x8c] sm:%s1948]
                %2031 = vst [vmem:[%s1959 + $0x8c] sm:%s1948] %v2030
                %v2032 = vld [vmem:[%s1958 + $0x90] sm:%s1948]
                %2033 = vst [vmem:[%s1959 + $0x90] sm:%s1948] %v2032
                %v2034 = vld [vmem:[%s1958 + $0x94] sm:%s1948]
                %2035 = vst [vmem:[%s1959 + $0x94] sm:%s1948] %v2034
                %v2036 = vld [vmem:[%s1958 + $0x98] sm:%s1948]
                %2037 = vst [vmem:[%s1959 + $0x98] sm:%s1948] %v2036
                %v2038 = vld [vmem:[%s1958 + $0x9c] sm:%s1948]
                %2039 = vst [vmem:[%s1959 + $0x9c] sm:%s1948] %v2038
                %v2040 = vld [vmem:[%s1958 + $0xa0] sm:%s1948]
                %2041 = vst [vmem:[%s1959 + $0xa0] sm:%s1948] %v2040
                %v2042 = vld [vmem:[%s1958 + $0xa4] sm:%s1948]
                %2043 = vst [vmem:[%s1959 + $0xa4] sm:%s1948] %v2042
                %v2044 = vld [vmem:[%s1958 + $0xa8] sm:%s1948]
                %2045 = vst [vmem:[%s1959 + $0xa8] sm:%s1948] %v2044
                %v2046 = vld [vmem:[%s1958 + $0xac] sm:%s1948]
                %2047 = vst [vmem:[%s1959 + $0xac] sm:%s1948] %v2046
                %v2048 = vld [vmem:[%s1958 + $0xb0] sm:%s1948]
                %2049 = vst [vmem:[%s1959 + $0xb0] sm:%s1948] %v2048
                %v2050 = vld [vmem:[%s1958 + $0xb4] sm:%s1948]
                %2051 = vst [vmem:[%s1959 + $0xb4] sm:%s1948] %v2050
                %v2052 = vld [vmem:[%s1958 + $0xb8] sm:%s1948]
                %2053 = vst [vmem:[%s1959 + $0xb8] sm:%s1948] %v2052
                %v2054 = vld [vmem:[%s1958 + $0xbc] sm:%s1948]
                %2055 = vst [vmem:[%s1959 + $0xbc] sm:%s1948] %v2054
                %s2056 = sadd.s32 1, %s1957
                %p2057 = scmp.ge.s32.totalorder %s2056, %s1949
                %s2058 = scalar_select %p2057, 0, %s2056
                %s2059 = smul.u32 %s2058, 192
                %s2060 = smul.u32 %s2058, 192
                %s2061 = scalar_lea.vmem %s1625, %s2059 [#allocation9]
                %s2062 = scalar_lea.vmem %s1939, %s2060
              $region121: #{analogy_forward.2} parent=115 // loop_footer
                %s1954 = sadd.s32 %s1952, 1
              $region122: #{analogy_forward.2} parent=115 // loop_footer_branch
                %1951 = sbr.rel target = $region118
              $region123: #{analogy_forward.2} parent=115 // loop_exit
                _
              %s2063 = sdiv.u32.pop %s1935, 48
              %s2064 = srem.u32.pop %s1935, 48
              %s2065 = smul.u32 %s2063, 48
              %s2066 = smul.u32 4, %s2065
              %s2067 = scalar_lea.vmem %s1625, %s2066 [#allocation9]
              %s2068 = smul.u32 4, %s2065
              %s2069 = scalar_lea.vmem %s1939, %s2068
              // While loop
              $region124: #{analogy_forward.2} parent=115 // loop_pre_header
                _
              $region125: #{analogy_forward.2} parent=115 // loop_header
                %s2071 = sphi 0, %s2073
                %p2072 = scmp.ge.s32.totalorder %s2071, %s2064
                %s2076 = sphi 0, %s2083
                %s2077 = sphi %s2067, %s2086
                %s2078 = sphi %s2069, %s2087
              $region126: #{analogy_forward.2} parent=115 // loop_header_branch
                %2075 = sbr.rel (%p2072) target = $region130
              $region127: #{analogy_forward.2} parent=115 // loop_body
                %v2079 = vld [vmem:[%s2077] sm:%s1948]
                %2080 = vst [vmem:[%s2078] sm:%s1948] %v2079
                %s2081 = sadd.s32 1, %s2076
                %p2082 = scmp.ge.s32.totalorder %s2081, %s2064
                %s2083 = scalar_select %p2082, 0, %s2081
                %s2084 = smul.u32 %s2083, 4
                %s2085 = smul.u32 %s2083, 4
                %s2086 = scalar_lea.vmem %s2067, %s2084 [#allocation9]
                %s2087 = scalar_lea.vmem %s2069, %s2085
              $region128: #{analogy_forward.2} parent=115 // loop_footer
                %s2073 = sadd.s32 %s2071, 1
              $region129: #{analogy_forward.2} parent=115 // loop_footer_branch
                %2070 = sbr.rel target = $region125
              $region130: #{analogy_forward.2} parent=115 // loop_exit
                _
            $region116: #{analogy_forward.2} parent=107 // pred_fallthru
              _
          $region108: #{analogy_forward.2} parent=103 // pred_fallthru
            _
          %2231 = vnop
        $region104: #{analogy_forward.2} parent=35 // pred_fallthru
          _
      $region36: #{analogy_forward.2} parent=5 // pred_fallthru
        _
      %p2232 = scmp.le.s32.totalorder 2, %s17
      // Predicated region
      $region149: #{analogy_forward.2} parent=5 // pred_check
        %p2233 = pneg %p2232
      $region150: #{analogy_forward.2} parent=5 // pred_check_branch
        %2235 = sbr.rel (%p2233) target = $region152
      $region151: #{analogy_forward.2} parent=5 // pred_region
        %s2236 = ssub.s32 %s17, 2
        // Predicated region
        $region153: #{analogy_forward.2} parent=151 // pred_check
          %p2237 = pneg %p140
        $region154: #{analogy_forward.2} parent=151 // pred_check_branch
          %2239 = sbr.rel (%p2237) target = $region156
        $region155: #{analogy_forward.2} parent=151 // pred_region
          %s2240 = sand.u32 %s125, 1
          %s2241 = sand.u32 %s125, 1
          %s2242 = smul.addr %s2241, 384
          %s2243 = scalar_lea.vmem [#allocation8], %s2242
        $region156: #{analogy_forward.2} parent=151 // pred_fallthru
          _
        // Predicated region
        $region157: #{analogy_forward.2} parent=151 // pred_check
          %p2244 = pneg %p166
        $region158: #{analogy_forward.2} parent=151 // pred_check_branch
          %2246 = sbr.rel (%p2244) target = $region160
        $region159: #{analogy_forward.2} parent=151 // pred_region
          %s2247 = sand.u32 %s151, 1
          %s2248 = sand.u32 %s151, 1
          %s2249 = smul.addr %s2248, 192
          %s2250 = scalar_lea.vmem [#allocation9], %s2249
        $region160: #{analogy_forward.2} parent=151 // pred_fallthru
          _
      $region152: #{analogy_forward.2} parent=5 // pred_fallthru
        _
    $region6: #{analogy_forward.2} parent=1 // loop_footer
      %s21 = sadd.s32 1, %s17
    $region7: #{analogy_forward.2} parent=1 // loop_footer_branch
      %16 = sbr.rel target = $region3
    $region8: #{analogy_forward.2} parent=1 // loop_exit
      _
    %2251 = vsyncpa [#allocation4], 1
    %s2252 = scalar_lea.sflag [#allocation4], 1
    %2253 = vsyncpa %s2252, 1
    %2254 = vsyncpa [#allocation6], 1

</llo_original>
